<compile_context>
chip_gen: v7x
topology: tpu7x:2x2x1
jax: 0.10.0
libtpu: 0.0.40
codegen_flags: <defaults>
</compile_context>

<pallas_src>
import functools

import jax
import jax.numpy as jnp
from jax.experimental import pallas as pl
from jax.experimental.pallas import tpu as pltpu

NUM_NODE_FEATURES = 218
C_PAD = 256                 # feature dim zero-padded to a lane-friendly size
HIDDEN = 512
NUM_CLASSES = 2
OUT_PAD = 128               # fc2 output padded to a lane-dense width
NUM_LAYERS = 2

EPS_MSG = 1e-7              # GENConv message epsilon
EPS_BN = 1e-5               # BatchNorm1d epsilon
EPS_NRM = 1e-12             # F.normalize epsilon
CLAMP_MIN = 1e-7            # PyG PowerMeanAggregation clamp bounds
CLAMP_MAX = 1e4


# ---------------------------------------------------------------------------
# Fused kernel: NUM_LAYERS x (GENConv + folded-BN + ReLU), running JK(max),
# reshape max/mean pool, fc1(folded-BN) + ReLU + fc2 -- one launch, all VMEM
# resident.
# ---------------------------------------------------------------------------
def _fused_net_kernel(layer_cfgs, nodes_per_graph,
                      x_ref, a_ref, invdeg_ref, vec_ref, *refs):
    *w_refs, out_ref = refs
    wi = 0      # weight-ref cursor
    vi = 0      # packed-bias-row cursor (must mirror prepare_inference_params)

    a_bf = a_ref[...]            # (N, N) bf16 exact 0/1 edge counts
    inv_deg = invdeg_ref[...]    # (N, 1) f32  1/max(in_degree, 1)
    x_bf = x_ref[...]            # (N, C_PAD) bf16 (zero-padded node features)

    cur_f32 = None               # f32 activations of the previous layer
    xjk = None                   # running JumpingKnowledge(max)

    for has_proj, p, scale in layer_cfgs:
        if has_proj:
            w_src = w_refs[wi][...]
            w_dst = w_refs[wi + 1][...]
            wi += 2
            b_src = vec_ref[vi:vi + 1, :]
            b_dst = vec_ref[vi + 1:vi + 2, :]
            vi += 2
            h_src = (jnp.dot(x_bf, w_src, preferred_element_type=jnp.float32)
                     + b_src)
        else:
            # GENConv(512->512): lin_src / lin_dst are identity -> skipped
            h_src = cur_f32
        w_mlp = w_refs[wi][...]
        wi += 1
        b_mlp = vec_ref[vi:vi + 1, :]
        vi += 1

        # message: relu(x_j) + eps
        msg = jnp.maximum(h_src, 0.0) + EPS_MSG

        # PowerMean aggregation: scatter-mean expressed as an exact bf16
        # count-matrix matmul (f32 accumulate) + f32 inverse-degree post-scale.
        if p == 1.0:
            msg = jnp.clip(msg, CLAMP_MIN, CLAMP_MAX)
            agg = jnp.dot(a_bf, msg.astype(jnp.bfloat16),
                          preferred_element_type=jnp.float32) * inv_deg
            agg = jnp.clip(agg, CLAMP_MIN, CLAMP_MAX)
        else:
            msg = jnp.exp(jnp.log(jnp.clip(msg, CLAMP_MIN, CLAMP_MAX)) * p)
            agg = jnp.dot(a_bf, msg.astype(jnp.bfloat16),
                          preferred_element_type=jnp.float32) * inv_deg
            agg = jnp.exp(jnp.log(jnp.clip(agg, CLAMP_MIN, CLAMP_MAX)) * (1.0 / p))

        # MessageNorm: normalize(agg, dim=-1) * ||x||_2 * scale
        # (rsqrt on the otherwise-idle EUP slot; scale is a static constant)
        agg_sq = jnp.sum(agg * agg, axis=-1, keepdims=True)
        inv_norm = jax.lax.rsqrt(jnp.maximum(agg_sq, EPS_NRM * EPS_NRM))
        if has_proj:
            xf = x_bf.astype(jnp.float32)                      # temp, not held
            x_sq = jnp.sum(xf * xf, axis=-1, keepdims=True)
        else:
            x_sq = jnp.sum(cur_f32 * cur_f32, axis=-1, keepdims=True)
        x_norm = jnp.sqrt(x_sq)
        out = agg * (inv_norm * x_norm * scale)

        # residual with (projected) destination features
        if has_proj:
            out = out + (jnp.dot(x_bf, w_dst, preferred_element_type=jnp.float32)
                         + b_dst)
        else:
            out = out + cur_f32

        # GENConv internal MLP (single Linear) with the inference BatchNorm1d
        # already folded into (w_mlp, b_mlp) at prepare time, then ReLU.
        out = (jnp.dot(out.astype(jnp.bfloat16), w_mlp,
                       preferred_element_type=jnp.float32) + b_mlp)
        out = jnp.maximum(out, 0.0)

        # JumpingKnowledge(mode='max') as a running max
        xjk = out if xjk is None else jnp.maximum(xjk, out)
        cur_f32 = out
        x_bf = out.astype(jnp.bfloat16)

    # global_max_pool / global_mean_pool: equal-sized graphs -> one reshape and
    # one reduction each (no per-graph loop, no concat, no mask inputs).
    # TODO(synk): ragged graph sizes need mask-based / segment pooling instead.
    num_graphs = xjk.shape[0] // nodes_per_graph
    xg = xjk.reshape(num_graphs, nodes_per_graph, HIDDEN)
    maxp = jnp.max(xg, axis=1)
    meanp = jnp.sum(xg, axis=1) * (1.0 / nodes_per_graph)

    # fc1 on cat([max, mean], dim=1) as two matmuls; head BN folded into
    # (w1a, w1b, b1) at prepare time.
    w1a = w_refs[wi][...]
    w1b = w_refs[wi + 1][...]
    w2 = w_refs[wi + 2][...]
    b1 = vec_ref[vi:vi + 1, :]
    b2 = vec_ref[vi + 1:vi + 2, 0:OUT_PAD]
    h = (jnp.dot(maxp.astype(jnp.bfloat16), w1a, preferred_element_type=jnp.float32)
         + jnp.dot(meanp.astype(jnp.bfloat16), w1b, preferred_element_type=jnp.float32)
         + b1)
    h = jnp.maximum(h, 0.0)

    # TODO(synk): Dropout(p=0.65) is identity in inference; train-mode RNG mask not implemented.
    out_ref[...] = (jnp.dot(h.astype(jnp.bfloat16), w2,
                            preferred_element_type=jnp.float32) + b2)


# ---------------------------------------------------------------------------
# Parameters (deterministic synthetic init; learnable scalars at GENConv's
# documented init values p = 1.0, msg_scale = 1.0)
# ---------------------------------------------------------------------------
def init_params(key):
    keys = jax.random.split(key, 64)
    it = iter(keys)

    def nrm(shape, s=0.05):
        return jax.random.normal(next(it), shape, jnp.float32) * s

    layers = []
    for i in range(NUM_LAYERS):
        if i == 0:
            # lin_src / lin_dst: 218 -> 512 (rows zero-padded to C_PAD; padded
            # input columns are zero so results equal the 218-dim op)
            w_src = jnp.pad(nrm((NUM_NODE_FEATURES, HIDDEN)),
                            ((0, C_PAD - NUM_NODE_FEATURES), (0, 0)))
            b_src = nrm((1, HIDDEN), 0.01)
            w_dst = jnp.pad(nrm((NUM_NODE_FEATURES, HIDDEN)),
                            ((0, C_PAD - NUM_NODE_FEATURES), (0, 0)))
            b_dst = nrm((1, HIDDEN), 0.01)
        else:
            # GENConv(512 -> 512): no lin_src / lin_dst (identity) -> skipped statically
            w_src = b_src = w_dst = b_dst = None
        layers.append(dict(
            w_src=w_src, b_src=b_src, w_dst=w_dst, b_dst=b_dst,
            w_mlp=nrm((HIDDEN, HIDDEN)), b_mlp=nrm((1, HIDDEN), 0.01),
            gamma=1.0 + nrm((1, HIDDEN), 0.1),
            beta=nrm((1, HIDDEN), 0.05),
            mean=nrm((1, HIDDEN), 0.1),
            var=1.0 + jnp.abs(nrm((1, HIDDEN), 0.2)),
            p=jnp.float32(1.0),        # learnable power-mean exponent (init 1.0)
            scale=jnp.float32(1.0),    # learnable MessageNorm scale  (init 1.0)
        ))

    w1 = nrm((2 * HIDDEN, HIDDEN))     # fc1: cat([max_pool, mean_pool]) -> 512
    head_p = dict(
        w1a=w1[:HIDDEN], w1b=w1[HIDDEN:], b1=nrm((1, HIDDEN), 0.01),
        gamma=1.0 + nrm((1, HIDDEN), 0.1), beta=nrm((1, HIDDEN), 0.05),
        mean=nrm((1, HIDDEN), 0.1), var=1.0 + jnp.abs(nrm((1, HIDDEN), 0.2)),
        w2=nrm((HIDDEN, NUM_CLASSES)), b2=nrm((1, NUM_CLASSES), 0.01),
    )
    return dict(layers=layers, head=head_p)


def prepare_inference_params(params):
    """Static flags, BN-folded bf16 weights, and one packed f32 bias buffer."""
    layers = params["layers"]
    hp = params["head"]

    layer_cfgs = []
    weights = []
    vec_rows = []          # each row is a (1, HIDDEN) f32 bias vector

    for lp in layers:
        has_proj = lp["w_src"] is not None
        layer_cfgs.append((has_proj, float(lp["p"]), float(lp["scale"])))

        if has_proj:
            weights += [lp["w_src"].astype(jnp.bfloat16),
                        lp["w_dst"].astype(jnp.bfloat16)]
            vec_rows += [lp["b_src"], lp["b_dst"]]

        # Fold inference BatchNorm1d (running stats) into the GENConv MLP.
        s = lp["gamma"] * jax.lax.rsqrt(lp["var"] + EPS_BN)            # (1, H)
        weights.append((lp["w_mlp"] * s).astype(jnp.bfloat16))
        vec_rows.append((lp["b_mlp"] - lp["mean"]) * s + lp["beta"])

    # Fold the head BatchNorm1d into fc1.
    s4 = hp["gamma"] * jax.lax.rsqrt(hp["var"] + EPS_BN)
    w1a = (hp["w1a"] * s4).astype(jnp.bfloat16)
    w1b = (hp["w1b"] * s4).astype(jnp.bfloat16)
    b1 = (hp["b1"] - hp["mean"]) * s4 + hp["beta"]

    # fc2 padded to a lane-dense 128-wide output; real logits = columns [:NUM_CLASSES].
    w2p = jnp.zeros((HIDDEN, OUT_PAD), jnp.float32).at[:, :NUM_CLASSES].set(hp["w2"])
    b2p = jnp.zeros((1, HIDDEN), jnp.float32).at[:, :NUM_CLASSES].set(hp["b2"])

    weights += [w1a, w1b, w2p.astype(jnp.bfloat16)]
    vec_rows += [b1, b2p]

    vecs = jnp.concatenate(vec_rows, axis=0).astype(jnp.float32)   # (K, 512)
    return tuple(layer_cfgs), tuple(weights), vecs


@functools.partial(jax.jit, static_argnums=(0, 1))
def net_forward(layer_cfgs, nodes_per_graph, weights, vecs, x_bf, a_cnt, inv_deg):
    num_nodes = x_bf.shape[0]
    num_graphs = num_nodes // nodes_per_graph
    kernel = functools.partial(_fused_net_kernel, layer_cfgs, nodes_per_graph)
    vmem = pl.BlockSpec(memory_space=pltpu.MemorySpace.VMEM)

    args = (x_bf, a_cnt, inv_deg, vecs) + tuple(weights)

    # Size the scoped-VMEM limit from the actual whole-resident footprint and
    # clamp it so it stays safe on v7x (64 MiB physical) as well as v5e/v6e.
    footprint = sum(int(a.size) * a.dtype.itemsize for a in args)
    footprint += num_graphs * OUT_PAD * 4
    vmem_limit = int(min(max(2 * footprint + (4 << 20), 16 << 20), 40 << 20))

    out = pl.pallas_call(
        kernel,
        out_shape=jax.ShapeDtypeStruct((num_graphs, OUT_PAD), jnp.float32),
        in_specs=[vmem] * len(args),
        out_specs=vmem,
        compiler_params=pltpu.CompilerParams(vmem_limit_bytes=vmem_limit),
    )(*args)
    return out[:, :NUM_CLASSES]


# ---------------------------------------------------------------------------
if __name__ == "__main__":
    key = jax.random.PRNGKey(0)
    k_feat, k_param = jax.random.split(key)

    nodes_per_graph, num_graphs = 8, 2
    num_nodes = nodes_per_graph * num_graphs

    # node features (data.x)
    x = jax.random.normal(k_feat, (num_nodes, NUM_NODE_FEATURES), jnp.float32)

    # edge_index: bidirectional ring inside each graph component
    src_list, dst_list = [], []
    for g in range(num_graphs):
        base = g * nodes_per_graph
        for i in range(nodes_per_graph):
            a_n, b_n = base + i, base + (i + 1) % nodes_per_graph
            src_list += [a_n, b_n]
            dst_list += [b_n, a_n]
    src = jnp.array(src_list, jnp.int32)
    dst = jnp.array(dst_list, jnp.int32)

    # glue: exact 0/1 edge-count matrix (bf16-exact small ints) and f32 1/deg
    # post-scale (keeps the scatter-mean at f32 accuracy).
    counts = jnp.zeros((num_nodes, num_nodes), jnp.float32).at[dst, src].add(1.0)
    deg = counts.sum(axis=1, keepdims=True)
    inv_deg = (1.0 / jnp.maximum(deg, 1.0)).astype(jnp.float32)      # (N, 1)

    params = init_params(k_param)
    layer_cfgs, weights, vecs = prepare_inference_params(params)

    x_pad = jnp.pad(x, ((0, 0), (0, C_PAD - NUM_NODE_FEATURES)))

    logits = net_forward(layer_cfgs, nodes_per_graph, weights, vecs,
                         x_pad.astype(jnp.bfloat16),
                         counts.astype(jnp.bfloat16), inv_deg)
    logits = jax.block_until_ready(logits)

    assert logits.shape == (num_graphs, NUM_CLASSES)
    assert bool(jnp.all(jnp.isfinite(logits)))
    print("KERNEL_OK")
</pallas_src>

<mosaic_0001>
module attributes {stable_mosaic.version = 11 : i64} {
  func.func @_fused_net_kernel(%arg0: memref<16x256xbf16, #tpu.memory_space<vmem>>, %arg1: memref<16x16xbf16, #tpu.memory_space<vmem>>, %arg2: memref<16x1xf32, #tpu.memory_space<vmem>>, %arg3: memref<6x512xf32, #tpu.memory_space<vmem>>, %arg4: memref<256x512xbf16, #tpu.memory_space<vmem>>, %arg5: memref<256x512xbf16, #tpu.memory_space<vmem>>, %arg6: memref<512x512xbf16, #tpu.memory_space<vmem>>, %arg7: memref<512x512xbf16, #tpu.memory_space<vmem>>, %arg8: memref<512x512xbf16, #tpu.memory_space<vmem>>, %arg9: memref<512x512xbf16, #tpu.memory_space<vmem>>, %arg10: memref<512x128xbf16, #tpu.memory_space<vmem>>, %arg11: memref<2x128xf32, #tpu.memory_space<vmem>>) attributes {dimension_semantics = [], scalar_prefetch = 0 : i64, scratch_operands = 0 : i64, tpu.core_type = #tpu.core_type<tc>} {
    %c0 = arith.constant 0 : index
    %c0_0 = arith.constant 0 : index
    %0 = vector.load %arg1[%c0, %c0_0] : memref<16x16xbf16, #tpu.memory_space<vmem>>, vector<16x16xbf16>
    %c0_1 = arith.constant 0 : index
    %c0_2 = arith.constant 0 : index
    %1 = vector.load %arg2[%c0_1, %c0_2] : memref<16x1xf32, #tpu.memory_space<vmem>>, vector<16x1xf32>
    %c0_3 = arith.constant 0 : index
    %c0_4 = arith.constant 0 : index
    %2 = vector.load %arg0[%c0_3, %c0_4] : memref<16x256xbf16, #tpu.memory_space<vmem>>, vector<16x256xbf16>
    %c0_5 = arith.constant 0 : index
    %c0_6 = arith.constant 0 : index
    %3 = vector.load %arg4[%c0_5, %c0_6] : memref<256x512xbf16, #tpu.memory_space<vmem>>, vector<256x512xbf16>
    %c0_7 = arith.constant 0 : index
    %c0_8 = arith.constant 0 : index
    %4 = vector.load %arg5[%c0_7, %c0_8] : memref<256x512xbf16, #tpu.memory_space<vmem>>, vector<256x512xbf16>
    %c0_9 = arith.constant 0 : index
    %c0_10 = arith.constant 0 : index
    %5 = vector.load %arg3[%c0_9, %c0_10] : memref<6x512xf32, #tpu.memory_space<vmem>>, vector<1x512xf32>
    %c1 = arith.constant 1 : index
    %c0_11 = arith.constant 0 : index
    %6 = vector.load %arg3[%c1, %c0_11] : memref<6x512xf32, #tpu.memory_space<vmem>>, vector<1x512xf32>
    %cst = arith.constant dense<0.000000e+00> : vector<16x512xf32>
    %7 = tpu.matmul %2, %3, %cst {dimension_numbers = #tpu.dot_dimension_numbers<[1], [0], [0], [1], [0, 0, 1, 1], [], []>} : vector<16x256xbf16>, vector<256x512xbf16>, vector<16x512xf32> -> vector<16x512xf32>
    %8 = vector.broadcast %5 : vector<1x512xf32> to vector<16x512xf32>
    %9 = arith.addf %7, %8 : vector<16x512xf32>
    %c0_12 = arith.constant 0 : index
    %c0_13 = arith.constant 0 : index
    %10 = vector.load %arg6[%c0_12, %c0_13] : memref<512x512xbf16, #tpu.memory_space<vmem>>, vector<512x512xbf16>
    %c2 = arith.constant 2 : index
    %c0_14 = arith.constant 0 : index
    %11 = vector.load %arg3[%c2, %c0_14] : memref<6x512xf32, #tpu.memory_space<vmem>>, vector<1x512xf32>
    %cst_15 = arith.constant 0.000000e+00 : f32
    %12 = vector.broadcast %cst_15 : f32 to vector<16x512xf32>
    %13 = arith.maximumf %9, %12 : vector<16x512xf32>
    %cst_16 = arith.constant 1.000000e-07 : f32
    %14 = vector.broadcast %cst_16 : f32 to vector<16x512xf32>
    %15 = arith.addf %13, %14 : vector<16x512xf32>
    %cst_17 = arith.constant 1.000000e-07 : f32
    %cst_18 = arith.constant 1.000000e+04 : f32
    %16 = vector.broadcast %cst_17 : f32 to vector<16x512xf32>
    %17 = arith.maximumf %16, %15 : vector<16x512xf32>
    %18 = vector.broadcast %cst_18 : f32 to vector<16x512xf32>
    %19 = arith.minimumf %18, %17 : vector<16x512xf32>
    %20 = arith.truncf %19 : vector<16x512xf32> to vector<16x512xbf16>
    %cst_19 = arith.constant dense<0.000000e+00> : vector<16x512xf32>
    %21 = tpu.matmul %0, %20, %cst_19 {dimension_numbers = #tpu.dot_dimension_numbers<[1], [0], [0], [1], [0, 0, 1, 1], [], []>} : vector<16x16xbf16>, vector<16x512xbf16>, vector<16x512xf32> -> vector<16x512xf32>
    %22 = vector.broadcast %1 : vector<16x1xf32> to vector<16x512xf32>
    %23 = arith.mulf %21, %22 : vector<16x512xf32>
    %cst_20 = arith.constant 1.000000e-07 : f32
    %cst_21 = arith.constant 1.000000e+04 : f32
    %24 = vector.broadcast %cst_20 : f32 to vector<16x512xf32>
    %25 = arith.maximumf %24, %23 : vector<16x512xf32>
    %26 = vector.broadcast %cst_21 : f32 to vector<16x512xf32>
    %27 = arith.minimumf %26, %25 : vector<16x512xf32>
    %28 = arith.mulf %27, %27 : vector<16x512xf32>
    %cst_22 = arith.constant dense<0.000000e+00> : vector<16xf32>
    %29 = vector.multi_reduction <add>, %28, %cst_22 [1] : vector<16x512xf32> to vector<16xf32>
    %30 = vector.shape_cast %29 : vector<16xf32> to vector<16x1xf32>
    %cst_23 = arith.constant 1.000000e-24 : f32
    %31 = vector.broadcast %cst_23 : f32 to vector<16x1xf32>
    %32 = arith.maximumf %30, %31 : vector<16x1xf32>
    %33 = math.rsqrt %32 : vector<16x1xf32>
    %34 = arith.extf %2 : vector<16x256xbf16> to vector<16x256xf32>
    %35 = arith.mulf %34, %34 : vector<16x256xf32>
    %cst_24 = arith.constant dense<0.000000e+00> : vector<16xf32>
    %36 = vector.multi_reduction <add>, %35, %cst_24 [1] : vector<16x256xf32> to vector<16xf32>
    %37 = vector.shape_cast %36 : vector<16xf32> to vector<16x1xf32>
    %38 = math.sqrt %37 : vector<16x1xf32>
    %39 = arith.mulf %33, %38 : vector<16x1xf32>
    %cst_25 = arith.constant 1.000000e+00 : f32
    %40 = vector.broadcast %cst_25 : f32 to vector<16x1xf32>
    %41 = arith.mulf %39, %40 : vector<16x1xf32>
    %42 = vector.broadcast %41 : vector<16x1xf32> to vector<16x512xf32>
    %43 = arith.mulf %27, %42 : vector<16x512xf32>
    %cst_26 = arith.constant dense<0.000000e+00> : vector<16x512xf32>
    %44 = tpu.matmul %2, %4, %cst_26 {dimension_numbers = #tpu.dot_dimension_numbers<[1], [0], [0], [1], [0, 0, 1, 1], [], []>} : vector<16x256xbf16>, vector<256x512xbf16>, vector<16x512xf32> -> vector<16x512xf32>
    %45 = vector.broadcast %6 : vector<1x512xf32> to vector<16x512xf32>
    %46 = arith.addf %44, %45 : vector<16x512xf32>
    %47 = arith.addf %43, %46 : vector<16x512xf32>
    %48 = arith.truncf %47 : vector<16x512xf32> to vector<16x512xbf16>
    %cst_27 = arith.constant dense<0.000000e+00> : vector<16x512xf32>
    %49 = tpu.matmul %48, %10, %cst_27 {dimension_numbers = #tpu.dot_dimension_numbers<[1], [0], [0], [1], [0, 0, 1, 1], [], []>} : vector<16x512xbf16>, vector<512x512xbf16>, vector<16x512xf32> -> vector<16x512xf32>
    %50 = vector.broadcast %11 : vector<1x512xf32> to vector<16x512xf32>
    %51 = arith.addf %49, %50 : vector<16x512xf32>
    %cst_28 = arith.constant 0.000000e+00 : f32
    %52 = vector.broadcast %cst_28 : f32 to vector<16x512xf32>
    %53 = arith.maximumf %51, %52 : vector<16x512xf32>
    %c0_29 = arith.constant 0 : index
    %c0_30 = arith.constant 0 : index
    %54 = vector.load %arg7[%c0_29, %c0_30] : memref<512x512xbf16, #tpu.memory_space<vmem>>, vector<512x512xbf16>
    %c3 = arith.constant 3 : index
    %c0_31 = arith.constant 0 : index
    %55 = vector.load %arg3[%c3, %c0_31] : memref<6x512xf32, #tpu.memory_space<vmem>>, vector<1x512xf32>
    %cst_32 = arith.constant 0.000000e+00 : f32
    %56 = vector.broadcast %cst_32 : f32 to vector<16x512xf32>
    %57 = arith.maximumf %53, %56 : vector<16x512xf32>
    %cst_33 = arith.constant 1.000000e-07 : f32
    %58 = vector.broadcast %cst_33 : f32 to vector<16x512xf32>
    %59 = arith.addf %57, %58 : vector<16x512xf32>
    %cst_34 = arith.constant 1.000000e-07 : f32
    %cst_35 = arith.constant 1.000000e+04 : f32
    %60 = vector.broadcast %cst_34 : f32 to vector<16x512xf32>
    %61 = arith.maximumf %60, %59 : vector<16x512xf32>
    %62 = vector.broadcast %cst_35 : f32 to vector<16x512xf32>
    %63 = arith.minimumf %62, %61 : vector<16x512xf32>
    %64 = arith.truncf %63 : vector<16x512xf32> to vector<16x512xbf16>
    %cst_36 = arith.constant dense<0.000000e+00> : vector<16x512xf32>
    %65 = tpu.matmul %0, %64, %cst_36 {dimension_numbers = #tpu.dot_dimension_numbers<[1], [0], [0], [1], [0, 0, 1, 1], [], []>} : vector<16x16xbf16>, vector<16x512xbf16>, vector<16x512xf32> -> vector<16x512xf32>
    %66 = vector.broadcast %1 : vector<16x1xf32> to vector<16x512xf32>
    %67 = arith.mulf %65, %66 : vector<16x512xf32>
    %cst_37 = arith.constant 1.000000e-07 : f32
    %cst_38 = arith.constant 1.000000e+04 : f32
    %68 = vector.broadcast %cst_37 : f32 to vector<16x512xf32>
    %69 = arith.maximumf %68, %67 : vector<16x512xf32>
    %70 = vector.broadcast %cst_38 : f32 to vector<16x512xf32>
    %71 = arith.minimumf %70, %69 : vector<16x512xf32>
    %72 = arith.mulf %71, %71 : vector<16x512xf32>
    %cst_39 = arith.constant dense<0.000000e+00> : vector<16xf32>
    %73 = vector.multi_reduction <add>, %72, %cst_39 [1] : vector<16x512xf32> to vector<16xf32>
    %74 = vector.shape_cast %73 : vector<16xf32> to vector<16x1xf32>
    %cst_40 = arith.constant 1.000000e-24 : f32
    %75 = vector.broadcast %cst_40 : f32 to vector<16x1xf32>
    %76 = arith.maximumf %74, %75 : vector<16x1xf32>
    %77 = math.rsqrt %76 : vector<16x1xf32>
    %78 = arith.mulf %53, %53 : vector<16x512xf32>
    %cst_41 = arith.constant dense<0.000000e+00> : vector<16xf32>
    %79 = vector.multi_reduction <add>, %78, %cst_41 [1] : vector<16x512xf32> to vector<16xf32>
    %80 = vector.shape_cast %79 : vector<16xf32> to vector<16x1xf32>
    %81 = math.sqrt %80 : vector<16x1xf32>
    %82 = arith.mulf %77, %81 : vector<16x1xf32>
    %cst_42 = arith.constant 1.000000e+00 : f32
    %83 = vector.broadcast %cst_42 : f32 to vector<16x1xf32>
    %84 = arith.mulf %82, %83 : vector<16x1xf32>
    %85 = vector.broadcast %84 : vector<16x1xf32> to vector<16x512xf32>
    %86 = arith.mulf %71, %85 : vector<16x512xf32>
    %87 = arith.addf %86, %53 : vector<16x512xf32>
    %88 = arith.truncf %87 : vector<16x512xf32> to vector<16x512xbf16>
    %cst_43 = arith.constant dense<0.000000e+00> : vector<16x512xf32>
    %89 = tpu.matmul %88, %54, %cst_43 {dimension_numbers = #tpu.dot_dimension_numbers<[1], [0], [0], [1], [0, 0, 1, 1], [], []>} : vector<16x512xbf16>, vector<512x512xbf16>, vector<16x512xf32> -> vector<16x512xf32>
    %90 = vector.broadcast %55 : vector<1x512xf32> to vector<16x512xf32>
    %91 = arith.addf %89, %90 : vector<16x512xf32>
    %cst_44 = arith.constant 0.000000e+00 : f32
    %92 = vector.broadcast %cst_44 : f32 to vector<16x512xf32>
    %93 = arith.maximumf %91, %92 : vector<16x512xf32>
    %94 = arith.maximumf %53, %93 : vector<16x512xf32>
    %95 = vector.shape_cast %94 : vector<16x512xf32> to vector<2x8x512xf32>
    %cst_45 = arith.constant dense<0xFF800000> : vector<2x512xf32>
    %96 = vector.multi_reduction <maximumf>, %95, %cst_45 [1] : vector<2x8x512xf32> to vector<2x512xf32>
    %cst_46 = arith.constant dense<0.000000e+00> : vector<2x512xf32>
    %97 = vector.multi_reduction <add>, %95, %cst_46 [1] : vector<2x8x512xf32> to vector<2x512xf32>
    %cst_47 = arith.constant 1.250000e-01 : f32
    %98 = vector.broadcast %cst_47 : f32 to vector<2x512xf32>
    %99 = arith.mulf %97, %98 : vector<2x512xf32>
    %c0_48 = arith.constant 0 : index
    %c0_49 = arith.constant 0 : index
    %100 = vector.load %arg8[%c0_48, %c0_49] : memref<512x512xbf16, #tpu.memory_space<vmem>>, vector<512x512xbf16>
    %c0_50 = arith.constant 0 : index
    %c0_51 = arith.constant 0 : index
    %101 = vector.load %arg9[%c0_50, %c0_51] : memref<512x512xbf16, #tpu.memory_space<vmem>>, vector<512x512xbf16>
    %c0_52 = arith.constant 0 : index
    %c0_53 = arith.constant 0 : index
    %102 = vector.load %arg10[%c0_52, %c0_53] : memref<512x128xbf16, #tpu.memory_space<vmem>>, vector<512x128xbf16>
    %c4 = arith.constant 4 : index
    %c0_54 = arith.constant 0 : index
    %103 = vector.load %arg3[%c4, %c0_54] : memref<6x512xf32, #tpu.memory_space<vmem>>, vector<1x512xf32>
    %c5 = arith.constant 5 : index
    %c0_55 = arith.constant 0 : index
    %104 = vector.load %arg3[%c5, %c0_55] : memref<6x512xf32, #tpu.memory_space<vmem>>, vector<1x128xf32>
    %105 = arith.truncf %96 : vector<2x512xf32> to vector<2x512xbf16>
    %cst_56 = arith.constant dense<0.000000e+00> : vector<2x512xf32>
    %106 = tpu.matmul %105, %100, %cst_56 {dimension_numbers = #tpu.dot_dimension_numbers<[1], [0], [0], [1], [0, 0, 1, 1], [], []>} : vector<2x512xbf16>, vector<512x512xbf16>, vector<2x512xf32> -> vector<2x512xf32>
    %107 = arith.truncf %99 : vector<2x512xf32> to vector<2x512xbf16>
    %cst_57 = arith.constant dense<0.000000e+00> : vector<2x512xf32>
    %108 = tpu.matmul %107, %101, %cst_57 {dimension_numbers = #tpu.dot_dimension_numbers<[1], [0], [0], [1], [0, 0, 1, 1], [], []>} : vector<2x512xbf16>, vector<512x512xbf16>, vector<2x512xf32> -> vector<2x512xf32>
    %109 = arith.addf %106, %108 : vector<2x512xf32>
    %110 = vector.broadcast %103 : vector<1x512xf32> to vector<2x512xf32>
    %111 = arith.addf %109, %110 : vector<2x512xf32>
    %cst_58 = arith.constant 0.000000e+00 : f32
    %112 = vector.broadcast %cst_58 : f32 to vector<2x512xf32>
    %113 = arith.maximumf %111, %112 : vector<2x512xf32>
    %114 = arith.truncf %113 : vector<2x512xf32> to vector<2x512xbf16>
    %cst_59 = arith.constant dense<0.000000e+00> : vector<2x128xf32>
    %115 = tpu.matmul %114, %102, %cst_59 {dimension_numbers = #tpu.dot_dimension_numbers<[1], [0], [0], [1], [0, 0, 1, 1], [], []>} : vector<2x512xbf16>, vector<512x128xbf16>, vector<2x128xf32> -> vector<2x128xf32>
    %116 = vector.broadcast %104 : vector<1x128xf32> to vector<2x128xf32>
    %117 = arith.addf %115, %116 : vector<2x128xf32>
    %c0_60 = arith.constant 0 : index
    %c0_61 = arith.constant 0 : index
    %118 = vector.load %arg11[%c0_60, %c0_61] : memref<2x128xf32, #tpu.memory_space<vmem>>, vector<2x128xf32>
    tpu.vector_store %arg11[%c0_60, %c0_61], %117 {strides = array<i32>} : memref<2x128xf32, #tpu.memory_space<vmem>>, vector<2x128xf32>,
    return
  }
}

</mosaic_0001>

<llo_original>
// kernel: net_forward.1
$region0: #{net_forward.1}
  #allocation0 [shape = 'u32[]', space=smem, size = 0x4, offset = 0x4, fixed_abs, tag = 'smem constant byte address 0x4 - core index']
  #allocation1 [shape = 'u32[144,128]{1,0:T(1,128)}', space=vmem, size = 0x12000, scoped, tag = 'internal scratch']
  %s0 = inlined_call_operand.hbm [shape: bf16[16,256], index: 0, kind: input, shape index: {}]
  %s1 = inlined_call_operand.vmem [shape: bf16[16,16], index: 1, kind: input, shape index: {}]
  %s2 = inlined_call_operand.vmem [shape: f32[16,1], index: 2, kind: input, shape index: {}]
  %s3 = inlined_call_operand.vmem [shape: f32[6,512], index: 3, kind: input, shape index: {}]
  %s4 = inlined_call_operand.hbm [shape: bf16[256,512], index: 4, kind: input, shape index: {}]
  %s5 = inlined_call_operand.hbm [shape: bf16[256,512], index: 5, kind: input, shape index: {}]
  %s6 = inlined_call_operand.hbm [shape: bf16[512,512], index: 6, kind: input, shape index: {}]
  %s7 = inlined_call_operand.hbm [shape: bf16[512,512], index: 7, kind: input, shape index: {}]
  %s8 = inlined_call_operand.hbm [shape: bf16[512,512], index: 8, kind: input, shape index: {}]
  %s9 = inlined_call_operand.hbm [shape: bf16[512,512], index: 9, kind: input, shape index: {}]
  %s10 = inlined_call_operand.hbm [shape: bf16[512,128], index: 10, kind: input, shape index: {}]
  %s11 = inlined_call_operand.hbm [shape: f32[2,128], index: 11, kind: output, shape index: {}]
  %s12 = sld [smem:[#allocation0]]
  $region86: #{net_forward.1} parent=0
    _
  %s14 = ssub.s32 1, %s12
  %s15 = scalar_select 0, %s14, %s12
  $region1: #{net_forward.1} parent=0
    #allocation2 [shape = 'u8[8192]{0}', space=vmem, size = 0x2000, scoped, tag = 'input window, operand 0, single buffered']
    #allocation3 [shape = 's32[1]{0}', space=sflag, size = 0x4, scoped, tag = 'scoped memory for net_forward.1']
    #allocation4 [shape = 's32[1]{0}', space=sflag, size = 0x4, scoped, tag = 'scoped memory for net_forward.1']
    #allocation5 [shape = 'u8[262144]{0}', space=vmem, size = 0x40000, scoped, tag = 'input window, operand 4, single buffered']
    #allocation6 [shape = 's32[1]{0}', space=sflag, size = 0x4, scoped, tag = 'scoped memory for net_forward.1']
    #allocation7 [shape = 'u8[262144]{0}', space=vmem, size = 0x40000, scoped, tag = 'input window, operand 5, single buffered']
    #allocation8 [shape = 'u8[524288]{0}', space=vmem, size = 0x80000, scoped, tag = 'input window, operand 6, single buffered']
    #allocation9 [shape = 's32[1]{0}', space=sflag, size = 0x4, scoped, tag = 'scoped memory for net_forward.1']
    #allocation10 [shape = 'u8[524288]{0}', space=vmem, size = 0x80000, scoped, tag = 'input window, operand 7, single buffered']
    #allocation11 [shape = 'u8[524288]{0}', space=vmem, size = 0x80000, scoped, tag = 'input window, operand 8, single buffered']
    #allocation12 [shape = 's32[1]{0}', space=sflag, size = 0x4, scoped, tag = 'scoped memory for net_forward.1']
    #allocation13 [shape = 'u8[524288]{0}', space=vmem, size = 0x80000, scoped, tag = 'input window, operand 9, single buffered']
    #allocation14 [shape = 'u8[131072]{0}', space=vmem, size = 0x20000, scoped, tag = 'input window, operand 10, single buffered']
    #allocation15 [shape = 's32[1]{0}', space=sflag, size = 0x4, scoped, tag = 'scoped memory for net_forward.1']
    #allocation16 [shape = 'u8[1024]{0}', space=vmem, size = 0x400, scoped, tag = 'output window, operand 0, single buffered']
    %16 = vsyncpa [#allocation3], 0
    %17 = vsyncpa [#allocation6], 0
    %18 = vsyncpa [#allocation9], 0
    %19 = vsyncpa [#allocation12], 0
    %20 = vsyncpa [#allocation15], 0
    %21 = vsyncpa [#allocation4], 0
    // Predicated region
    $region2: #{net_forward.1} parent=1 // pred_check
      _
    $region3: #{net_forward.1} parent=1 // pred_check_branch
      %23 = sbr.rel (0) target = $region5
    $region4: #{net_forward.1} parent=1 // pred_region
      %s25 = ssub.s32 256, 256
      %26 = vsyncadd [#allocation3], %s25
      %s27 = sshll.u32 [#allocation2], 4
      %s28 = int_to_ptr.vmem [resolvable:$true] %s27
      %33 = dma.hbm_to_vmem [thread:$0]  %s0, 256, %s28, [#allocation3], 128, 128, 8
    $region5: #{net_forward.1} parent=1 // pred_fallthru
      _
    // Predicated region
    $region6: #{net_forward.1} parent=1 // pred_check
      _
    $region7: #{net_forward.1} parent=1 // pred_check_branch
      %35 = sbr.rel (0) target = $region9
    $region8: #{net_forward.1} parent=1 // pred_region
      _
    $region9: #{net_forward.1} parent=1 // pred_fallthru
      _
    // Predicated region
    $region10: #{net_forward.1} parent=1 // pred_check
      _
    $region11: #{net_forward.1} parent=1 // pred_check_branch
      %37 = sbr.rel (0) target = $region13
    $region12: #{net_forward.1} parent=1 // pred_region
      _
    $region13: #{net_forward.1} parent=1 // pred_fallthru
      _
    // Predicated region
    $region14: #{net_forward.1} parent=1 // pred_check
      _
    $region15: #{net_forward.1} parent=1 // pred_check_branch
      %39 = sbr.rel (0) target = $region17
    $region16: #{net_forward.1} parent=1 // pred_region
      _
    $region17: #{net_forward.1} parent=1 // pred_fallthru
      _
    // Predicated region
    $region18: #{net_forward.1} parent=1 // pred_check
      _
    $region19: #{net_forward.1} parent=1 // pred_check_branch
      %41 = sbr.rel (0) target = $region21
    $region20: #{net_forward.1} parent=1 // pred_region
      %s43 = ssub.s32 8192, 8192
      %44 = vsyncadd [#allocation6], %s43
      %s45 = sshll.u32 [#allocation5], 4
      %s46 = int_to_ptr.vmem [resolvable:$true] %s45
      %51 = dma.hbm_to_vmem [thread:$0]  %s4, 8192, %s46, [#allocation6], 256, 256, 16
    $region21: #{net_forward.1} parent=1 // pred_fallthru
      _
    // Predicated region
    $region22: #{net_forward.1} parent=1 // pred_check
      _
    $region23: #{net_forward.1} parent=1 // pred_check_branch
      %53 = sbr.rel (0) target = $region25
    $region24: #{net_forward.1} parent=1 // pred_region
      %s55 = ssub.s32 8192, 8192
      %56 = vsyncadd [#allocation6], %s55
      %s57 = sshll.u32 [#allocation7], 4
      %s58 = int_to_ptr.vmem [resolvable:$true] %s57
      %63 = dma.hbm_to_vmem [thread:$0]  %s5, 8192, %s58, [#allocation6], 256, 256, 16
    $region25: #{net_forward.1} parent=1 // pred_fallthru
      _
    // Predicated region
    $region26: #{net_forward.1} parent=1 // pred_check
      _
    $region27: #{net_forward.1} parent=1 // pred_check_branch
      %65 = sbr.rel (0) target = $region29
    $region28: #{net_forward.1} parent=1 // pred_region
      %s67 = ssub.s32 16384, 16384
      %68 = vsyncadd [#allocation9], %s67
      %s69 = sshll.u32 [#allocation8], 4
      %s70 = int_to_ptr.vmem [resolvable:$true] %s69
      %75 = dma.hbm_to_vmem [thread:$0]  %s6, 16384, %s70, [#allocation9], 256, 256, 16
    $region29: #{net_forward.1} parent=1 // pred_fallthru
      _
    // Predicated region
    $region30: #{net_forward.1} parent=1 // pred_check
      _
    $region31: #{net_forward.1} parent=1 // pred_check_branch
      %77 = sbr.rel (0) target = $region33
    $region32: #{net_forward.1} parent=1 // pred_region
      %s79 = ssub.s32 16384, 16384
      %80 = vsyncadd [#allocation9], %s79
      %s81 = sshll.u32 [#allocation10], 4
      %s82 = int_to_ptr.vmem [resolvable:$true] %s81
      %87 = dma.hbm_to_vmem [thread:$0]  %s7, 16384, %s82, [#allocation9], 256, 256, 16
    $region33: #{net_forward.1} parent=1 // pred_fallthru
      _
    // Predicated region
    $region34: #{net_forward.1} parent=1 // pred_check
      _
    $region35: #{net_forward.1} parent=1 // pred_check_branch
      %89 = sbr.rel (0) target = $region37
    $region36: #{net_forward.1} parent=1 // pred_region
      %s91 = ssub.s32 16384, 16384
      %92 = vsyncadd [#allocation12], %s91
      %s93 = sshll.u32 [#allocation11], 4
      %s94 = int_to_ptr.vmem [resolvable:$true] %s93
      %99 = dma.hbm_to_vmem [thread:$0]  %s8, 16384, %s94, [#allocation12], 256, 256, 16
    $region37: #{net_forward.1} parent=1 // pred_fallthru
      _
    // Predicated region
    $region38: #{net_forward.1} parent=1 // pred_check
      _
    $region39: #{net_forward.1} parent=1 // pred_check_branch
      %101 = sbr.rel (0) target = $region41
    $region40: #{net_forward.1} parent=1 // pred_region
      %s103 = ssub.s32 16384, 16384
      %104 = vsyncadd [#allocation12], %s103
      %s105 = sshll.u32 [#allocation13], 4
      %s106 = int_to_ptr.vmem [resolvable:$true] %s105
      %111 = dma.hbm_to_vmem [thread:$0]  %s9, 16384, %s106, [#allocation12], 256, 256, 16
    $region41: #{net_forward.1} parent=1 // pred_fallthru
      _
    // Predicated region
    $region42: #{net_forward.1} parent=1 // pred_check
      _
    $region43: #{net_forward.1} parent=1 // pred_check_branch
      %113 = sbr.rel (0) target = $region45
    $region44: #{net_forward.1} parent=1 // pred_region
      %s115 = ssub.s32 4096, 4096
      %116 = vsyncadd [#allocation15], %s115
      %s117 = sshll.u32 [#allocation14], 4
      %s118 = int_to_ptr.vmem [resolvable:$true] %s117
      %123 = dma.hbm_to_vmem [thread:$0]  %s10, 4096, %s118, [#allocation15], 64, 64, 4
    $region45: #{net_forward.1} parent=1 // pred_fallthru
      _
    // Predicated region
    $region46: #{net_forward.1} parent=1 // pred_check
      _
    $region47: #{net_forward.1} parent=1 // pred_check_branch
      %125 = sbr.rel (0) target = $region49
    $region48: #{net_forward.1} parent=1 // pred_region
      %126 = dma.done [#allocation3], 256
    $region49: #{net_forward.1} parent=1 // pred_fallthru
      _
    // Predicated region
    $region50: #{net_forward.1} parent=1 // pred_check
      _
    $region51: #{net_forward.1} parent=1 // pred_check_branch
      %128 = sbr.rel (0) target = $region53
    $region52: #{net_forward.1} parent=1 // pred_region
      %129 = dma.done [#allocation6], 8192
    $region53: #{net_forward.1} parent=1 // pred_fallthru
      _
    // Predicated region
    $region54: #{net_forward.1} parent=1 // pred_check
      _
    $region55: #{net_forward.1} parent=1 // pred_check_branch
      %131 = sbr.rel (0) target = $region57
    $region56: #{net_forward.1} parent=1 // pred_region
      %132 = dma.done [#allocation6], 8192
    $region57: #{net_forward.1} parent=1 // pred_fallthru
      _
    // Predicated region
    $region58: #{net_forward.1} parent=1 // pred_check
      _
    $region59: #{net_forward.1} parent=1 // pred_check_branch
      %134 = sbr.rel (0) target = $region61
    $region60: #{net_forward.1} parent=1 // pred_region
      %135 = dma.done [#allocation9], 16384
    $region61: #{net_forward.1} parent=1 // pred_fallthru
      _
    // Predicated region
    $region62: #{net_forward.1} parent=1 // pred_check
      _
    $region63: #{net_forward.1} parent=1 // pred_check_branch
      %137 = sbr.rel (0) target = $region65
    $region64: #{net_forward.1} parent=1 // pred_region
      %138 = dma.done [#allocation9], 16384
    $region65: #{net_forward.1} parent=1 // pred_fallthru
      _
    // Predicated region
    $region66: #{net_forward.1} parent=1 // pred_check
      _
    $region67: #{net_forward.1} parent=1 // pred_check_branch
      %140 = sbr.rel (0) target = $region69
    $region68: #{net_forward.1} parent=1 // pred_region
      %141 = dma.done [#allocation12], 16384
    $region69: #{net_forward.1} parent=1 // pred_fallthru
      _
    // Predicated region
    $region70: #{net_forward.1} parent=1 // pred_check
      _
    $region71: #{net_forward.1} parent=1 // pred_check_branch
      %143 = sbr.rel (0) target = $region73
    $region72: #{net_forward.1} parent=1 // pred_region
      %144 = dma.done [#allocation12], 16384
    $region73: #{net_forward.1} parent=1 // pred_fallthru
      _
    // Predicated region
    $region74: #{net_forward.1} parent=1 // pred_check
      _
    $region75: #{net_forward.1} parent=1 // pred_check_branch
      %146 = sbr.rel (0) target = $region77
    $region76: #{net_forward.1} parent=1 // pred_region
      %147 = dma.done [#allocation15], 4096
    $region77: #{net_forward.1} parent=1 // pred_fallthru
      _
    %v149 = vld [vmem:[%s1] sm:$0xf]
    %v150 = vld [vmem:[%s1 + $0x4] sm:$0xf]
    %v151 = vld [vmem:[%s2] sm:$0xff]
    %v152 = vld [vmem:[%s2 + $0x8] sm:$0xff]
    %v153 = vld [vmem:[#allocation2] sm:$0xff]
    %v154 = vld [vmem:[#allocation2 + $0x8] sm:$0xff]
    %v155 = vld [vmem:[#allocation5] sm:$0xff]
    %v156 = vld [vmem:[#allocation5 + $0x8] sm:$0xff]
    %v157 = vld [vmem:[#allocation5 + $0x10] sm:$0xff]
    %v158 = vld [vmem:[#allocation5 + $0x18] sm:$0xff]
    %v159 = vld [vmem:[#allocation5 + $0x20] sm:$0xff]
    %v160 = vld [vmem:[#allocation5 + $0x28] sm:$0xff]
    %v161 = vld [vmem:[#allocation5 + $0x30] sm:$0xff]
    %v162 = vld [vmem:[#allocation5 + $0x38] sm:$0xff]
    %v163 = vld [vmem:[#allocation5 + $0x40] sm:$0xff]
    %v164 = vld [vmem:[#allocation5 + $0x48] sm:$0xff]
    %v165 = vld [vmem:[#allocation5 + $0x50] sm:$0xff]
    %v166 = vld [vmem:[#allocation5 + $0x58] sm:$0xff]
    %v167 = vld [vmem:[#allocation5 + $0x60] sm:$0xff]
    %v168 = vld [vmem:[#allocation5 + $0x68] sm:$0xff]
    %v169 = vld [vmem:[#allocation5 + $0x70] sm:$0xff]
    %v170 = vld [vmem:[#allocation5 + $0x78] sm:$0xff]
    %v171 = vld [vmem:[#allocation5 + $0x80] sm:$0xff]
    %v172 = vld [vmem:[#allocation5 + $0x88] sm:$0xff]
    %v173 = vld [vmem:[#allocation5 + $0x90] sm:$0xff]
    %v174 = vld [vmem:[#allocation5 + $0x98] sm:$0xff]
    %v175 = vld [vmem:[#allocation5 + $0xa0] sm:$0xff]
    %v176 = vld [vmem:[#allocation5 + $0xa8] sm:$0xff]
    %v177 = vld [vmem:[#allocation5 + $0xb0] sm:$0xff]
    %v178 = vld [vmem:[#allocation5 + $0xb8] sm:$0xff]
    %v179 = vld [vmem:[#allocation5 + $0xc0] sm:$0xff]
    %v180 = vld [vmem:[#allocation5 + $0xc8] sm:$0xff]
    %v181 = vld [vmem:[#allocation5 + $0xd0] sm:$0xff]
    %v182 = vld [vmem:[#allocation5 + $0xd8] sm:$0xff]
    %v183 = vld [vmem:[#allocation5 + $0xe0] sm:$0xff]
    %v184 = vld [vmem:[#allocation5 + $0xe8] sm:$0xff]
    %v185 = vld [vmem:[#allocation5 + $0xf0] sm:$0xff]
    %v186 = vld [vmem:[#allocation5 + $0xf8] sm:$0xff]
    %v187 = vld [vmem:[#allocation5 + $0x100] sm:$0xff]
    %v188 = vld [vmem:[#allocation5 + $0x108] sm:$0xff]
    %v189 = vld [vmem:[#allocation5 + $0x110] sm:$0xff]
    %v190 = vld [vmem:[#allocation5 + $0x118] sm:$0xff]
    %v191 = vld [vmem:[#allocation5 + $0x120] sm:$0xff]
    %v192 = vld [vmem:[#allocation5 + $0x128] sm:$0xff]
    %v193 = vld [vmem:[#allocation5 + $0x130] sm:$0xff]
    %v194 = vld [vmem:[#allocation5 + $0x138] sm:$0xff]
    %v195 = vld [vmem:[#allocation5 + $0x140] sm:$0xff]
    %v196 = vld [vmem:[#allocation5 + $0x148] sm:$0xff]
    %v197 = vld [vmem:[#allocation5 + $0x150] sm:$0xff]
    %v198 = vld [vmem:[#allocation5 + $0x158] sm:$0xff]
    %v199 = vld [vmem:[#allocation5 + $0x160] sm:$0xff]
    %v200 = vld [vmem:[#allocation5 + $0x168] sm:$0xff]
    %v201 = vld [vmem:[#allocation5 + $0x170] sm:$0xff]
    %v202 = vld [vmem:[#allocation5 + $0x178] sm:$0xff]
    %v203 = vld [vmem:[#allocation5 + $0x180] sm:$0xff]
    %v204 = vld [vmem:[#allocation5 + $0x188] sm:$0xff]
    %v205 = vld [vmem:[#allocation5 + $0x190] sm:$0xff]
    %v206 = vld [vmem:[#allocation5 + $0x198] sm:$0xff]
    %v207 = vld [vmem:[#allocation5 + $0x1a0] sm:$0xff]
    %v208 = vld [vmem:[#allocation5 + $0x1a8] sm:$0xff]
    %v209 = vld [vmem:[#allocation5 + $0x1b0] sm:$0xff]
    %v210 = vld [vmem:[#allocation5 + $0x1b8] sm:$0xff]
    %v211 = vld [vmem:[#allocation5 + $0x1c0] sm:$0xff]
    %v212 = vld [vmem:[#allocation5 + $0x1c8] sm:$0xff]
    %v213 = vld [vmem:[#allocation5 + $0x1d0] sm:$0xff]
    %v214 = vld [vmem:[#allocation5 + $0x1d8] sm:$0xff]
    %v215 = vld [vmem:[#allocation5 + $0x1e0] sm:$0xff]
    %v216 = vld [vmem:[#allocation5 + $0x1e8] sm:$0xff]
    %v217 = vld [vmem:[#allocation5 + $0x1f0] sm:$0xff]
    %v218 = vld [vmem:[#allocation5 + $0x1f8] sm:$0xff]
    %v219 = vld [vmem:[#allocation7] sm:$0xff]
    %v220 = vld [vmem:[#allocation7 + $0x8] sm:$0xff]
    %v221 = vld [vmem:[#allocation7 + $0x10] sm:$0xff]
    %v222 = vld [vmem:[#allocation7 + $0x18] sm:$0xff]
    %v223 = vld [vmem:[#allocation7 + $0x20] sm:$0xff]
    %v224 = vld [vmem:[#allocation7 + $0x28] sm:$0xff]
    %v225 = vld [vmem:[#allocation7 + $0x30] sm:$0xff]
    %v226 = vld [vmem:[#allocation7 + $0x38] sm:$0xff]
    %v227 = vld [vmem:[#allocation7 + $0x40] sm:$0xff]
    %v228 = vld [vmem:[#allocation7 + $0x48] sm:$0xff]
    %v229 = vld [vmem:[#allocation7 + $0x50] sm:$0xff]
    %v230 = vld [vmem:[#allocation7 + $0x58] sm:$0xff]
    %v231 = vld [vmem:[#allocation7 + $0x60] sm:$0xff]
    %v232 = vld [vmem:[#allocation7 + $0x68] sm:$0xff]
    %v233 = vld [vmem:[#allocation7 + $0x70] sm:$0xff]
    %v234 = vld [vmem:[#allocation7 + $0x78] sm:$0xff]
    %v235 = vld [vmem:[#allocation7 + $0x80] sm:$0xff]
    %v236 = vld [vmem:[#allocation7 + $0x88] sm:$0xff]
    %v237 = vld [vmem:[#allocation7 + $0x90] sm:$0xff]
    %v238 = vld [vmem:[#allocation7 + $0x98] sm:$0xff]
    %v239 = vld [vmem:[#allocation7 + $0xa0] sm:$0xff]
    %v240 = vld [vmem:[#allocation7 + $0xa8] sm:$0xff]
    %v241 = vld [vmem:[#allocation7 + $0xb0] sm:$0xff]
    %v242 = vld [vmem:[#allocation7 + $0xb8] sm:$0xff]
    %v243 = vld [vmem:[#allocation7 + $0xc0] sm:$0xff]
    %v244 = vld [vmem:[#allocation7 + $0xc8] sm:$0xff]
    %v245 = vld [vmem:[#allocation7 + $0xd0] sm:$0xff]
    %v246 = vld [vmem:[#allocation7 + $0xd8] sm:$0xff]
    %v247 = vld [vmem:[#allocation7 + $0xe0] sm:$0xff]
    %v248 = vld [vmem:[#allocation7 + $0xe8] sm:$0xff]
    %v249 = vld [vmem:[#allocation7 + $0xf0] sm:$0xff]
    %v250 = vld [vmem:[#allocation7 + $0xf8] sm:$0xff]
    %v251 = vld [vmem:[#allocation7 + $0x100] sm:$0xff]
    %v252 = vld [vmem:[#allocation7 + $0x108] sm:$0xff]
    %v253 = vld [vmem:[#allocation7 + $0x110] sm:$0xff]
    %v254 = vld [vmem:[#allocation7 + $0x118] sm:$0xff]
    %v255 = vld [vmem:[#allocation7 + $0x120] sm:$0xff]
    %v256 = vld [vmem:[#allocation7 + $0x128] sm:$0xff]
    %v257 = vld [vmem:[#allocation7 + $0x130] sm:$0xff]
    %v258 = vld [vmem:[#allocation7 + $0x138] sm:$0xff]
    %v259 = vld [vmem:[#allocation7 + $0x140] sm:$0xff]
    %v260 = vld [vmem:[#allocation7 + $0x148] sm:$0xff]
    %v261 = vld [vmem:[#allocation7 + $0x150] sm:$0xff]
    %v262 = vld [vmem:[#allocation7 + $0x158] sm:$0xff]
    %v263 = vld [vmem:[#allocation7 + $0x160] sm:$0xff]
    %v264 = vld [vmem:[#allocation7 + $0x168] sm:$0xff]
    %v265 = vld [vmem:[#allocation7 + $0x170] sm:$0xff]
    %v266 = vld [vmem:[#allocation7 + $0x178] sm:$0xff]
    %v267 = vld [vmem:[#allocation7 + $0x180] sm:$0xff]
    %v268 = vld [vmem:[#allocation7 + $0x188] sm:$0xff]
    %v269 = vld [vmem:[#allocation7 + $0x190] sm:$0xff]
    %v270 = vld [vmem:[#allocation7 + $0x198] sm:$0xff]
    %v271 = vld [vmem:[#allocation7 + $0x1a0] sm:$0xff]
    %v272 = vld [vmem:[#allocation7 + $0x1a8] sm:$0xff]
    %v273 = vld [vmem:[#allocation7 + $0x1b0] sm:$0xff]
    %v274 = vld [vmem:[#allocation7 + $0x1b8] sm:$0xff]
    %v275 = vld [vmem:[#allocation7 + $0x1c0] sm:$0xff]
    %v276 = vld [vmem:[#allocation7 + $0x1c8] sm:$0xff]
    %v277 = vld [vmem:[#allocation7 + $0x1d0] sm:$0xff]
    %v278 = vld [vmem:[#allocation7 + $0x1d8] sm:$0xff]
    %v279 = vld [vmem:[#allocation7 + $0x1e0] sm:$0xff]
    %v280 = vld [vmem:[#allocation7 + $0x1e8] sm:$0xff]
    %v281 = vld [vmem:[#allocation7 + $0x1f0] sm:$0xff]
    %v282 = vld [vmem:[#allocation7 + $0x1f8] sm:$0xff]
    %v283 = vld [vmem:[%s3] ss:$8 sm:$0xf]
    %s284 = scalar_lea.vmem %s3, 1
    %v285 = vld [vmem:[%s284] ss:$8 sm:$0xf]
    %v287 = vlaneseq
    %v288 = vshrl.u32 %v287, 7
    %v289 = vsub.s32 0, %v288
    %v290 = vrot.slane %v283, %v289
    %v291 = vlaneseq
    %v292 = vshrl.u32 %v291, 7
    %v293 = vsub.s32 1, %v292
    %v294 = vrot.slane %v283, %v293
    %v295 = vlaneseq
    %v296 = vshrl.u32 %v295, 7
    %v297 = vsub.s32 2, %v296
    %v298 = vrot.slane %v283, %v297
    %v299 = vlaneseq
    %v300 = vshrl.u32 %v299, 7
    %v301 = vsub.s32 3, %v300
    %v302 = vrot.slane %v283, %v301
    %v309 = vunpack.c.l.b16 %v153
    %v310 = vunpack.c.h.b16 %v153
    %v311 = vunpack.c.l.b16 %v154
    %v312 = vunpack.c.h.b16 %v154
    %v313 = vpack.c.b16 %v311, %v309
    %v314 = vpack.c.b16 %v312, %v310
    %v381 = vunpack.c.l.b16 %v155
    %v382 = vunpack.c.h.b16 %v155
    %v383 = vunpack.c.l.b16 %v156
    %v384 = vunpack.c.h.b16 %v156
    %v385 = vunpack.c.l.b16 %v157
    %v386 = vunpack.c.h.b16 %v157
    %v387 = vunpack.c.l.b16 %v158
    %v388 = vunpack.c.h.b16 %v158
    %v389 = vunpack.c.l.b16 %v159
    %v390 = vunpack.c.h.b16 %v159
    %v391 = vunpack.c.l.b16 %v160
    %v392 = vunpack.c.h.b16 %v160
    %v393 = vunpack.c.l.b16 %v161
    %v394 = vunpack.c.h.b16 %v161
    %v395 = vunpack.c.l.b16 %v162
    %v396 = vunpack.c.h.b16 %v162
    %v397 = vunpack.c.l.b16 %v163
    %v398 = vunpack.c.h.b16 %v163
    %v399 = vunpack.c.l.b16 %v164
    %v400 = vunpack.c.h.b16 %v164
    %v401 = vunpack.c.l.b16 %v165
    %v402 = vunpack.c.h.b16 %v165
    %v403 = vunpack.c.l.b16 %v166
    %v404 = vunpack.c.h.b16 %v166
    %v405 = vunpack.c.l.b16 %v167
    %v406 = vunpack.c.h.b16 %v167
    %v407 = vunpack.c.l.b16 %v168
    %v408 = vunpack.c.h.b16 %v168
    %v409 = vunpack.c.l.b16 %v169
    %v410 = vunpack.c.h.b16 %v169
    %v411 = vunpack.c.l.b16 %v170
    %v412 = vunpack.c.h.b16 %v170
    %v413 = vunpack.c.l.b16 %v171
    %v414 = vunpack.c.h.b16 %v171
    %v415 = vunpack.c.l.b16 %v172
    %v416 = vunpack.c.h.b16 %v172
    %v417 = vunpack.c.l.b16 %v173
    %v418 = vunpack.c.h.b16 %v173
    %v419 = vunpack.c.l.b16 %v174
    %v420 = vunpack.c.h.b16 %v174
    %v421 = vunpack.c.l.b16 %v175
    %v422 = vunpack.c.h.b16 %v175
    %v423 = vunpack.c.l.b16 %v176
    %v424 = vunpack.c.h.b16 %v176
    %v425 = vunpack.c.l.b16 %v177
    %v426 = vunpack.c.h.b16 %v177
    %v427 = vunpack.c.l.b16 %v178
    %v428 = vunpack.c.h.b16 %v178
    %v429 = vunpack.c.l.b16 %v179
    %v430 = vunpack.c.h.b16 %v179
    %v431 = vunpack.c.l.b16 %v180
    %v432 = vunpack.c.h.b16 %v180
    %v433 = vunpack.c.l.b16 %v181
    %v434 = vunpack.c.h.b16 %v181
    %v435 = vunpack.c.l.b16 %v182
    %v436 = vunpack.c.h.b16 %v182
    %v437 = vunpack.c.l.b16 %v183
    %v438 = vunpack.c.h.b16 %v183
    %v439 = vunpack.c.l.b16 %v184
    %v440 = vunpack.c.h.b16 %v184
    %v441 = vunpack.c.l.b16 %v185
    %v442 = vunpack.c.h.b16 %v185
    %v443 = vunpack.c.l.b16 %v186
    %v444 = vunpack.c.h.b16 %v186
    %v445 = vunpack.c.l.b16 %v187
    %v446 = vunpack.c.h.b16 %v187
    %v447 = vunpack.c.l.b16 %v188
    %v448 = vunpack.c.h.b16 %v188
    %v449 = vunpack.c.l.b16 %v189
    %v450 = vunpack.c.h.b16 %v189
    %v451 = vunpack.c.l.b16 %v190
    %v452 = vunpack.c.h.b16 %v190
    %v453 = vunpack.c.l.b16 %v191
    %v454 = vunpack.c.h.b16 %v191
    %v455 = vunpack.c.l.b16 %v192
    %v456 = vunpack.c.h.b16 %v192
    %v457 = vunpack.c.l.b16 %v193
    %v458 = vunpack.c.h.b16 %v193
    %v459 = vunpack.c.l.b16 %v194
    %v460 = vunpack.c.h.b16 %v194
    %v461 = vunpack.c.l.b16 %v195
    %v462 = vunpack.c.h.b16 %v195
    %v463 = vunpack.c.l.b16 %v196
    %v464 = vunpack.c.h.b16 %v196
    %v465 = vunpack.c.l.b16 %v197
    %v466 = vunpack.c.h.b16 %v197
    %v467 = vunpack.c.l.b16 %v198
    %v468 = vunpack.c.h.b16 %v198
    %v469 = vunpack.c.l.b16 %v199
    %v470 = vunpack.c.h.b16 %v199
    %v471 = vunpack.c.l.b16 %v200
    %v472 = vunpack.c.h.b16 %v200
    %v473 = vunpack.c.l.b16 %v201
    %v474 = vunpack.c.h.b16 %v201
    %v475 = vunpack.c.l.b16 %v202
    %v476 = vunpack.c.h.b16 %v202
    %v477 = vunpack.c.l.b16 %v203
    %v478 = vunpack.c.h.b16 %v203
    %v479 = vunpack.c.l.b16 %v204
    %v480 = vunpack.c.h.b16 %v204
    %v481 = vunpack.c.l.b16 %v205
    %v482 = vunpack.c.h.b16 %v205
    %v483 = vunpack.c.l.b16 %v206
    %v484 = vunpack.c.h.b16 %v206
    %v485 = vunpack.c.l.b16 %v207
    %v486 = vunpack.c.h.b16 %v207
    %v487 = vunpack.c.l.b16 %v208
    %v488 = vunpack.c.h.b16 %v208
    %v489 = vunpack.c.l.b16 %v209
    %v490 = vunpack.c.h.b16 %v209
    %v491 = vunpack.c.l.b16 %v210
    %v492 = vunpack.c.h.b16 %v210
    %v493 = vunpack.c.l.b16 %v211
    %v494 = vunpack.c.h.b16 %v211
    %v495 = vunpack.c.l.b16 %v212
    %v496 = vunpack.c.h.b16 %v212
    %v497 = vunpack.c.l.b16 %v213
    %v498 = vunpack.c.h.b16 %v213
    %v499 = vunpack.c.l.b16 %v214
    %v500 = vunpack.c.h.b16 %v214
    %v501 = vunpack.c.l.b16 %v215
    %v502 = vunpack.c.h.b16 %v215
    %v503 = vunpack.c.l.b16 %v216
    %v504 = vunpack.c.h.b16 %v216
    %v505 = vunpack.c.l.b16 %v217
    %v506 = vunpack.c.h.b16 %v217
    %v507 = vunpack.c.l.b16 %v218
    %v508 = vunpack.c.h.b16 %v218
    %v509 = vpack.c.b16 %v385, %v381
    %v510 = vpack.c.b16 %v386, %v382
    %v511 = vpack.c.b16 %v387, %v383
    %v512 = vpack.c.b16 %v388, %v384
    %v513 = vpack.c.b16 %v393, %v389
    %v514 = vpack.c.b16 %v394, %v390
    %v515 = vpack.c.b16 %v395, %v391
    %v516 = vpack.c.b16 %v396, %v392
    %v517 = vpack.c.b16 %v401, %v397
    %v518 = vpack.c.b16 %v402, %v398
    %v519 = vpack.c.b16 %v403, %v399
    %v520 = vpack.c.b16 %v404, %v400
    %v521 = vpack.c.b16 %v409, %v405
    %v522 = vpack.c.b16 %v410, %v406
    %v523 = vpack.c.b16 %v411, %v407
    %v524 = vpack.c.b16 %v412, %v408
    %v525 = vpack.c.b16 %v417, %v413
    %v526 = vpack.c.b16 %v418, %v414
    %v527 = vpack.c.b16 %v419, %v415
    %v528 = vpack.c.b16 %v420, %v416
    %v529 = vpack.c.b16 %v425, %v421
    %v530 = vpack.c.b16 %v426, %v422
    %v531 = vpack.c.b16 %v427, %v423
    %v532 = vpack.c.b16 %v428, %v424
    %v533 = vpack.c.b16 %v433, %v429
    %v534 = vpack.c.b16 %v434, %v430
    %v535 = vpack.c.b16 %v435, %v431
    %v536 = vpack.c.b16 %v436, %v432
    %v537 = vpack.c.b16 %v441, %v437
    %v538 = vpack.c.b16 %v442, %v438
    %v539 = vpack.c.b16 %v443, %v439
    %v540 = vpack.c.b16 %v444, %v440
    %v541 = vpack.c.b16 %v449, %v445
    %v542 = vpack.c.b16 %v450, %v446
    %v543 = vpack.c.b16 %v451, %v447
    %v544 = vpack.c.b16 %v452, %v448
    %v545 = vpack.c.b16 %v457, %v453
    %v546 = vpack.c.b16 %v458, %v454
    %v547 = vpack.c.b16 %v459, %v455
    %v548 = vpack.c.b16 %v460, %v456
    %v549 = vpack.c.b16 %v465, %v461
    %v550 = vpack.c.b16 %v466, %v462
    %v551 = vpack.c.b16 %v467, %v463
    %v552 = vpack.c.b16 %v468, %v464
    %v553 = vpack.c.b16 %v473, %v469
    %v554 = vpack.c.b16 %v474, %v470
    %v555 = vpack.c.b16 %v475, %v471
    %v556 = vpack.c.b16 %v476, %v472
    %v557 = vpack.c.b16 %v481, %v477
    %v558 = vpack.c.b16 %v482, %v478
    %v559 = vpack.c.b16 %v483, %v479
    %v560 = vpack.c.b16 %v484, %v480
    %v561 = vpack.c.b16 %v489, %v485
    %v562 = vpack.c.b16 %v490, %v486
    %v563 = vpack.c.b16 %v491, %v487
    %v564 = vpack.c.b16 %v492, %v488
    %v565 = vpack.c.b16 %v497, %v493
    %v566 = vpack.c.b16 %v498, %v494
    %v567 = vpack.c.b16 %v499, %v495
    %v568 = vpack.c.b16 %v500, %v496
    %v569 = vpack.c.b16 %v505, %v501
    %v570 = vpack.c.b16 %v506, %v502
    %v571 = vpack.c.b16 %v507, %v503
    %v572 = vpack.c.b16 %v508, %v504
    %637 = vmatprep.subr.bf16.mxu0 %v510
    %638 = vmatpush1.bf16.msra.mxu0 %v509
    %639 = vmatprep.subr.bf16.mxu0 %v514
    %640 = vmatpush1.bf16.msra.mxu0 %v513
    %641 = vmatprep.subr.bf16.mxu0 %v518
    %642 = vmatpush1.bf16.msra.mxu0 %v517
    %643 = vmatprep.subr.bf16.mxu0 %v522
    %644 = vmatpush1.bf16.msra.mxu0 %v521
    %645 = vmatprep.subr.bf16.mxu0 %v526
    %646 = vmatpush1.bf16.msra.mxu0 %v525
    %647 = vmatprep.subr.bf16.mxu0 %v530
    %648 = vmatpush1.bf16.msra.mxu0 %v529
    %649 = vmatprep.subr.bf16.mxu0 %v534
    %650 = vmatpush1.bf16.msra.mxu0 %v533
    %651 = vmatprep.subr.bf16.mxu0 %v538
    %652 = vmatpush1.bf16.msra.mxu0 %v537
    %653 = vmatprep.subr.bf16.mxu0 %v542
    %654 = vmatpush1.bf16.msra.mxu0 %v541
    %655 = vmatprep.subr.bf16.mxu0 %v546
    %656 = vmatpush1.bf16.msra.mxu0 %v545
    %657 = vmatprep.subr.bf16.mxu0 %v550
    %658 = vmatpush1.bf16.msra.mxu0 %v549
    %659 = vmatprep.subr.bf16.mxu0 %v554
    %660 = vmatpush1.bf16.msra.mxu0 %v553
    %661 = vmatprep.subr.bf16.mxu0 %v558
    %662 = vmatpush1.bf16.msra.mxu0 %v557
    %663 = vmatprep.subr.bf16.mxu0 %v562
    %664 = vmatpush1.bf16.msra.mxu0 %v561
    %665 = vmatprep.subr.bf16.mxu0 %v566
    %666 = vmatpush1.bf16.msra.mxu0 %v565
    %667 = vmatprep.subr.bf16.mxu0 %v570
    %668 = vmatpush1.bf16.msra.mxu0 %v569
    %669 = vmatprep.mubr.bf16.mxu0 %v314
    %670 = vmatmul.mubr.bf16.gmra.mrb[0].mxu0 %v313
    %v671 = vpop.f32.mrb[0].mxu0
    %v672 = vadd.f32 %v290, %v671
    %v673 = vpop.f32.mrb[0].mxu0
    %v674 = vadd.f32 %v294, %v673
    %v675 = vpop.f32.mrb[0].mxu0
    %v676 = vadd.f32 %v290, %v675
    %v677 = vpop.f32.mrb[0].mxu0
    %v678 = vadd.f32 %v294, %v677
    %679 = vdwg.mxu0
    %680 = vmatprep.subr.bf16.mxu0 %v512
    %681 = vmatpush1.bf16.msra.mxu0 %v511
    %682 = vmatprep.subr.bf16.mxu0 %v516
    %683 = vmatpush1.bf16.msra.mxu0 %v515
    %684 = vmatprep.subr.bf16.mxu0 %v520
    %685 = vmatpush1.bf16.msra.mxu0 %v519
    %686 = vmatprep.subr.bf16.mxu0 %v524
    %687 = vmatpush1.bf16.msra.mxu0 %v523
    %688 = vmatprep.subr.bf16.mxu0 %v528
    %689 = vmatpush1.bf16.msra.mxu0 %v527
    %690 = vmatprep.subr.bf16.mxu0 %v532
    %691 = vmatpush1.bf16.msra.mxu0 %v531
    %692 = vmatprep.subr.bf16.mxu0 %v536
    %693 = vmatpush1.bf16.msra.mxu0 %v535
    %694 = vmatprep.subr.bf16.mxu0 %v540
    %695 = vmatpush1.bf16.msra.mxu0 %v539
    %696 = vmatprep.subr.bf16.mxu0 %v544
    %697 = vmatpush1.bf16.msra.mxu0 %v543
    %698 = vmatprep.subr.bf16.mxu0 %v548
    %699 = vmatpush1.bf16.msra.mxu0 %v547
    %700 = vmatprep.subr.bf16.mxu0 %v552
    %701 = vmatpush1.bf16.msra.mxu0 %v551
    %702 = vmatprep.subr.bf16.mxu0 %v556
    %703 = vmatpush1.bf16.msra.mxu0 %v555
    %704 = vmatprep.subr.bf16.mxu0 %v560
    %705 = vmatpush1.bf16.msra.mxu0 %v559
    %706 = vmatprep.subr.bf16.mxu0 %v564
    %707 = vmatpush1.bf16.msra.mxu0 %v563
    %708 = vmatprep.subr.bf16.mxu0 %v568
    %709 = vmatpush1.bf16.msra.mxu0 %v567
    %710 = vmatprep.subr.bf16.mxu0 %v572
    %711 = vmatpush1.bf16.msra.mxu0 %v571
    %712 = vmatprep.mubr.bf16.mxu0 %v314
    %713 = vmatmul.mubr.bf16.gmra.mrb[0].mxu0 %v313
    %v714 = vpop.f32.mrb[0].mxu0
    %v715 = vadd.f32 %v298, %v714
    %v716 = vpop.f32.mrb[0].mxu0
    %v717 = vadd.f32 %v302, %v716
    %v718 = vpop.f32.mrb[0].mxu0
    %v719 = vadd.f32 %v298, %v718
    %v720 = vpop.f32.mrb[0].mxu0
    %v721 = vadd.f32 %v302, %v720
    %722 = vdwg.mxu0
    %v723 = vld [vmem:[#allocation8] sm:$0xff]
    %v724 = vld [vmem:[#allocation8 + $0x8] sm:$0xff]
    %v725 = vld [vmem:[#allocation8 + $0x10] sm:$0xff]
    %v726 = vld [vmem:[#allocation8 + $0x18] sm:$0xff]
    %v727 = vld [vmem:[#allocation8 + $0x20] sm:$0xff]
    %v728 = vld [vmem:[#allocation8 + $0x28] sm:$0xff]
    %v729 = vld [vmem:[#allocation8 + $0x30] sm:$0xff]
    %v730 = vld [vmem:[#allocation8 + $0x38] sm:$0xff]
    %v731 = vld [vmem:[#allocation8 + $0x40] sm:$0xff]
    %v732 = vld [vmem:[#allocation8 + $0x48] sm:$0xff]
    %v733 = vld [vmem:[#allocation8 + $0x50] sm:$0xff]
    %v734 = vld [vmem:[#allocation8 + $0x58] sm:$0xff]
    %v735 = vld [vmem:[#allocation8 + $0x60] sm:$0xff]
    %v736 = vld [vmem:[#allocation8 + $0x68] sm:$0xff]
    %v737 = vld [vmem:[#allocation8 + $0x70] sm:$0xff]
    %v738 = vld [vmem:[#allocation8 + $0x78] sm:$0xff]
    %v739 = vld [vmem:[#allocation8 + $0x80] sm:$0xff]
    %v740 = vld [vmem:[#allocation8 + $0x88] sm:$0xff]
    %v741 = vld [vmem:[#allocation8 + $0x90] sm:$0xff]
    %v742 = vld [vmem:[#allocation8 + $0x98] sm:$0xff]
    %v743 = vld [vmem:[#allocation8 + $0xa0] sm:$0xff]
    %v744 = vld [vmem:[#allocation8 + $0xa8] sm:$0xff]
    %v745 = vld [vmem:[#allocation8 + $0xb0] sm:$0xff]
    %v746 = vld [vmem:[#allocation8 + $0xb8] sm:$0xff]
    %v747 = vld [vmem:[#allocation8 + $0xc0] sm:$0xff]
    %v748 = vld [vmem:[#allocation8 + $0xc8] sm:$0xff]
    %v749 = vld [vmem:[#allocation8 + $0xd0] sm:$0xff]
    %v750 = vld [vmem:[#allocation8 + $0xd8] sm:$0xff]
    %v751 = vld [vmem:[#allocation8 + $0xe0] sm:$0xff]
    %v752 = vld [vmem:[#allocation8 + $0xe8] sm:$0xff]
    %v753 = vld [vmem:[#allocation8 + $0xf0] sm:$0xff]
    %v754 = vld [vmem:[#allocation8 + $0xf8] sm:$0xff]
    %v755 = vld [vmem:[#allocation8 + $0x100] sm:$0xff]
    %v756 = vld [vmem:[#allocation8 + $0x108] sm:$0xff]
    %v757 = vld [vmem:[#allocation8 + $0x110] sm:$0xff]
    %v758 = vld [vmem:[#allocation8 + $0x118] sm:$0xff]
    %v759 = vld [vmem:[#allocation8 + $0x120] sm:$0xff]
    %v760 = vld [vmem:[#allocation8 + $0x128] sm:$0xff]
    %v761 = vld [vmem:[#allocation8 + $0x130] sm:$0xff]
    %v762 = vld [vmem:[#allocation8 + $0x138] sm:$0xff]
    %v763 = vld [vmem:[#allocation8 + $0x140] sm:$0xff]
    %v764 = vld [vmem:[#allocation8 + $0x148] sm:$0xff]
    %v765 = vld [vmem:[#allocation8 + $0x150] sm:$0xff]
    %v766 = vld [vmem:[#allocation8 + $0x158] sm:$0xff]
    %v767 = vld [vmem:[#allocation8 + $0x160] sm:$0xff]
    %v768 = vld [vmem:[#allocation8 + $0x168] sm:$0xff]
    %v769 = vld [vmem:[#allocation8 + $0x170] sm:$0xff]
    %v770 = vld [vmem:[#allocation8 + $0x178] sm:$0xff]
    %v771 = vld [vmem:[#allocation8 + $0x180] sm:$0xff]
    %v772 = vld [vmem:[#allocation8 + $0x188] sm:$0xff]
    %v773 = vld [vmem:[#allocation8 + $0x190] sm:$0xff]
    %v774 = vld [vmem:[#allocation8 + $0x198] sm:$0xff]
    %v775 = vld [vmem:[#allocation8 + $0x1a0] sm:$0xff]
    %v776 = vld [vmem:[#allocation8 + $0x1a8] sm:$0xff]
    %v777 = vld [vmem:[#allocation8 + $0x1b0] sm:$0xff]
    %v778 = vld [vmem:[#allocation8 + $0x1b8] sm:$0xff]
    %v779 = vld [vmem:[#allocation8 + $0x1c0] sm:$0xff]
    %v780 = vld [vmem:[#allocation8 + $0x1c8] sm:$0xff]
    %v781 = vld [vmem:[#allocation8 + $0x1d0] sm:$0xff]
    %v782 = vld [vmem:[#allocation8 + $0x1d8] sm:$0xff]
    %v783 = vld [vmem:[#allocation8 + $0x1e0] sm:$0xff]
    %v784 = vld [vmem:[#allocation8 + $0x1e8] sm:$0xff]
    %v785 = vld [vmem:[#allocation8 + $0x1f0] sm:$0xff]
    %v786 = vld [vmem:[#allocation8 + $0x1f8] sm:$0xff]
    %v787 = vld [vmem:[#allocation8 + $0x200] sm:$0xff]
    %v788 = vld [vmem:[#allocation8 + $0x208] sm:$0xff]
    %v789 = vld [vmem:[#allocation8 + $0x210] sm:$0xff]
    %v790 = vld [vmem:[#allocation8 + $0x218] sm:$0xff]
    %v791 = vld [vmem:[#allocation8 + $0x220] sm:$0xff]
    %v792 = vld [vmem:[#allocation8 + $0x228] sm:$0xff]
    %v793 = vld [vmem:[#allocation8 + $0x230] sm:$0xff]
    %v794 = vld [vmem:[#allocation8 + $0x238] sm:$0xff]
    %v795 = vld [vmem:[#allocation8 + $0x240] sm:$0xff]
    %v796 = vld [vmem:[#allocation8 + $0x248] sm:$0xff]
    %v797 = vld [vmem:[#allocation8 + $0x250] sm:$0xff]
    %v798 = vld [vmem:[#allocation8 + $0x258] sm:$0xff]
    %v799 = vld [vmem:[#allocation8 + $0x260] sm:$0xff]
    %v800 = vld [vmem:[#allocation8 + $0x268] sm:$0xff]
    %v801 = vld [vmem:[#allocation8 + $0x270] sm:$0xff]
    %v802 = vld [vmem:[#allocation8 + $0x278] sm:$0xff]
    %v803 = vld [vmem:[#allocation8 + $0x280] sm:$0xff]
    %v804 = vld [vmem:[#allocation8 + $0x288] sm:$0xff]
    %v805 = vld [vmem:[#allocation8 + $0x290] sm:$0xff]
    %v806 = vld [vmem:[#allocation8 + $0x298] sm:$0xff]
    %v807 = vld [vmem:[#allocation8 + $0x2a0] sm:$0xff]
    %v808 = vld [vmem:[#allocation8 + $0x2a8] sm:$0xff]
    %v809 = vld [vmem:[#allocation8 + $0x2b0] sm:$0xff]
    %v810 = vld [vmem:[#allocation8 + $0x2b8] sm:$0xff]
    %v811 = vld [vmem:[#allocation8 + $0x2c0] sm:$0xff]
    %v812 = vld [vmem:[#allocation8 + $0x2c8] sm:$0xff]
    %v813 = vld [vmem:[#allocation8 + $0x2d0] sm:$0xff]
    %v814 = vld [vmem:[#allocation8 + $0x2d8] sm:$0xff]
    %v815 = vld [vmem:[#allocation8 + $0x2e0] sm:$0xff]
    %v816 = vld [vmem:[#allocation8 + $0x2e8] sm:$0xff]
    %v817 = vld [vmem:[#allocation8 + $0x2f0] sm:$0xff]
    %v818 = vld [vmem:[#allocation8 + $0x2f8] sm:$0xff]
    %v819 = vld [vmem:[#allocation8 + $0x300] sm:$0xff]
    %v820 = vld [vmem:[#allocation8 + $0x308] sm:$0xff]
    %v821 = vld [vmem:[#allocation8 + $0x310] sm:$0xff]
    %v822 = vld [vmem:[#allocation8 + $0x318] sm:$0xff]
    %v823 = vld [vmem:[#allocation8 + $0x320] sm:$0xff]
    %v824 = vld [vmem:[#allocation8 + $0x328] sm:$0xff]
    %v825 = vld [vmem:[#allocation8 + $0x330] sm:$0xff]
    %v826 = vld [vmem:[#allocation8 + $0x338] sm:$0xff]
    %v827 = vld [vmem:[#allocation8 + $0x340] sm:$0xff]
    %v828 = vld [vmem:[#allocation8 + $0x348] sm:$0xff]
    %v829 = vld [vmem:[#allocation8 + $0x350] sm:$0xff]
    %v830 = vld [vmem:[#allocation8 + $0x358] sm:$0xff]
    %v831 = vld [vmem:[#allocation8 + $0x360] sm:$0xff]
    %v832 = vld [vmem:[#allocation8 + $0x368] sm:$0xff]
    %v833 = vld [vmem:[#allocation8 + $0x370] sm:$0xff]
    %v834 = vld [vmem:[#allocation8 + $0x378] sm:$0xff]
    %v835 = vld [vmem:[#allocation8 + $0x380] sm:$0xff]
    %v836 = vld [vmem:[#allocation8 + $0x388] sm:$0xff]
    %v837 = vld [vmem:[#allocation8 + $0x390] sm:$0xff]
    %v838 = vld [vmem:[#allocation8 + $0x398] sm:$0xff]
    %v839 = vld [vmem:[#allocation8 + $0x3a0] sm:$0xff]
    %v840 = vld [vmem:[#allocation8 + $0x3a8] sm:$0xff]
    %v841 = vld [vmem:[#allocation8 + $0x3b0] sm:$0xff]
    %v842 = vld [vmem:[#allocation8 + $0x3b8] sm:$0xff]
    %v843 = vld [vmem:[#allocation8 + $0x3c0] sm:$0xff]
    %v844 = vld [vmem:[#allocation8 + $0x3c8] sm:$0xff]
    %v845 = vld [vmem:[#allocation8 + $0x3d0] sm:$0xff]
    %v846 = vld [vmem:[#allocation8 + $0x3d8] sm:$0xff]
    %v847 = vld [vmem:[#allocation8 + $0x3e0] sm:$0xff]
    %v848 = vld [vmem:[#allocation8 + $0x3e8] sm:$0xff]
    %v849 = vld [vmem:[#allocation8 + $0x3f0] sm:$0xff]
    %v850 = vld [vmem:[#allocation8 + $0x3f8] sm:$0xff]
    %s851 = scalar_lea.vmem %s3, 2
    %v852 = vld [vmem:[%s851] ss:$8 sm:$0xf]
    %v853 = vmax.f32 %v672, 0.0
    %v854 = vmax.f32 %v674, 0.0
    %v855 = vmax.f32 %v715, 0.0
    %v856 = vmax.f32 %v717, 0.0
    %v857 = vmax.f32 %v676, 0.0
    %v858 = vmax.f32 %v678, 0.0
    %v859 = vmax.f32 %v719, 0.0
    %v860 = vmax.f32 %v721, 0.0
    %v861 = vadd.f32 %v853, 1e-07
    %v862 = vadd.f32 %v854, 1e-07
    %v863 = vadd.f32 %v855, 1e-07
    %v864 = vadd.f32 %v856, 1e-07
    %v865 = vadd.f32 %v857, 1e-07
    %v866 = vadd.f32 %v858, 1e-07
    %v867 = vadd.f32 %v859, 1e-07
    %v868 = vadd.f32 %v860, 1e-07
    %v869 = vmax.f32 %v861, 1e-07
    %v870 = vmax.f32 %v862, 1e-07
    %v871 = vmax.f32 %v863, 1e-07
    %v872 = vmax.f32 %v864, 1e-07
    %v873 = vmax.f32 %v865, 1e-07
    %v874 = vmax.f32 %v866, 1e-07
    %v875 = vmax.f32 %v867, 1e-07
    %v876 = vmax.f32 %v868, 1e-07
    %v877 = vmin.f32 %v869, 10000.0
    %v878 = vmin.f32 %v870, 10000.0
    %v879 = vmin.f32 %v871, 10000.0
    %v880 = vmin.f32 %v872, 10000.0
    %v881 = vmin.f32 %v873, 10000.0
    %v882 = vmin.f32 %v874, 10000.0
    %v883 = vmin.f32 %v875, 10000.0
    %v884 = vmin.f32 %v876, 10000.0
    %v885 = vpack.c.bf16 %v881, %v877
    %v886 = vpack.c.bf16 %v882, %v878
    %v887 = vpack.c.bf16 %v883, %v879
    %v888 = vpack.c.bf16 %v884, %v880
    %v891 = vunpack.c.l.b16 %v149
    %v892 = vunpack.c.l.b16 %v150
    %v893 = vpack.c.b16 %v892, %v891
    %vm894 = vcmask 130048
    %v896 = vsel %vm894, %v893, 0
    %898 = vmatprep.subr.bf16.mxu0 %v886
    %899 = vmatpush1.bf16.msra.mxu0 %v885
    %900 = vmatprep.subr.bf16.mxu0 0
    %901 = vmatpush1.bf16.msra.mxu0 0
    %902 = vmatprep.subr.bf16.mxu0 0
    %903 = vmatpush1.bf16.msra.mxu0 0
    %904 = vmatprep.subr.bf16.mxu0 0
    %905 = vmatpush1.bf16.msra.mxu0 0
    %906 = vmatprep.subr.bf16.mxu0 0
    %907 = vmatpush1.bf16.msra.mxu0 0
    %908 = vmatprep.subr.bf16.mxu0 0
    %909 = vmatpush1.bf16.msra.mxu0 0
    %910 = vmatprep.subr.bf16.mxu0 0
    %911 = vmatpush1.bf16.msra.mxu0 0
    %912 = vmatprep.subr.bf16.mxu0 0
    %913 = vmatpush1.bf16.msra.mxu0 0
    %914 = vmatprep.subr.bf16.mxu0 0
    %915 = vmatpush1.bf16.msra.mxu0 0
    %916 = vmatprep.subr.bf16.mxu0 0
    %917 = vmatpush1.bf16.msra.mxu0 0
    %918 = vmatprep.subr.bf16.mxu0 0
    %919 = vmatpush1.bf16.msra.mxu0 0
    %920 = vmatprep.subr.bf16.mxu0 0
    %921 = vmatpush1.bf16.msra.mxu0 0
    %922 = vmatprep.subr.bf16.mxu0 0
    %923 = vmatpush1.bf16.msra.mxu0 0
    %924 = vmatprep.subr.bf16.mxu0 0
    %925 = vmatpush1.bf16.msra.mxu0 0
    %926 = vmatprep.subr.bf16.mxu0 0
    %927 = vmatpush1.bf16.msra.mxu0 0
    %928 = vmatprep.subr.bf16.mxu0 0
    %929 = vmatpush1.bf16.msra.mxu0 0
    %930 = vmatprep.mubr.bf16.mxu0 0
    %931 = vmatmul.mubr.bf16.gmra.mrb[0].mxu0 %v896
    %v932 = vpop.f32.mrb[0].mxu0
    %v933 = vadd.f32 0.0, %v932
    %v934 = vpop.f32.mrb[0].mxu0
    %v935 = vadd.f32 0.0, %v934
    %v936 = vpop.f32.mrb[0].mxu0
    %v937 = vadd.f32 0.0, %v936
    %v938 = vpop.f32.mrb[0].mxu0
    %v939 = vadd.f32 0.0, %v938
    %940 = vdwg.mxu0
    %941 = vmatprep.subr.bf16.mxu0 %v888
    %942 = vmatpush1.bf16.msra.mxu0 %v887
    %943 = vmatprep.subr.bf16.mxu0 0
    %944 = vmatpush1.bf16.msra.mxu0 0
    %945 = vmatprep.subr.bf16.mxu0 0
    %946 = vmatpush1.bf16.msra.mxu0 0
    %947 = vmatprep.subr.bf16.mxu0 0
    %948 = vmatpush1.bf16.msra.mxu0 0
    %949 = vmatprep.subr.bf16.mxu0 0
    %950 = vmatpush1.bf16.msra.mxu0 0
    %951 = vmatprep.subr.bf16.mxu0 0
    %952 = vmatpush1.bf16.msra.mxu0 0
    %953 = vmatprep.subr.bf16.mxu0 0
    %954 = vmatpush1.bf16.msra.mxu0 0
    %955 = vmatprep.subr.bf16.mxu0 0
    %956 = vmatpush1.bf16.msra.mxu0 0
    %957 = vmatprep.subr.bf16.mxu0 0
    %958 = vmatpush1.bf16.msra.mxu0 0
    %959 = vmatprep.subr.bf16.mxu0 0
    %960 = vmatpush1.bf16.msra.mxu0 0
    %961 = vmatprep.subr.bf16.mxu0 0
    %962 = vmatpush1.bf16.msra.mxu0 0
    %963 = vmatprep.subr.bf16.mxu0 0
    %964 = vmatpush1.bf16.msra.mxu0 0
    %965 = vmatprep.subr.bf16.mxu0 0
    %966 = vmatpush1.bf16.msra.mxu0 0
    %967 = vmatprep.subr.bf16.mxu0 0
    %968 = vmatpush1.bf16.msra.mxu0 0
    %969 = vmatprep.subr.bf16.mxu0 0
    %970 = vmatpush1.bf16.msra.mxu0 0
    %971 = vmatprep.subr.bf16.mxu0 0
    %972 = vmatpush1.bf16.msra.mxu0 0
    %973 = vmatprep.mubr.bf16.mxu0 0
    %974 = vmatmul.mubr.bf16.gmra.mrb[0].mxu0 %v896
    %v975 = vpop.f32.mrb[0].mxu0
    %v976 = vadd.f32 0.0, %v975
    %v977 = vpop.f32.mrb[0].mxu0
    %v978 = vadd.f32 0.0, %v977
    %v979 = vpop.f32.mrb[0].mxu0
    %v980 = vadd.f32 0.0, %v979
    %v981 = vpop.f32.mrb[0].mxu0
    %v982 = vadd.f32 0.0, %v981
    %983 = vdwg.mxu0
    %985 = vset.pattern.permute.xlu0 0
    %986 = vperm.xlu0 %985, %v151
    %v987 = vpop.permute.xlu0 %986
    %990 = vset.pattern.permute.xlu0 0
    %991 = vperm.xlu0 %990, %v152
    %v992 = vpop.permute.xlu0 %991
    %v994 = vmul.f32 %v933, %v987
    %v995 = vmul.f32 %v935, %v987
    %v996 = vmul.f32 %v976, %v987
    %v997 = vmul.f32 %v978, %v987
    %v998 = vmul.f32 %v937, %v992
    %v999 = vmul.f32 %v939, %v992
    %v1000 = vmul.f32 %v980, %v992
    %v1001 = vmul.f32 %v982, %v992
    %v1002 = vmax.f32 %v994, 1e-07
    %v1003 = vmax.f32 %v995, 1e-07
    %v1004 = vmax.f32 %v996, 1e-07
    %v1005 = vmax.f32 %v997, 1e-07
    %v1006 = vmax.f32 %v998, 1e-07
    %v1007 = vmax.f32 %v999, 1e-07
    %v1008 = vmax.f32 %v1000, 1e-07
    %v1009 = vmax.f32 %v1001, 1e-07
    %v1010 = vmin.f32 %v1002, 10000.0
    %v1011 = vmin.f32 %v1003, 10000.0
    %v1012 = vmin.f32 %v1004, 10000.0
    %v1013 = vmin.f32 %v1005, 10000.0
    %v1014 = vmin.f32 %v1006, 10000.0
    %v1015 = vmin.f32 %v1007, 10000.0
    %v1016 = vmin.f32 %v1008, 10000.0
    %v1017 = vmin.f32 %v1009, 10000.0
    %v1018 = vmul.f32 %v1010, %v1010
    %v1019 = vmul.f32 %v1011, %v1011
    %v1020 = vmul.f32 %v1012, %v1012
    %v1021 = vmul.f32 %v1013, %v1013
    %v1022 = vmul.f32 %v1014, %v1014
    %v1023 = vmul.f32 %v1015, %v1015
    %v1024 = vmul.f32 %v1016, %v1016
    %v1025 = vmul.f32 %v1017, %v1017
    %v1026 = vadd.f32 %v1018, %v1019
    %v1027 = vadd.f32 %v1026, %v1020
    %v1028 = vadd.f32 %v1027, %v1021
    %1029 = vadd.xlane.f32.xlu0 %v1028
    %v1030 = vpop.xlane.xlu0 %1029
    %v1031 = vadd.f32 %v1022, %v1023
    %v1032 = vadd.f32 %v1031, %v1024
    %v1033 = vadd.f32 %v1032, %v1025
    %1034 = vadd.xlane.f32.xlu0 %v1033
    %v1035 = vpop.xlane.xlu0 %1034
    %v1036 = vmax.f32 %v1030, 1e-24
    %v1037 = vmax.f32 %v1035, 1e-24
    %v1038 = vrsqrt.pop %v1036
    %v1039 = vrsqrt.pop %v1037
    %v1040 = vunpack.c.l.bf16 %v153
    %v1041 = vunpack.c.h.bf16 %v153
    %v1042 = vunpack.c.l.bf16 %v154
    %v1043 = vunpack.c.h.bf16 %v154
    %v1044 = vmul.f32 %v1040, %v1040
    %v1045 = vmul.f32 %v1041, %v1041
    %v1046 = vmul.f32 %v1042, %v1042
    %v1047 = vmul.f32 %v1043, %v1043
    %v1048 = vadd.f32 %v1044, %v1045
    %1049 = vadd.xlane.f32.xlu0 %v1048
    %v1050 = vpop.xlane.xlu0 %1049
    %v1051 = vadd.f32 %v1046, %v1047
    %1052 = vadd.xlane.f32.xlu0 %v1051
    %v1053 = vpop.xlane.xlu0 %1052
    %v1054 = vrsqrt.pop %v1050
    %v1055 = vmul.f32 %v1050, %v1054
    %vm1056 = vcmp.eq.f32.partialorder %v1050, inf
    %v1057 = vsel %vm1056, %v1050, %v1055
    %vm1058 = vcmp.eq.f32.partialorder %v1050, 0.0
    %v1059 = vand.u32 %v1050, 2147483648
    %v1060 = vsel %vm1058, %v1059, %v1057
    %v1061 = vrsqrt.pop %v1053
    %v1062 = vmul.f32 %v1053, %v1061
    %vm1063 = vcmp.eq.f32.partialorder %v1053, inf
    %v1064 = vsel %vm1063, %v1053, %v1062
    %vm1065 = vcmp.eq.f32.partialorder %v1053, 0.0
    %v1066 = vand.u32 %v1053, 2147483648
    %v1067 = vsel %vm1065, %v1066, %v1064
    %v1068 = vmul.f32 %v1038, %v1060
    %v1069 = vmul.f32 %v1039, %v1067
    %v1070 = vmul.f32 %v1010, %v1068
    %v1071 = vmul.f32 %v1011, %v1068
    %v1072 = vmul.f32 %v1012, %v1068
    %v1073 = vmul.f32 %v1013, %v1068
    %v1074 = vmul.f32 %v1014, %v1069
    %v1075 = vmul.f32 %v1015, %v1069
    %v1076 = vmul.f32 %v1016, %v1069
    %v1077 = vmul.f32 %v1017, %v1069
    %v1079 = vlaneseq
    %v1080 = vshrl.u32 %v1079, 7
    %v1081 = vsub.s32 0, %v1080
    %v1082 = vrot.slane %v285, %v1081
    %v1083 = vlaneseq
    %v1084 = vshrl.u32 %v1083, 7
    %v1085 = vsub.s32 1, %v1084
    %v1086 = vrot.slane %v285, %v1085
    %v1087 = vlaneseq
    %v1088 = vshrl.u32 %v1087, 7
    %v1089 = vsub.s32 2, %v1088
    %v1090 = vrot.slane %v285, %v1089
    %v1091 = vlaneseq
    %v1092 = vshrl.u32 %v1091, 7
    %v1093 = vsub.s32 3, %v1092
    %v1094 = vrot.slane %v285, %v1093
    %v1163 = vunpack.c.l.b16 %v219
    %v1164 = vunpack.c.h.b16 %v219
    %v1165 = vunpack.c.l.b16 %v220
    %v1166 = vunpack.c.h.b16 %v220
    %v1167 = vunpack.c.l.b16 %v221
    %v1168 = vunpack.c.h.b16 %v221
    %v1169 = vunpack.c.l.b16 %v222
    %v1170 = vunpack.c.h.b16 %v222
    %v1171 = vunpack.c.l.b16 %v223
    %v1172 = vunpack.c.h.b16 %v223
    %v1173 = vunpack.c.l.b16 %v224
    %v1174 = vunpack.c.h.b16 %v224
    %v1175 = vunpack.c.l.b16 %v225
    %v1176 = vunpack.c.h.b16 %v225
    %v1177 = vunpack.c.l.b16 %v226
    %v1178 = vunpack.c.h.b16 %v226
    %v1179 = vunpack.c.l.b16 %v227
    %v1180 = vunpack.c.h.b16 %v227
    %v1181 = vunpack.c.l.b16 %v228
    %v1182 = vunpack.c.h.b16 %v228
    %v1183 = vunpack.c.l.b16 %v229
    %v1184 = vunpack.c.h.b16 %v229
    %v1185 = vunpack.c.l.b16 %v230
    %v1186 = vunpack.c.h.b16 %v230
    %v1187 = vunpack.c.l.b16 %v231
    %v1188 = vunpack.c.h.b16 %v231
    %v1189 = vunpack.c.l.b16 %v232
    %v1190 = vunpack.c.h.b16 %v232
    %v1191 = vunpack.c.l.b16 %v233
    %v1192 = vunpack.c.h.b16 %v233
    %v1193 = vunpack.c.l.b16 %v234
    %v1194 = vunpack.c.h.b16 %v234
    %v1195 = vunpack.c.l.b16 %v235
    %v1196 = vunpack.c.h.b16 %v235
    %v1197 = vunpack.c.l.b16 %v236
    %v1198 = vunpack.c.h.b16 %v236
    %v1199 = vunpack.c.l.b16 %v237
    %v1200 = vunpack.c.h.b16 %v237
    %v1201 = vunpack.c.l.b16 %v238
    %v1202 = vunpack.c.h.b16 %v238
    %v1203 = vunpack.c.l.b16 %v239
    %v1204 = vunpack.c.h.b16 %v239
    %v1205 = vunpack.c.l.b16 %v240
    %v1206 = vunpack.c.h.b16 %v240
    %v1207 = vunpack.c.l.b16 %v241
    %v1208 = vunpack.c.h.b16 %v241
    %v1209 = vunpack.c.l.b16 %v242
    %v1210 = vunpack.c.h.b16 %v242
    %v1211 = vunpack.c.l.b16 %v243
    %v1212 = vunpack.c.h.b16 %v243
    %v1213 = vunpack.c.l.b16 %v244
    %v1214 = vunpack.c.h.b16 %v244
    %v1215 = vunpack.c.l.b16 %v245
    %v1216 = vunpack.c.h.b16 %v245
    %v1217 = vunpack.c.l.b16 %v246
    %v1218 = vunpack.c.h.b16 %v246
    %v1219 = vunpack.c.l.b16 %v247
    %v1220 = vunpack.c.h.b16 %v247
    %v1221 = vunpack.c.l.b16 %v248
    %v1222 = vunpack.c.h.b16 %v248
    %v1223 = vunpack.c.l.b16 %v249
    %v1224 = vunpack.c.h.b16 %v249
    %v1225 = vunpack.c.l.b16 %v250
    %v1226 = vunpack.c.h.b16 %v250
    %v1227 = vunpack.c.l.b16 %v251
    %v1228 = vunpack.c.h.b16 %v251
    %v1229 = vunpack.c.l.b16 %v252
    %v1230 = vunpack.c.h.b16 %v252
    %v1231 = vunpack.c.l.b16 %v253
    %v1232 = vunpack.c.h.b16 %v253
    %v1233 = vunpack.c.l.b16 %v254
    %v1234 = vunpack.c.h.b16 %v254
    %v1235 = vunpack.c.l.b16 %v255
    %v1236 = vunpack.c.h.b16 %v255
    %v1237 = vunpack.c.l.b16 %v256
    %v1238 = vunpack.c.h.b16 %v256
    %v1239 = vunpack.c.l.b16 %v257
    %v1240 = vunpack.c.h.b16 %v257
    %v1241 = vunpack.c.l.b16 %v258
    %v1242 = vunpack.c.h.b16 %v258
    %v1243 = vunpack.c.l.b16 %v259
    %v1244 = vunpack.c.h.b16 %v259
    %v1245 = vunpack.c.l.b16 %v260
    %v1246 = vunpack.c.h.b16 %v260
    %v1247 = vunpack.c.l.b16 %v261
    %v1248 = vunpack.c.h.b16 %v261
    %v1249 = vunpack.c.l.b16 %v262
    %v1250 = vunpack.c.h.b16 %v262
    %v1251 = vunpack.c.l.b16 %v263
    %v1252 = vunpack.c.h.b16 %v263
    %v1253 = vunpack.c.l.b16 %v264
    %v1254 = vunpack.c.h.b16 %v264
    %v1255 = vunpack.c.l.b16 %v265
    %v1256 = vunpack.c.h.b16 %v265
    %v1257 = vunpack.c.l.b16 %v266
    %v1258 = vunpack.c.h.b16 %v266
    %v1259 = vunpack.c.l.b16 %v267
    %v1260 = vunpack.c.h.b16 %v267
    %v1261 = vunpack.c.l.b16 %v268
    %v1262 = vunpack.c.h.b16 %v268
    %v1263 = vunpack.c.l.b16 %v269
    %v1264 = vunpack.c.h.b16 %v269
    %v1265 = vunpack.c.l.b16 %v270
    %v1266 = vunpack.c.h.b16 %v270
    %v1267 = vunpack.c.l.b16 %v271
    %v1268 = vunpack.c.h.b16 %v271
    %v1269 = vunpack.c.l.b16 %v272
    %v1270 = vunpack.c.h.b16 %v272
    %v1271 = vunpack.c.l.b16 %v273
    %v1272 = vunpack.c.h.b16 %v273
    %v1273 = vunpack.c.l.b16 %v274
    %v1274 = vunpack.c.h.b16 %v274
    %v1275 = vunpack.c.l.b16 %v275
    %v1276 = vunpack.c.h.b16 %v275
    %v1277 = vunpack.c.l.b16 %v276
    %v1278 = vunpack.c.h.b16 %v276
    %v1279 = vunpack.c.l.b16 %v277
    %v1280 = vunpack.c.h.b16 %v277
    %v1281 = vunpack.c.l.b16 %v278
    %v1282 = vunpack.c.h.b16 %v278
    %v1283 = vunpack.c.l.b16 %v279
    %v1284 = vunpack.c.h.b16 %v279
    %v1285 = vunpack.c.l.b16 %v280
    %v1286 = vunpack.c.h.b16 %v280
    %v1287 = vunpack.c.l.b16 %v281
    %v1288 = vunpack.c.h.b16 %v281
    %v1289 = vunpack.c.l.b16 %v282
    %v1290 = vunpack.c.h.b16 %v282
    %v1291 = vpack.c.b16 %v1167, %v1163
    %v1292 = vpack.c.b16 %v1168, %v1164
    %v1293 = vpack.c.b16 %v1169, %v1165
    %v1294 = vpack.c.b16 %v1170, %v1166
    %v1295 = vpack.c.b16 %v1175, %v1171
    %v1296 = vpack.c.b16 %v1176, %v1172
    %v1297 = vpack.c.b16 %v1177, %v1173
    %v1298 = vpack.c.b16 %v1178, %v1174
    %v1299 = vpack.c.b16 %v1183, %v1179
    %v1300 = vpack.c.b16 %v1184, %v1180
    %v1301 = vpack.c.b16 %v1185, %v1181
    %v1302 = vpack.c.b16 %v1186, %v1182
    %v1303 = vpack.c.b16 %v1191, %v1187
    %v1304 = vpack.c.b16 %v1192, %v1188
    %v1305 = vpack.c.b16 %v1193, %v1189
    %v1306 = vpack.c.b16 %v1194, %v1190
    %v1307 = vpack.c.b16 %v1199, %v1195
    %v1308 = vpack.c.b16 %v1200, %v1196
    %v1309 = vpack.c.b16 %v1201, %v1197
    %v1310 = vpack.c.b16 %v1202, %v1198
    %v1311 = vpack.c.b16 %v1207, %v1203
    %v1312 = vpack.c.b16 %v1208, %v1204
    %v1313 = vpack.c.b16 %v1209, %v1205
    %v1314 = vpack.c.b16 %v1210, %v1206
    %v1315 = vpack.c.b16 %v1215, %v1211
    %v1316 = vpack.c.b16 %v1216, %v1212
    %v1317 = vpack.c.b16 %v1217, %v1213
    %v1318 = vpack.c.b16 %v1218, %v1214
    %v1319 = vpack.c.b16 %v1223, %v1219
    %v1320 = vpack.c.b16 %v1224, %v1220
    %v1321 = vpack.c.b16 %v1225, %v1221
    %v1322 = vpack.c.b16 %v1226, %v1222
    %v1323 = vpack.c.b16 %v1231, %v1227
    %v1324 = vpack.c.b16 %v1232, %v1228
    %v1325 = vpack.c.b16 %v1233, %v1229
    %v1326 = vpack.c.b16 %v1234, %v1230
    %v1327 = vpack.c.b16 %v1239, %v1235
    %v1328 = vpack.c.b16 %v1240, %v1236
    %v1329 = vpack.c.b16 %v1241, %v1237
    %v1330 = vpack.c.b16 %v1242, %v1238
    %v1331 = vpack.c.b16 %v1247, %v1243
    %v1332 = vpack.c.b16 %v1248, %v1244
    %v1333 = vpack.c.b16 %v1249, %v1245
    %v1334 = vpack.c.b16 %v1250, %v1246
    %v1335 = vpack.c.b16 %v1255, %v1251
    %v1336 = vpack.c.b16 %v1256, %v1252
    %v1337 = vpack.c.b16 %v1257, %v1253
    %v1338 = vpack.c.b16 %v1258, %v1254
    %v1339 = vpack.c.b16 %v1263, %v1259
    %v1340 = vpack.c.b16 %v1264, %v1260
    %v1341 = vpack.c.b16 %v1265, %v1261
    %v1342 = vpack.c.b16 %v1266, %v1262
    %v1343 = vpack.c.b16 %v1271, %v1267
    %v1344 = vpack.c.b16 %v1272, %v1268
    %v1345 = vpack.c.b16 %v1273, %v1269
    %v1346 = vpack.c.b16 %v1274, %v1270
    %v1347 = vpack.c.b16 %v1279, %v1275
    %v1348 = vpack.c.b16 %v1280, %v1276
    %v1349 = vpack.c.b16 %v1281, %v1277
    %v1350 = vpack.c.b16 %v1282, %v1278
    %v1351 = vpack.c.b16 %v1287, %v1283
    %v1352 = vpack.c.b16 %v1288, %v1284
    %v1353 = vpack.c.b16 %v1289, %v1285
    %v1354 = vpack.c.b16 %v1290, %v1286
    %1419 = vmatprep.subr.bf16.mxu0 %v1292
    %1420 = vmatpush1.bf16.msra.mxu0 %v1291
    %1421 = vmatprep.subr.bf16.mxu0 %v1296
    %1422 = vmatpush1.bf16.msra.mxu0 %v1295
    %1423 = vmatprep.subr.bf16.mxu0 %v1300
    %1424 = vmatpush1.bf16.msra.mxu0 %v1299
    %1425 = vmatprep.subr.bf16.mxu0 %v1304
    %1426 = vmatpush1.bf16.msra.mxu0 %v1303
    %1427 = vmatprep.subr.bf16.mxu0 %v1308
    %1428 = vmatpush1.bf16.msra.mxu0 %v1307
    %1429 = vmatprep.subr.bf16.mxu0 %v1312
    %1430 = vmatpush1.bf16.msra.mxu0 %v1311
    %1431 = vmatprep.subr.bf16.mxu0 %v1316
    %1432 = vmatpush1.bf16.msra.mxu0 %v1315
    %1433 = vmatprep.subr.bf16.mxu0 %v1320
    %1434 = vmatpush1.bf16.msra.mxu0 %v1319
    %1435 = vmatprep.subr.bf16.mxu0 %v1324
    %1436 = vmatpush1.bf16.msra.mxu0 %v1323
    %1437 = vmatprep.subr.bf16.mxu0 %v1328
    %1438 = vmatpush1.bf16.msra.mxu0 %v1327
    %1439 = vmatprep.subr.bf16.mxu0 %v1332
    %1440 = vmatpush1.bf16.msra.mxu0 %v1331
    %1441 = vmatprep.subr.bf16.mxu0 %v1336
    %1442 = vmatpush1.bf16.msra.mxu0 %v1335
    %1443 = vmatprep.subr.bf16.mxu0 %v1340
    %1444 = vmatpush1.bf16.msra.mxu0 %v1339
    %1445 = vmatprep.subr.bf16.mxu0 %v1344
    %1446 = vmatpush1.bf16.msra.mxu0 %v1343
    %1447 = vmatprep.subr.bf16.mxu0 %v1348
    %1448 = vmatpush1.bf16.msra.mxu0 %v1347
    %1449 = vmatprep.subr.bf16.mxu0 %v1352
    %1450 = vmatpush1.bf16.msra.mxu0 %v1351
    %1451 = vmatprep.mubr.bf16.mxu0 %v314
    %1452 = vmatmul.mubr.bf16.gmra.mrb[0].mxu0 %v313
    %v1453 = vpop.f32.mrb[0].mxu0
    %v1454 = vadd.f32 %v1082, %v1453
    %v1455 = vpop.f32.mrb[0].mxu0
    %v1456 = vadd.f32 %v1086, %v1455
    %v1457 = vpop.f32.mrb[0].mxu0
    %v1458 = vadd.f32 %v1082, %v1457
    %v1459 = vpop.f32.mrb[0].mxu0
    %v1460 = vadd.f32 %v1086, %v1459
    %1461 = vdwg.mxu0
    %1462 = vmatprep.subr.bf16.mxu0 %v1294
    %1463 = vmatpush1.bf16.msra.mxu0 %v1293
    %1464 = vmatprep.subr.bf16.mxu0 %v1298
    %1465 = vmatpush1.bf16.msra.mxu0 %v1297
    %1466 = vmatprep.subr.bf16.mxu0 %v1302
    %1467 = vmatpush1.bf16.msra.mxu0 %v1301
    %1468 = vmatprep.subr.bf16.mxu0 %v1306
    %1469 = vmatpush1.bf16.msra.mxu0 %v1305
    %1470 = vmatprep.subr.bf16.mxu0 %v1310
    %1471 = vmatpush1.bf16.msra.mxu0 %v1309
    %1472 = vmatprep.subr.bf16.mxu0 %v1314
    %1473 = vmatpush1.bf16.msra.mxu0 %v1313
    %1474 = vmatprep.subr.bf16.mxu0 %v1318
    %1475 = vmatpush1.bf16.msra.mxu0 %v1317
    %1476 = vmatprep.subr.bf16.mxu0 %v1322
    %1477 = vmatpush1.bf16.msra.mxu0 %v1321
    %1478 = vmatprep.subr.bf16.mxu0 %v1326
    %1479 = vmatpush1.bf16.msra.mxu0 %v1325
    %1480 = vmatprep.subr.bf16.mxu0 %v1330
    %1481 = vmatpush1.bf16.msra.mxu0 %v1329
    %1482 = vmatprep.subr.bf16.mxu0 %v1334
    %1483 = vmatpush1.bf16.msra.mxu0 %v1333
    %1484 = vmatprep.subr.bf16.mxu0 %v1338
    %1485 = vmatpush1.bf16.msra.mxu0 %v1337
    %1486 = vmatprep.subr.bf16.mxu0 %v1342
    %1487 = vmatpush1.bf16.msra.mxu0 %v1341
    %1488 = vmatprep.subr.bf16.mxu0 %v1346
    %1489 = vmatpush1.bf16.msra.mxu0 %v1345
    %1490 = vmatprep.subr.bf16.mxu0 %v1350
    %1491 = vmatpush1.bf16.msra.mxu0 %v1349
    %1492 = vmatprep.subr.bf16.mxu0 %v1354
    %1493 = vmatpush1.bf16.msra.mxu0 %v1353
    %1494 = vmatprep.mubr.bf16.mxu0 %v314
    %1495 = vmatmul.mubr.bf16.gmra.mrb[0].mxu0 %v313
    %v1496 = vpop.f32.mrb[0].mxu0
    %v1497 = vadd.f32 %v1090, %v1496
    %v1498 = vpop.f32.mrb[0].mxu0
    %v1499 = vadd.f32 %v1094, %v1498
    %v1500 = vpop.f32.mrb[0].mxu0
    %v1501 = vadd.f32 %v1090, %v1500
    %v1502 = vpop.f32.mrb[0].mxu0
    %v1503 = vadd.f32 %v1094, %v1502
    %1504 = vdwg.mxu0
    %v1505 = vadd.f32 %v1070, %v1454
    %v1506 = vadd.f32 %v1071, %v1456
    %v1507 = vadd.f32 %v1072, %v1497
    %v1508 = vadd.f32 %v1073, %v1499
    %v1509 = vadd.f32 %v1074, %v1458
    %v1510 = vadd.f32 %v1075, %v1460
    %v1511 = vadd.f32 %v1076, %v1501
    %v1512 = vadd.f32 %v1077, %v1503
    %v1513 = vpack.c.bf16 %v1509, %v1505
    %v1514 = vpack.c.bf16 %v1510, %v1506
    %v1515 = vpack.c.bf16 %v1511, %v1507
    %v1516 = vpack.c.bf16 %v1512, %v1508
    %v1518 = vlaneseq
    %v1519 = vshrl.u32 %v1518, 7
    %v1520 = vsub.s32 0, %v1519
    %v1521 = vrot.slane %v852, %v1520
    %v1522 = vlaneseq
    %v1523 = vshrl.u32 %v1522, 7
    %v1524 = vsub.s32 1, %v1523
    %v1525 = vrot.slane %v852, %v1524
    %v1526 = vlaneseq
    %v1527 = vshrl.u32 %v1526, 7
    %v1528 = vsub.s32 2, %v1527
    %v1529 = vrot.slane %v852, %v1528
    %v1530 = vlaneseq
    %v1531 = vshrl.u32 %v1530, 7
    %v1532 = vsub.s32 3, %v1531
    %v1533 = vrot.slane %v852, %v1532
    %v1666 = vunpack.c.l.b16 %v723
    %v1667 = vunpack.c.h.b16 %v723
    %v1668 = vunpack.c.l.b16 %v724
    %v1669 = vunpack.c.h.b16 %v724
    %v1670 = vunpack.c.l.b16 %v725
    %v1671 = vunpack.c.h.b16 %v725
    %v1672 = vunpack.c.l.b16 %v726
    %v1673 = vunpack.c.h.b16 %v726
    %v1674 = vunpack.c.l.b16 %v727
    %v1675 = vunpack.c.h.b16 %v727
    %v1676 = vunpack.c.l.b16 %v728
    %v1677 = vunpack.c.h.b16 %v728
    %v1678 = vunpack.c.l.b16 %v729
    %v1679 = vunpack.c.h.b16 %v729
    %v1680 = vunpack.c.l.b16 %v730
    %v1681 = vunpack.c.h.b16 %v730
    %v1682 = vunpack.c.l.b16 %v731
    %v1683 = vunpack.c.h.b16 %v731
    %v1684 = vunpack.c.l.b16 %v732
    %v1685 = vunpack.c.h.b16 %v732
    %v1686 = vunpack.c.l.b16 %v733
    %v1687 = vunpack.c.h.b16 %v733
    %v1688 = vunpack.c.l.b16 %v734
    %v1689 = vunpack.c.h.b16 %v734
    %v1690 = vunpack.c.l.b16 %v735
    %v1691 = vunpack.c.h.b16 %v735
    %v1692 = vunpack.c.l.b16 %v736
    %v1693 = vunpack.c.h.b16 %v736
    %v1694 = vunpack.c.l.b16 %v737
    %v1695 = vunpack.c.h.b16 %v737
    %v1696 = vunpack.c.l.b16 %v738
    %v1697 = vunpack.c.h.b16 %v738
    %v1698 = vunpack.c.l.b16 %v739
    %v1699 = vunpack.c.h.b16 %v739
    %v1700 = vunpack.c.l.b16 %v740
    %v1701 = vunpack.c.h.b16 %v740
    %v1702 = vunpack.c.l.b16 %v741
    %v1703 = vunpack.c.h.b16 %v741
    %v1704 = vunpack.c.l.b16 %v742
    %v1705 = vunpack.c.h.b16 %v742
    %v1706 = vunpack.c.l.b16 %v743
    %v1707 = vunpack.c.h.b16 %v743
    %v1708 = vunpack.c.l.b16 %v744
    %v1709 = vunpack.c.h.b16 %v744
    %v1710 = vunpack.c.l.b16 %v745
    %v1711 = vunpack.c.h.b16 %v745
    %v1712 = vunpack.c.l.b16 %v746
    %v1713 = vunpack.c.h.b16 %v746
    %v1714 = vunpack.c.l.b16 %v747
    %v1715 = vunpack.c.h.b16 %v747
    %v1716 = vunpack.c.l.b16 %v748
    %v1717 = vunpack.c.h.b16 %v748
    %v1718 = vunpack.c.l.b16 %v749
    %v1719 = vunpack.c.h.b16 %v749
    %v1720 = vunpack.c.l.b16 %v750
    %v1721 = vunpack.c.h.b16 %v750
    %v1722 = vunpack.c.l.b16 %v751
    %v1723 = vunpack.c.h.b16 %v751
    %v1724 = vunpack.c.l.b16 %v752
    %v1725 = vunpack.c.h.b16 %v752
    %v1726 = vunpack.c.l.b16 %v753
    %v1727 = vunpack.c.h.b16 %v753
    %v1728 = vunpack.c.l.b16 %v754
    %v1729 = vunpack.c.h.b16 %v754
    %v1730 = vunpack.c.l.b16 %v755
    %v1731 = vunpack.c.h.b16 %v755
    %v1732 = vunpack.c.l.b16 %v756
    %v1733 = vunpack.c.h.b16 %v756
    %v1734 = vunpack.c.l.b16 %v757
    %v1735 = vunpack.c.h.b16 %v757
    %v1736 = vunpack.c.l.b16 %v758
    %v1737 = vunpack.c.h.b16 %v758
    %v1738 = vunpack.c.l.b16 %v759
    %v1739 = vunpack.c.h.b16 %v759
    %v1740 = vunpack.c.l.b16 %v760
    %v1741 = vunpack.c.h.b16 %v760
    %v1742 = vunpack.c.l.b16 %v761
    %v1743 = vunpack.c.h.b16 %v761
    %v1744 = vunpack.c.l.b16 %v762
    %v1745 = vunpack.c.h.b16 %v762
    %v1746 = vunpack.c.l.b16 %v763
    %v1747 = vunpack.c.h.b16 %v763
    %v1748 = vunpack.c.l.b16 %v764
    %v1749 = vunpack.c.h.b16 %v764
    %v1750 = vunpack.c.l.b16 %v765
    %v1751 = vunpack.c.h.b16 %v765
    %v1752 = vunpack.c.l.b16 %v766
    %v1753 = vunpack.c.h.b16 %v766
    %v1754 = vunpack.c.l.b16 %v767
    %v1755 = vunpack.c.h.b16 %v767
    %v1756 = vunpack.c.l.b16 %v768
    %v1757 = vunpack.c.h.b16 %v768
    %v1758 = vunpack.c.l.b16 %v769
    %v1759 = vunpack.c.h.b16 %v769
    %v1760 = vunpack.c.l.b16 %v770
    %v1761 = vunpack.c.h.b16 %v770
    %v1762 = vunpack.c.l.b16 %v771
    %v1763 = vunpack.c.h.b16 %v771
    %v1764 = vunpack.c.l.b16 %v772
    %v1765 = vunpack.c.h.b16 %v772
    %v1766 = vunpack.c.l.b16 %v773
    %v1767 = vunpack.c.h.b16 %v773
    %v1768 = vunpack.c.l.b16 %v774
    %v1769 = vunpack.c.h.b16 %v774
    %v1770 = vunpack.c.l.b16 %v775
    %v1771 = vunpack.c.h.b16 %v775
    %v1772 = vunpack.c.l.b16 %v776
    %v1773 = vunpack.c.h.b16 %v776
    %v1774 = vunpack.c.l.b16 %v777
    %v1775 = vunpack.c.h.b16 %v777
    %v1776 = vunpack.c.l.b16 %v778
    %v1777 = vunpack.c.h.b16 %v778
    %v1778 = vunpack.c.l.b16 %v779
    %v1779 = vunpack.c.h.b16 %v779
    %v1780 = vunpack.c.l.b16 %v780
    %v1781 = vunpack.c.h.b16 %v780
    %v1782 = vunpack.c.l.b16 %v781
    %v1783 = vunpack.c.h.b16 %v781
    %v1784 = vunpack.c.l.b16 %v782
    %v1785 = vunpack.c.h.b16 %v782
    %v1786 = vunpack.c.l.b16 %v783
    %v1787 = vunpack.c.h.b16 %v783
    %v1788 = vunpack.c.l.b16 %v784
    %v1789 = vunpack.c.h.b16 %v784
    %v1790 = vunpack.c.l.b16 %v785
    %v1791 = vunpack.c.h.b16 %v785
    %v1792 = vunpack.c.l.b16 %v786
    %v1793 = vunpack.c.h.b16 %v786
    %v1794 = vunpack.c.l.b16 %v787
    %v1795 = vunpack.c.h.b16 %v787
    %v1796 = vunpack.c.l.b16 %v788
    %v1797 = vunpack.c.h.b16 %v788
    %v1798 = vunpack.c.l.b16 %v789
    %v1799 = vunpack.c.h.b16 %v789
    %v1800 = vunpack.c.l.b16 %v790
    %v1801 = vunpack.c.h.b16 %v790
    %v1802 = vunpack.c.l.b16 %v791
    %v1803 = vunpack.c.h.b16 %v791
    %v1804 = vunpack.c.l.b16 %v792
    %v1805 = vunpack.c.h.b16 %v792
    %v1806 = vunpack.c.l.b16 %v793
    %v1807 = vunpack.c.h.b16 %v793
    %v1808 = vunpack.c.l.b16 %v794
    %v1809 = vunpack.c.h.b16 %v794
    %v1810 = vunpack.c.l.b16 %v795
    %v1811 = vunpack.c.h.b16 %v795
    %v1812 = vunpack.c.l.b16 %v796
    %v1813 = vunpack.c.h.b16 %v796
    %v1814 = vunpack.c.l.b16 %v797
    %v1815 = vunpack.c.h.b16 %v797
    %v1816 = vunpack.c.l.b16 %v798
    %v1817 = vunpack.c.h.b16 %v798
    %v1818 = vunpack.c.l.b16 %v799
    %v1819 = vunpack.c.h.b16 %v799
    %v1820 = vunpack.c.l.b16 %v800
    %v1821 = vunpack.c.h.b16 %v800
    %v1822 = vunpack.c.l.b16 %v801
    %v1823 = vunpack.c.h.b16 %v801
    %v1824 = vunpack.c.l.b16 %v802
    %v1825 = vunpack.c.h.b16 %v802
    %v1826 = vunpack.c.l.b16 %v803
    %v1827 = vunpack.c.h.b16 %v803
    %v1828 = vunpack.c.l.b16 %v804
    %v1829 = vunpack.c.h.b16 %v804
    %v1830 = vunpack.c.l.b16 %v805
    %v1831 = vunpack.c.h.b16 %v805
    %v1832 = vunpack.c.l.b16 %v806
    %v1833 = vunpack.c.h.b16 %v806
    %v1834 = vunpack.c.l.b16 %v807
    %v1835 = vunpack.c.h.b16 %v807
    %v1836 = vunpack.c.l.b16 %v808
    %v1837 = vunpack.c.h.b16 %v808
    %v1838 = vunpack.c.l.b16 %v809
    %v1839 = vunpack.c.h.b16 %v809
    %v1840 = vunpack.c.l.b16 %v810
    %v1841 = vunpack.c.h.b16 %v810
    %v1842 = vunpack.c.l.b16 %v811
    %v1843 = vunpack.c.h.b16 %v811
    %v1844 = vunpack.c.l.b16 %v812
    %v1845 = vunpack.c.h.b16 %v812
    %v1846 = vunpack.c.l.b16 %v813
    %v1847 = vunpack.c.h.b16 %v813
    %v1848 = vunpack.c.l.b16 %v814
    %v1849 = vunpack.c.h.b16 %v814
    %v1850 = vunpack.c.l.b16 %v815
    %v1851 = vunpack.c.h.b16 %v815
    %v1852 = vunpack.c.l.b16 %v816
    %v1853 = vunpack.c.h.b16 %v816
    %v1854 = vunpack.c.l.b16 %v817
    %v1855 = vunpack.c.h.b16 %v817
    %v1856 = vunpack.c.l.b16 %v818
    %v1857 = vunpack.c.h.b16 %v818
    %v1858 = vunpack.c.l.b16 %v819
    %v1859 = vunpack.c.h.b16 %v819
    %v1860 = vunpack.c.l.b16 %v820
    %v1861 = vunpack.c.h.b16 %v820
    %v1862 = vunpack.c.l.b16 %v821
    %v1863 = vunpack.c.h.b16 %v821
    %v1864 = vunpack.c.l.b16 %v822
    %v1865 = vunpack.c.h.b16 %v822
    %v1866 = vunpack.c.l.b16 %v823
    %v1867 = vunpack.c.h.b16 %v823
    %v1868 = vunpack.c.l.b16 %v824
    %v1869 = vunpack.c.h.b16 %v824
    %v1870 = vunpack.c.l.b16 %v825
    %v1871 = vunpack.c.h.b16 %v825
    %v1872 = vunpack.c.l.b16 %v826
    %v1873 = vunpack.c.h.b16 %v826
    %v1874 = vunpack.c.l.b16 %v827
    %v1875 = vunpack.c.h.b16 %v827
    %v1876 = vunpack.c.l.b16 %v828
    %v1877 = vunpack.c.h.b16 %v828
    %v1878 = vunpack.c.l.b16 %v829
    %v1879 = vunpack.c.h.b16 %v829
    %v1880 = vunpack.c.l.b16 %v830
    %v1881 = vunpack.c.h.b16 %v830
    %v1882 = vunpack.c.l.b16 %v831
    %v1883 = vunpack.c.h.b16 %v831
    %v1884 = vunpack.c.l.b16 %v832
    %v1885 = vunpack.c.h.b16 %v832
    %v1886 = vunpack.c.l.b16 %v833
    %v1887 = vunpack.c.h.b16 %v833
    %v1888 = vunpack.c.l.b16 %v834
    %v1889 = vunpack.c.h.b16 %v834
    %v1890 = vunpack.c.l.b16 %v835
    %v1891 = vunpack.c.h.b16 %v835
    %v1892 = vunpack.c.l.b16 %v836
    %v1893 = vunpack.c.h.b16 %v836
    %v1894 = vunpack.c.l.b16 %v837
    %v1895 = vunpack.c.h.b16 %v837
    %v1896 = vunpack.c.l.b16 %v838
    %v1897 = vunpack.c.h.b16 %v838
    %v1898 = vunpack.c.l.b16 %v839
    %v1899 = vunpack.c.h.b16 %v839
    %v1900 = vunpack.c.l.b16 %v840
    %v1901 = vunpack.c.h.b16 %v840
    %v1902 = vunpack.c.l.b16 %v841
    %v1903 = vunpack.c.h.b16 %v841
    %v1904 = vunpack.c.l.b16 %v842
    %v1905 = vunpack.c.h.b16 %v842
    %v1906 = vunpack.c.l.b16 %v843
    %v1907 = vunpack.c.h.b16 %v843
    %v1908 = vunpack.c.l.b16 %v844
    %v1909 = vunpack.c.h.b16 %v844
    %v1910 = vunpack.c.l.b16 %v845
    %v1911 = vunpack.c.h.b16 %v845
    %v1912 = vunpack.c.l.b16 %v846
    %v1913 = vunpack.c.h.b16 %v846
    %v1914 = vunpack.c.l.b16 %v847
    %v1915 = vunpack.c.h.b16 %v847
    %v1916 = vunpack.c.l.b16 %v848
    %v1917 = vunpack.c.h.b16 %v848
    %v1918 = vunpack.c.l.b16 %v849
    %v1919 = vunpack.c.h.b16 %v849
    %v1920 = vunpack.c.l.b16 %v850
    %v1921 = vunpack.c.h.b16 %v850
    %v1922 = vpack.c.b16 %v1670, %v1666
    %v1923 = vpack.c.b16 %v1671, %v1667
    %v1924 = vpack.c.b16 %v1672, %v1668
    %v1925 = vpack.c.b16 %v1673, %v1669
    %v1926 = vpack.c.b16 %v1678, %v1674
    %v1927 = vpack.c.b16 %v1679, %v1675
    %v1928 = vpack.c.b16 %v1680, %v1676
    %v1929 = vpack.c.b16 %v1681, %v1677
    %v1930 = vpack.c.b16 %v1686, %v1682
    %v1931 = vpack.c.b16 %v1687, %v1683
    %v1932 = vpack.c.b16 %v1688, %v1684
    %v1933 = vpack.c.b16 %v1689, %v1685
    %v1934 = vpack.c.b16 %v1694, %v1690
    %v1935 = vpack.c.b16 %v1695, %v1691
    %v1936 = vpack.c.b16 %v1696, %v1692
    %v1937 = vpack.c.b16 %v1697, %v1693
    %v1938 = vpack.c.b16 %v1702, %v1698
    %v1939 = vpack.c.b16 %v1703, %v1699
    %v1940 = vpack.c.b16 %v1704, %v1700
    %v1941 = vpack.c.b16 %v1705, %v1701
    %v1942 = vpack.c.b16 %v1710, %v1706
    %v1943 = vpack.c.b16 %v1711, %v1707
    %v1944 = vpack.c.b16 %v1712, %v1708
    %v1945 = vpack.c.b16 %v1713, %v1709
    %v1946 = vpack.c.b16 %v1718, %v1714
    %v1947 = vpack.c.b16 %v1719, %v1715
    %v1948 = vpack.c.b16 %v1720, %v1716
    %v1949 = vpack.c.b16 %v1721, %v1717
    %v1950 = vpack.c.b16 %v1726, %v1722
    %v1951 = vpack.c.b16 %v1727, %v1723
    %v1952 = vpack.c.b16 %v1728, %v1724
    %v1953 = vpack.c.b16 %v1729, %v1725
    %v1954 = vpack.c.b16 %v1734, %v1730
    %v1955 = vpack.c.b16 %v1735, %v1731
    %v1956 = vpack.c.b16 %v1736, %v1732
    %v1957 = vpack.c.b16 %v1737, %v1733
    %v1958 = vpack.c.b16 %v1742, %v1738
    %v1959 = vpack.c.b16 %v1743, %v1739
    %v1960 = vpack.c.b16 %v1744, %v1740
    %v1961 = vpack.c.b16 %v1745, %v1741
    %v1962 = vpack.c.b16 %v1750, %v1746
    %v1963 = vpack.c.b16 %v1751, %v1747
    %v1964 = vpack.c.b16 %v1752, %v1748
    %v1965 = vpack.c.b16 %v1753, %v1749
    %v1966 = vpack.c.b16 %v1758, %v1754
    %v1967 = vpack.c.b16 %v1759, %v1755
    %v1968 = vpack.c.b16 %v1760, %v1756
    %v1969 = vpack.c.b16 %v1761, %v1757
    %v1970 = vpack.c.b16 %v1766, %v1762
    %v1971 = vpack.c.b16 %v1767, %v1763
    %v1972 = vpack.c.b16 %v1768, %v1764
    %v1973 = vpack.c.b16 %v1769, %v1765
    %v1974 = vpack.c.b16 %v1774, %v1770
    %v1975 = vpack.c.b16 %v1775, %v1771
    %v1976 = vpack.c.b16 %v1776, %v1772
    %v1977 = vpack.c.b16 %v1777, %v1773
    %v1978 = vpack.c.b16 %v1782, %v1778
    %v1979 = vpack.c.b16 %v1783, %v1779
    %v1980 = vpack.c.b16 %v1784, %v1780
    %v1981 = vpack.c.b16 %v1785, %v1781
    %v1982 = vpack.c.b16 %v1790, %v1786
    %v1983 = vpack.c.b16 %v1791, %v1787
    %v1984 = vpack.c.b16 %v1792, %v1788
    %v1985 = vpack.c.b16 %v1793, %v1789
    %v1986 = vpack.c.b16 %v1798, %v1794
    %v1987 = vpack.c.b16 %v1799, %v1795
    %v1988 = vpack.c.b16 %v1800, %v1796
    %v1989 = vpack.c.b16 %v1801, %v1797
    %v1990 = vpack.c.b16 %v1806, %v1802
    %v1991 = vpack.c.b16 %v1807, %v1803
    %v1992 = vpack.c.b16 %v1808, %v1804
    %v1993 = vpack.c.b16 %v1809, %v1805
    %v1994 = vpack.c.b16 %v1814, %v1810
    %v1995 = vpack.c.b16 %v1815, %v1811
    %v1996 = vpack.c.b16 %v1816, %v1812
    %v1997 = vpack.c.b16 %v1817, %v1813
    %v1998 = vpack.c.b16 %v1822, %v1818
    %v1999 = vpack.c.b16 %v1823, %v1819
    %v2000 = vpack.c.b16 %v1824, %v1820
    %v2001 = vpack.c.b16 %v1825, %v1821
    %v2002 = vpack.c.b16 %v1830, %v1826
    %v2003 = vpack.c.b16 %v1831, %v1827
    %v2004 = vpack.c.b16 %v1832, %v1828
    %v2005 = vpack.c.b16 %v1833, %v1829
    %v2006 = vpack.c.b16 %v1838, %v1834
    %v2007 = vpack.c.b16 %v1839, %v1835
    %v2008 = vpack.c.b16 %v1840, %v1836
    %v2009 = vpack.c.b16 %v1841, %v1837
    %v2010 = vpack.c.b16 %v1846, %v1842
    %v2011 = vpack.c.b16 %v1847, %v1843
    %v2012 = vpack.c.b16 %v1848, %v1844
    %v2013 = vpack.c.b16 %v1849, %v1845
    %v2014 = vpack.c.b16 %v1854, %v1850
    %v2015 = vpack.c.b16 %v1855, %v1851
    %v2016 = vpack.c.b16 %v1856, %v1852
    %v2017 = vpack.c.b16 %v1857, %v1853
    %v2018 = vpack.c.b16 %v1862, %v1858
    %v2019 = vpack.c.b16 %v1863, %v1859
    %v2020 = vpack.c.b16 %v1864, %v1860
    %v2021 = vpack.c.b16 %v1865, %v1861
    %v2022 = vpack.c.b16 %v1870, %v1866
    %v2023 = vpack.c.b16 %v1871, %v1867
    %v2024 = vpack.c.b16 %v1872, %v1868
    %v2025 = vpack.c.b16 %v1873, %v1869
    %v2026 = vpack.c.b16 %v1878, %v1874
    %v2027 = vpack.c.b16 %v1879, %v1875
    %v2028 = vpack.c.b16 %v1880, %v1876
    %v2029 = vpack.c.b16 %v1881, %v1877
    %v2030 = vpack.c.b16 %v1886, %v1882
    %v2031 = vpack.c.b16 %v1887, %v1883
    %v2032 = vpack.c.b16 %v1888, %v1884
    %v2033 = vpack.c.b16 %v1889, %v1885
    %v2034 = vpack.c.b16 %v1894, %v1890
    %v2035 = vpack.c.b16 %v1895, %v1891
    %v2036 = vpack.c.b16 %v1896, %v1892
    %v2037 = vpack.c.b16 %v1897, %v1893
    %v2038 = vpack.c.b16 %v1902, %v1898
    %v2039 = vpack.c.b16 %v1903, %v1899
    %v2040 = vpack.c.b16 %v1904, %v1900
    %v2041 = vpack.c.b16 %v1905, %v1901
    %v2042 = vpack.c.b16 %v1910, %v1906
    %v2043 = vpack.c.b16 %v1911, %v1907
    %v2044 = vpack.c.b16 %v1912, %v1908
    %v2045 = vpack.c.b16 %v1913, %v1909
    %v2046 = vpack.c.b16 %v1918, %v1914
    %v2047 = vpack.c.b16 %v1919, %v1915
    %v2048 = vpack.c.b16 %v1920, %v1916
    %v2049 = vpack.c.b16 %v1921, %v1917
    %2178 = vmatprep.subr.bf16.mxu0 %v1923
    %2179 = vmatpush1.bf16.msra.mxu0 %v1922
    %2180 = vmatprep.subr.bf16.mxu0 %v1927
    %2181 = vmatpush1.bf16.msra.mxu0 %v1926
    %2182 = vmatprep.subr.bf16.mxu0 %v1931
    %2183 = vmatpush1.bf16.msra.mxu0 %v1930
    %2184 = vmatprep.subr.bf16.mxu0 %v1935
    %2185 = vmatpush1.bf16.msra.mxu0 %v1934
    %2186 = vmatprep.subr.bf16.mxu0 %v1939
    %2187 = vmatpush1.bf16.msra.mxu0 %v1938
    %2188 = vmatprep.subr.bf16.mxu0 %v1943
    %2189 = vmatpush1.bf16.msra.mxu0 %v1942
    %2190 = vmatprep.subr.bf16.mxu0 %v1947
    %2191 = vmatpush1.bf16.msra.mxu0 %v1946
    %2192 = vmatprep.subr.bf16.mxu0 %v1951
    %2193 = vmatpush1.bf16.msra.mxu0 %v1950
    %2194 = vmatprep.subr.bf16.mxu0 %v1955
    %2195 = vmatpush1.bf16.msra.mxu0 %v1954
    %2196 = vmatprep.subr.bf16.mxu0 %v1959
    %2197 = vmatpush1.bf16.msra.mxu0 %v1958
    %2198 = vmatprep.subr.bf16.mxu0 %v1963
    %2199 = vmatpush1.bf16.msra.mxu0 %v1962
    %2200 = vmatprep.subr.bf16.mxu0 %v1967
    %2201 = vmatpush1.bf16.msra.mxu0 %v1966
    %2202 = vmatprep.subr.bf16.mxu0 %v1971
    %2203 = vmatpush1.bf16.msra.mxu0 %v1970
    %2204 = vmatprep.subr.bf16.mxu0 %v1975
    %2205 = vmatpush1.bf16.msra.mxu0 %v1974
    %2206 = vmatprep.subr.bf16.mxu0 %v1979
    %2207 = vmatpush1.bf16.msra.mxu0 %v1978
    %2208 = vmatprep.subr.bf16.mxu0 %v1983
    %2209 = vmatpush1.bf16.msra.mxu0 %v1982
    %2210 = vmatprep.mubr.bf16.mxu0 %v1514
    %2211 = vmatmul.mubr.bf16.gmra.mrb[0].mxu0 %v1513
    %v2212 = vpop.f32.mrb[0].mxu0
    %v2213 = vadd.f32 %v1521, %v2212
    %v2214 = vpop.f32.mrb[0].mxu0
    %v2215 = vadd.f32 %v1525, %v2214
    %v2216 = vpop.f32.mrb[0].mxu0
    %v2217 = vadd.f32 %v1521, %v2216
    %v2218 = vpop.f32.mrb[0].mxu0
    %v2219 = vadd.f32 %v1525, %v2218
    %2220 = vdwg.mxu0
    %2221 = vmatprep.subr.bf16.mxu0 %v1987
    %2222 = vmatpush1.bf16.msra.mxu0 %v1986
    %2223 = vmatprep.subr.bf16.mxu0 %v1991
    %2224 = vmatpush1.bf16.msra.mxu0 %v1990
    %2225 = vmatprep.subr.bf16.mxu0 %v1995
    %2226 = vmatpush1.bf16.msra.mxu0 %v1994
    %2227 = vmatprep.subr.bf16.mxu0 %v1999
    %2228 = vmatpush1.bf16.msra.mxu0 %v1998
    %2229 = vmatprep.subr.bf16.mxu0 %v2003
    %2230 = vmatpush1.bf16.msra.mxu0 %v2002
    %2231 = vmatprep.subr.bf16.mxu0 %v2007
    %2232 = vmatpush1.bf16.msra.mxu0 %v2006
    %2233 = vmatprep.subr.bf16.mxu0 %v2011
    %2234 = vmatpush1.bf16.msra.mxu0 %v2010
    %2235 = vmatprep.subr.bf16.mxu0 %v2015
    %2236 = vmatpush1.bf16.msra.mxu0 %v2014
    %2237 = vmatprep.subr.bf16.mxu0 %v2019
    %2238 = vmatpush1.bf16.msra.mxu0 %v2018
    %2239 = vmatprep.subr.bf16.mxu0 %v2023
    %2240 = vmatpush1.bf16.msra.mxu0 %v2022
    %2241 = vmatprep.subr.bf16.mxu0 %v2027
    %2242 = vmatpush1.bf16.msra.mxu0 %v2026
    %2243 = vmatprep.subr.bf16.mxu0 %v2031
    %2244 = vmatpush1.bf16.msra.mxu0 %v2030
    %2245 = vmatprep.subr.bf16.mxu0 %v2035
    %2246 = vmatpush1.bf16.msra.mxu0 %v2034
    %2247 = vmatprep.subr.bf16.mxu0 %v2039
    %2248 = vmatpush1.bf16.msra.mxu0 %v2038
    %2249 = vmatprep.subr.bf16.mxu0 %v2043
    %2250 = vmatpush1.bf16.msra.mxu0 %v2042
    %2251 = vmatprep.subr.bf16.mxu0 %v2047
    %2252 = vmatpush1.bf16.msra.mxu0 %v2046
    %2253 = vmatprep.mubr.bf16.mxu0 %v1516
    %2254 = vmatmul.mubr.bf16.gmra.mrb[0].mxu0 %v1515
    %v2255 = vpop.f32.mrb[0].mxu0
    %v2256 = vadd.f32 %v2213, %v2255
    %v2257 = vpop.f32.mrb[0].mxu0
    %v2258 = vadd.f32 %v2215, %v2257
    %v2259 = vpop.f32.mrb[0].mxu0
    %v2260 = vadd.f32 %v2217, %v2259
    %v2261 = vpop.f32.mrb[0].mxu0
    %v2262 = vadd.f32 %v2219, %v2261
    %2263 = vdwg.mxu0
    %2264 = vmatprep.subr.bf16.mxu0 %v1925
    %2265 = vmatpush1.bf16.msra.mxu0 %v1924
    %2266 = vmatprep.subr.bf16.mxu0 %v1929
    %2267 = vmatpush1.bf16.msra.mxu0 %v1928
    %2268 = vmatprep.subr.bf16.mxu0 %v1933
    %2269 = vmatpush1.bf16.msra.mxu0 %v1932
    %2270 = vmatprep.subr.bf16.mxu0 %v1937
    %2271 = vmatpush1.bf16.msra.mxu0 %v1936
    %2272 = vmatprep.subr.bf16.mxu0 %v1941
    %2273 = vmatpush1.bf16.msra.mxu0 %v1940
    %2274 = vmatprep.subr.bf16.mxu0 %v1945
    %2275 = vmatpush1.bf16.msra.mxu0 %v1944
    %2276 = vmatprep.subr.bf16.mxu0 %v1949
    %2277 = vmatpush1.bf16.msra.mxu0 %v1948
    %2278 = vmatprep.subr.bf16.mxu0 %v1953
    %2279 = vmatpush1.bf16.msra.mxu0 %v1952
    %2280 = vmatprep.subr.bf16.mxu0 %v1957
    %2281 = vmatpush1.bf16.msra.mxu0 %v1956
    %2282 = vmatprep.subr.bf16.mxu0 %v1961
    %2283 = vmatpush1.bf16.msra.mxu0 %v1960
    %2284 = vmatprep.subr.bf16.mxu0 %v1965
    %2285 = vmatpush1.bf16.msra.mxu0 %v1964
    %2286 = vmatprep.subr.bf16.mxu0 %v1969
    %2287 = vmatpush1.bf16.msra.mxu0 %v1968
    %2288 = vmatprep.subr.bf16.mxu0 %v1973
    %2289 = vmatpush1.bf16.msra.mxu0 %v1972
    %2290 = vmatprep.subr.bf16.mxu0 %v1977
    %2291 = vmatpush1.bf16.msra.mxu0 %v1976
    %2292 = vmatprep.subr.bf16.mxu0 %v1981
    %2293 = vmatpush1.bf16.msra.mxu0 %v1980
    %2294 = vmatprep.subr.bf16.mxu0 %v1985
    %2295 = vmatpush1.bf16.msra.mxu0 %v1984
    %2296 = vmatprep.mubr.bf16.mxu0 %v1514
    %2297 = vmatmul.mubr.bf16.gmra.mrb[0].mxu0 %v1513
    %v2298 = vpop.f32.mrb[0].mxu0
    %v2299 = vadd.f32 %v1529, %v2298
    %v2300 = vpop.f32.mrb[0].mxu0
    %v2301 = vadd.f32 %v1533, %v2300
    %v2302 = vpop.f32.mrb[0].mxu0
    %v2303 = vadd.f32 %v1529, %v2302
    %v2304 = vpop.f32.mrb[0].mxu0
    %v2305 = vadd.f32 %v1533, %v2304
    %2306 = vdwg.mxu0
    %2307 = vmatprep.subr.bf16.mxu0 %v1989
    %2308 = vmatpush1.bf16.msra.mxu0 %v1988
    %2309 = vmatprep.subr.bf16.mxu0 %v1993
    %2310 = vmatpush1.bf16.msra.mxu0 %v1992
    %2311 = vmatprep.subr.bf16.mxu0 %v1997
    %2312 = vmatpush1.bf16.msra.mxu0 %v1996
    %2313 = vmatprep.subr.bf16.mxu0 %v2001
    %2314 = vmatpush1.bf16.msra.mxu0 %v2000
    %2315 = vmatprep.subr.bf16.mxu0 %v2005
    %2316 = vmatpush1.bf16.msra.mxu0 %v2004
    %2317 = vmatprep.subr.bf16.mxu0 %v2009
    %2318 = vmatpush1.bf16.msra.mxu0 %v2008
    %2319 = vmatprep.subr.bf16.mxu0 %v2013
    %2320 = vmatpush1.bf16.msra.mxu0 %v2012
    %2321 = vmatprep.subr.bf16.mxu0 %v2017
    %2322 = vmatpush1.bf16.msra.mxu0 %v2016
    %2323 = vmatprep.subr.bf16.mxu0 %v2021
    %2324 = vmatpush1.bf16.msra.mxu0 %v2020
    %2325 = vmatprep.subr.bf16.mxu0 %v2025
    %2326 = vmatpush1.bf16.msra.mxu0 %v2024
    %2327 = vmatprep.subr.bf16.mxu0 %v2029
    %2328 = vmatpush1.bf16.msra.mxu0 %v2028
    %2329 = vmatprep.subr.bf16.mxu0 %v2033
    %2330 = vmatpush1.bf16.msra.mxu0 %v2032
    %2331 = vmatprep.subr.bf16.mxu0 %v2037
    %2332 = vmatpush1.bf16.msra.mxu0 %v2036
    %2333 = vmatprep.subr.bf16.mxu0 %v2041
    %2334 = vmatpush1.bf16.msra.mxu0 %v2040
    %2335 = vmatprep.subr.bf16.mxu0 %v2045
    %2336 = vmatpush1.bf16.msra.mxu0 %v2044
    %2337 = vmatprep.subr.bf16.mxu0 %v2049
    %2338 = vmatpush1.bf16.msra.mxu0 %v2048
    %2339 = vmatprep.mubr.bf16.mxu0 %v1516
    %2340 = vmatmul.mubr.bf16.gmra.mrb[0].mxu0 %v1515
    %v2341 = vpop.f32.mrb[0].mxu0
    %v2342 = vadd.f32 %v2299, %v2341
    %v2343 = vpop.f32.mrb[0].mxu0
    %v2344 = vadd.f32 %v2301, %v2343
    %v2345 = vpop.f32.mrb[0].mxu0
    %v2346 = vadd.f32 %v2303, %v2345
    %v2347 = vpop.f32.mrb[0].mxu0
    %v2348 = vadd.f32 %v2305, %v2347
    %2349 = vdwg.mxu0
    %v2350 = vmax.f32 %v2256, 0.0
    %v2351 = vmax.f32 %v2258, 0.0
    %v2352 = vmax.f32 %v2342, 0.0
    %v2353 = vmax.f32 %v2344, 0.0
    %v2354 = vmax.f32 %v2260, 0.0
    %v2355 = vmax.f32 %v2262, 0.0
    %v2356 = vmax.f32 %v2346, 0.0
    %v2357 = vmax.f32 %v2348, 0.0
    %v2358 = vld [vmem:[#allocation10] sm:$0xff]
    %v2359 = vld [vmem:[#allocation10 + $0x8] sm:$0xff]
    %v2360 = vld [vmem:[#allocation10 + $0x10] sm:$0xff]
    %v2361 = vld [vmem:[#allocation10 + $0x18] sm:$0xff]
    %v2362 = vld [vmem:[#allocation10 + $0x20] sm:$0xff]
    %v2363 = vld [vmem:[#allocation10 + $0x28] sm:$0xff]
    %v2364 = vld [vmem:[#allocation10 + $0x30] sm:$0xff]
    %v2365 = vld [vmem:[#allocation10 + $0x38] sm:$0xff]
    %v2366 = vld [vmem:[#allocation10 + $0x40] sm:$0xff]
    %v2367 = vld [vmem:[#allocation10 + $0x48] sm:$0xff]
    %v2368 = vld [vmem:[#allocation10 + $0x50] sm:$0xff]
    %v2369 = vld [vmem:[#allocation10 + $0x58] sm:$0xff]
    %v2370 = vld [vmem:[#allocation10 + $0x60] sm:$0xff]
    %v2371 = vld [vmem:[#allocation10 + $0x68] sm:$0xff]
    %v2372 = vld [vmem:[#allocation10 + $0x70] sm:$0xff]
    %v2373 = vld [vmem:[#allocation10 + $0x78] sm:$0xff]
    %v2374 = vld [vmem:[#allocation10 + $0x80] sm:$0xff]
    %v2375 = vld [vmem:[#allocation10 + $0x88] sm:$0xff]
    %v2376 = vld [vmem:[#allocation10 + $0x90] sm:$0xff]
    %v2377 = vld [vmem:[#allocation10 + $0x98] sm:$0xff]
    %v2378 = vld [vmem:[#allocation10 + $0xa0] sm:$0xff]
    %v2379 = vld [vmem:[#allocation10 + $0xa8] sm:$0xff]
    %v2380 = vld [vmem:[#allocation10 + $0xb0] sm:$0xff]
    %v2381 = vld [vmem:[#allocation10 + $0xb8] sm:$0xff]
    %v2382 = vld [vmem:[#allocation10 + $0xc0] sm:$0xff]
    %v2383 = vld [vmem:[#allocation10 + $0xc8] sm:$0xff]
    %v2384 = vld [vmem:[#allocation10 + $0xd0] sm:$0xff]
    %v2385 = vld [vmem:[#allocation10 + $0xd8] sm:$0xff]
    %v2386 = vld [vmem:[#allocation10 + $0xe0] sm:$0xff]
    %v2387 = vld [vmem:[#allocation10 + $0xe8] sm:$0xff]
    %v2388 = vld [vmem:[#allocation10 + $0xf0] sm:$0xff]
    %v2389 = vld [vmem:[#allocation10 + $0xf8] sm:$0xff]
    %v2390 = vld [vmem:[#allocation10 + $0x100] sm:$0xff]
    %v2391 = vld [vmem:[#allocation10 + $0x108] sm:$0xff]
    %v2392 = vld [vmem:[#allocation10 + $0x110] sm:$0xff]
    %v2393 = vld [vmem:[#allocation10 + $0x118] sm:$0xff]
    %v2394 = vld [vmem:[#allocation10 + $0x120] sm:$0xff]
    %v2395 = vld [vmem:[#allocation10 + $0x128] sm:$0xff]
    %v2396 = vld [vmem:[#allocation10 + $0x130] sm:$0xff]
    %v2397 = vld [vmem:[#allocation10 + $0x138] sm:$0xff]
    %v2398 = vld [vmem:[#allocation10 + $0x140] sm:$0xff]
    %v2399 = vld [vmem:[#allocation10 + $0x148] sm:$0xff]
    %v2400 = vld [vmem:[#allocation10 + $0x150] sm:$0xff]
    %v2401 = vld [vmem:[#allocation10 + $0x158] sm:$0xff]
    %v2402 = vld [vmem:[#allocation10 + $0x160] sm:$0xff]
    %v2403 = vld [vmem:[#allocation10 + $0x168] sm:$0xff]
    %v2404 = vld [vmem:[#allocation10 + $0x170] sm:$0xff]
    %v2405 = vld [vmem:[#allocation10 + $0x178] sm:$0xff]
    %v2406 = vld [vmem:[#allocation10 + $0x180] sm:$0xff]
    %v2407 = vld [vmem:[#allocation10 + $0x188] sm:$0xff]
    %v2408 = vld [vmem:[#allocation10 + $0x190] sm:$0xff]
    %v2409 = vld [vmem:[#allocation10 + $0x198] sm:$0xff]
    %v2410 = vld [vmem:[#allocation10 + $0x1a0] sm:$0xff]
    %v2411 = vld [vmem:[#allocation10 + $0x1a8] sm:$0xff]
    %v2412 = vld [vmem:[#allocation10 + $0x1b0] sm:$0xff]
    %v2413 = vld [vmem:[#allocation10 + $0x1b8] sm:$0xff]
    %v2414 = vld [vmem:[#allocation10 + $0x1c0] sm:$0xff]
    %v2415 = vld [vmem:[#allocation10 + $0x1c8] sm:$0xff]
    %v2416 = vld [vmem:[#allocation10 + $0x1d0] sm:$0xff]
    %v2417 = vld [vmem:[#allocation10 + $0x1d8] sm:$0xff]
    %v2418 = vld [vmem:[#allocation10 + $0x1e0] sm:$0xff]
    %v2419 = vld [vmem:[#allocation10 + $0x1e8] sm:$0xff]
    %v2420 = vld [vmem:[#allocation10 + $0x1f0] sm:$0xff]
    %v2421 = vld [vmem:[#allocation10 + $0x1f8] sm:$0xff]
    %v2422 = vld [vmem:[#allocation10 + $0x200] sm:$0xff]
    %v2423 = vld [vmem:[#allocation10 + $0x208] sm:$0xff]
    %v2424 = vld [vmem:[#allocation10 + $0x210] sm:$0xff]
    %v2425 = vld [vmem:[#allocation10 + $0x218] sm:$0xff]
    %v2426 = vld [vmem:[#allocation10 + $0x220] sm:$0xff]
    %v2427 = vld [vmem:[#allocation10 + $0x228] sm:$0xff]
    %v2428 = vld [vmem:[#allocation10 + $0x230] sm:$0xff]
    %v2429 = vld [vmem:[#allocation10 + $0x238] sm:$0xff]
    %v2430 = vld [vmem:[#allocation10 + $0x240] sm:$0xff]
    %v2431 = vld [vmem:[#allocation10 + $0x248] sm:$0xff]
    %v2432 = vld [vmem:[#allocation10 + $0x250] sm:$0xff]
    %v2433 = vld [vmem:[#allocation10 + $0x258] sm:$0xff]
    %v2434 = vld [vmem:[#allocation10 + $0x260] sm:$0xff]
    %v2435 = vld [vmem:[#allocation10 + $0x268] sm:$0xff]
    %v2436 = vld [vmem:[#allocation10 + $0x270] sm:$0xff]
    %v2437 = vld [vmem:[#allocation10 + $0x278] sm:$0xff]
    %v2438 = vld [vmem:[#allocation10 + $0x280] sm:$0xff]
    %v2439 = vld [vmem:[#allocation10 + $0x288] sm:$0xff]
    %v2440 = vld [vmem:[#allocation10 + $0x290] sm:$0xff]
    %v2441 = vld [vmem:[#allocation10 + $0x298] sm:$0xff]
    %v2442 = vld [vmem:[#allocation10 + $0x2a0] sm:$0xff]
    %v2443 = vld [vmem:[#allocation10 + $0x2a8] sm:$0xff]
    %v2444 = vld [vmem:[#allocation10 + $0x2b0] sm:$0xff]
    %v2445 = vld [vmem:[#allocation10 + $0x2b8] sm:$0xff]
    %v2446 = vld [vmem:[#allocation10 + $0x2c0] sm:$0xff]
    %v2447 = vld [vmem:[#allocation10 + $0x2c8] sm:$0xff]
    %v2448 = vld [vmem:[#allocation10 + $0x2d0] sm:$0xff]
    %v2449 = vld [vmem:[#allocation10 + $0x2d8] sm:$0xff]
    %v2450 = vld [vmem:[#allocation10 + $0x2e0] sm:$0xff]
    %v2451 = vld [vmem:[#allocation10 + $0x2e8] sm:$0xff]
    %v2452 = vld [vmem:[#allocation10 + $0x2f0] sm:$0xff]
    %v2453 = vld [vmem:[#allocation10 + $0x2f8] sm:$0xff]
    %v2454 = vld [vmem:[#allocation10 + $0x300] sm:$0xff]
    %v2455 = vld [vmem:[#allocation10 + $0x308] sm:$0xff]
    %v2456 = vld [vmem:[#allocation10 + $0x310] sm:$0xff]
    %v2457 = vld [vmem:[#allocation10 + $0x318] sm:$0xff]
    %v2458 = vld [vmem:[#allocation10 + $0x320] sm:$0xff]
    %v2459 = vld [vmem:[#allocation10 + $0x328] sm:$0xff]
    %v2460 = vld [vmem:[#allocation10 + $0x330] sm:$0xff]
    %v2461 = vld [vmem:[#allocation10 + $0x338] sm:$0xff]
    %v2462 = vld [vmem:[#allocation10 + $0x340] sm:$0xff]
    %v2463 = vld [vmem:[#allocation10 + $0x348] sm:$0xff]
    %v2464 = vld [vmem:[#allocation10 + $0x350] sm:$0xff]
    %v2465 = vld [vmem:[#allocation10 + $0x358] sm:$0xff]
    %v2466 = vld [vmem:[#allocation10 + $0x360] sm:$0xff]
    %v2467 = vld [vmem:[#allocation10 + $0x368] sm:$0xff]
    %v2468 = vld [vmem:[#allocation10 + $0x370] sm:$0xff]
    %v2469 = vld [vmem:[#allocation10 + $0x378] sm:$0xff]
    %v2470 = vld [vmem:[#allocation10 + $0x380] sm:$0xff]
    %v2471 = vld [vmem:[#allocation10 + $0x388] sm:$0xff]
    %v2472 = vld [vmem:[#allocation10 + $0x390] sm:$0xff]
    %v2473 = vld [vmem:[#allocation10 + $0x398] sm:$0xff]
    %v2474 = vld [vmem:[#allocation10 + $0x3a0] sm:$0xff]
    %v2475 = vld [vmem:[#allocation10 + $0x3a8] sm:$0xff]
    %v2476 = vld [vmem:[#allocation10 + $0x3b0] sm:$0xff]
    %v2477 = vld [vmem:[#allocation10 + $0x3b8] sm:$0xff]
    %v2478 = vld [vmem:[#allocation10 + $0x3c0] sm:$0xff]
    %v2479 = vld [vmem:[#allocation10 + $0x3c8] sm:$0xff]
    %v2480 = vld [vmem:[#allocation10 + $0x3d0] sm:$0xff]
    %v2481 = vld [vmem:[#allocation10 + $0x3d8] sm:$0xff]
    %v2482 = vld [vmem:[#allocation10 + $0x3e0] sm:$0xff]
    %v2483 = vld [vmem:[#allocation10 + $0x3e8] sm:$0xff]
    %v2484 = vld [vmem:[#allocation10 + $0x3f0] sm:$0xff]
    %v2485 = vld [vmem:[#allocation10 + $0x3f8] sm:$0xff]
    %s2486 = scalar_lea.vmem %s3, 3
    %v2487 = vld [vmem:[%s2486] ss:$8 sm:$0xf]
    %v2488 = vmax.f32 %v2350, 0.0
    %v2489 = vmax.f32 %v2351, 0.0
    %v2490 = vmax.f32 %v2352, 0.0
    %v2491 = vmax.f32 %v2353, 0.0
    %v2492 = vmax.f32 %v2354, 0.0
    %v2493 = vmax.f32 %v2355, 0.0
    %v2494 = vmax.f32 %v2356, 0.0
    %v2495 = vmax.f32 %v2357, 0.0
    %v2496 = vadd.f32 %v2488, 1e-07
    %v2497 = vadd.f32 %v2489, 1e-07
    %v2498 = vadd.f32 %v2490, 1e-07
    %v2499 = vadd.f32 %v2491, 1e-07
    %v2500 = vadd.f32 %v2492, 1e-07
    %v2501 = vadd.f32 %v2493, 1e-07
    %v2502 = vadd.f32 %v2494, 1e-07
    %v2503 = vadd.f32 %v2495, 1e-07
    %v2504 = vmax.f32 %v2496, 1e-07
    %v2505 = vmax.f32 %v2497, 1e-07
    %v2506 = vmax.f32 %v2498, 1e-07
    %v2507 = vmax.f32 %v2499, 1e-07
    %v2508 = vmax.f32 %v2500, 1e-07
    %v2509 = vmax.f32 %v2501, 1e-07
    %v2510 = vmax.f32 %v2502, 1e-07
    %v2511 = vmax.f32 %v2503, 1e-07
    %v2512 = vmin.f32 %v2504, 10000.0
    %v2513 = vmin.f32 %v2505, 10000.0
    %v2514 = vmin.f32 %v2506, 10000.0
    %v2515 = vmin.f32 %v2507, 10000.0
    %v2516 = vmin.f32 %v2508, 10000.0
    %v2517 = vmin.f32 %v2509, 10000.0
    %v2518 = vmin.f32 %v2510, 10000.0
    %v2519 = vmin.f32 %v2511, 10000.0
    %v2520 = vpack.c.bf16 %v2516, %v2512
    %v2521 = vpack.c.bf16 %v2517, %v2513
    %v2522 = vpack.c.bf16 %v2518, %v2514
    %v2523 = vpack.c.bf16 %v2519, %v2515
    %2524 = vmatprep.subr.bf16.mxu0 %v2521
    %2525 = vmatpush1.bf16.msra.mxu0 %v2520
    %2526 = vmatprep.subr.bf16.mxu0 0
    %2527 = vmatpush1.bf16.msra.mxu0 0
    %2528 = vmatprep.subr.bf16.mxu0 0
    %2529 = vmatpush1.bf16.msra.mxu0 0
    %2530 = vmatprep.subr.bf16.mxu0 0
    %2531 = vmatpush1.bf16.msra.mxu0 0
    %2532 = vmatprep.subr.bf16.mxu0 0
    %2533 = vmatpush1.bf16.msra.mxu0 0
    %2534 = vmatprep.subr.bf16.mxu0 0
    %2535 = vmatpush1.bf16.msra.mxu0 0
    %2536 = vmatprep.subr.bf16.mxu0 0
    %2537 = vmatpush1.bf16.msra.mxu0 0
    %2538 = vmatprep.subr.bf16.mxu0 0
    %2539 = vmatpush1.bf16.msra.mxu0 0
    %2540 = vmatprep.subr.bf16.mxu0 0
    %2541 = vmatpush1.bf16.msra.mxu0 0
    %2542 = vmatprep.subr.bf16.mxu0 0
    %2543 = vmatpush1.bf16.msra.mxu0 0
    %2544 = vmatprep.subr.bf16.mxu0 0
    %2545 = vmatpush1.bf16.msra.mxu0 0
    %2546 = vmatprep.subr.bf16.mxu0 0
    %2547 = vmatpush1.bf16.msra.mxu0 0
    %2548 = vmatprep.subr.bf16.mxu0 0
    %2549 = vmatpush1.bf16.msra.mxu0 0
    %2550 = vmatprep.subr.bf16.mxu0 0
    %2551 = vmatpush1.bf16.msra.mxu0 0
    %2552 = vmatprep.subr.bf16.mxu0 0
    %2553 = vmatpush1.bf16.msra.mxu0 0
    %2554 = vmatprep.subr.bf16.mxu0 0
    %2555 = vmatpush1.bf16.msra.mxu0 0
    %2556 = vmatprep.mubr.bf16.mxu0 0
    %2557 = vmatmul.mubr.bf16.gmra.mrb[0].mxu0 %v896
    %v2558 = vpop.f32.mrb[0].mxu0
    %v2559 = vadd.f32 0.0, %v2558
    %v2560 = vpop.f32.mrb[0].mxu0
    %v2561 = vadd.f32 0.0, %v2560
    %v2562 = vpop.f32.mrb[0].mxu0
    %v2563 = vadd.f32 0.0, %v2562
    %v2564 = vpop.f32.mrb[0].mxu0
    %v2565 = vadd.f32 0.0, %v2564
    %2566 = vdwg.mxu0
    %2567 = vmatprep.subr.bf16.mxu0 %v2523
    %2568 = vmatpush1.bf16.msra.mxu0 %v2522
    %2569 = vmatprep.subr.bf16.mxu0 0
    %2570 = vmatpush1.bf16.msra.mxu0 0
    %2571 = vmatprep.subr.bf16.mxu0 0
    %2572 = vmatpush1.bf16.msra.mxu0 0
    %2573 = vmatprep.subr.bf16.mxu0 0
    %2574 = vmatpush1.bf16.msra.mxu0 0
    %2575 = vmatprep.subr.bf16.mxu0 0
    %2576 = vmatpush1.bf16.msra.mxu0 0
    %2577 = vmatprep.subr.bf16.mxu0 0
    %2578 = vmatpush1.bf16.msra.mxu0 0
    %2579 = vmatprep.subr.bf16.mxu0 0
    %2580 = vmatpush1.bf16.msra.mxu0 0
    %2581 = vmatprep.subr.bf16.mxu0 0
    %2582 = vmatpush1.bf16.msra.mxu0 0
    %2583 = vmatprep.subr.bf16.mxu0 0
    %2584 = vmatpush1.bf16.msra.mxu0 0
    %2585 = vmatprep.subr.bf16.mxu0 0
    %2586 = vmatpush1.bf16.msra.mxu0 0
    %2587 = vmatprep.subr.bf16.mxu0 0
    %2588 = vmatpush1.bf16.msra.mxu0 0
    %2589 = vmatprep.subr.bf16.mxu0 0
    %2590 = vmatpush1.bf16.msra.mxu0 0
    %2591 = vmatprep.subr.bf16.mxu0 0
    %2592 = vmatpush1.bf16.msra.mxu0 0
    %2593 = vmatprep.subr.bf16.mxu0 0
    %2594 = vmatpush1.bf16.msra.mxu0 0
    %2595 = vmatprep.subr.bf16.mxu0 0
    %2596 = vmatpush1.bf16.msra.mxu0 0
    %2597 = vmatprep.subr.bf16.mxu0 0
    %2598 = vmatpush1.bf16.msra.mxu0 0
    %2599 = vmatprep.mubr.bf16.mxu0 0
    %2600 = vmatmul.mubr.bf16.gmra.mrb[0].mxu0 %v896
    %v2601 = vpop.f32.mrb[0].mxu0
    %v2602 = vadd.f32 0.0, %v2601
    %v2603 = vpop.f32.mrb[0].mxu0
    %v2604 = vadd.f32 0.0, %v2603
    %v2605 = vpop.f32.mrb[0].mxu0
    %v2606 = vadd.f32 0.0, %v2605
    %v2607 = vpop.f32.mrb[0].mxu0
    %v2608 = vadd.f32 0.0, %v2607
    %2609 = vdwg.mxu0
    %v2610 = vmul.f32 %v2559, %v987
    %v2611 = vmul.f32 %v2561, %v987
    %v2612 = vmul.f32 %v2602, %v987
    %v2613 = vmul.f32 %v2604, %v987
    %v2614 = vmul.f32 %v2563, %v992
    %v2615 = vmul.f32 %v2565, %v992
    %v2616 = vmul.f32 %v2606, %v992
    %v2617 = vmul.f32 %v2608, %v992
    %v2618 = vmax.f32 %v2610, 1e-07
    %v2619 = vmax.f32 %v2611, 1e-07
    %v2620 = vmax.f32 %v2612, 1e-07
    %v2621 = vmax.f32 %v2613, 1e-07
    %v2622 = vmax.f32 %v2614, 1e-07
    %v2623 = vmax.f32 %v2615, 1e-07
    %v2624 = vmax.f32 %v2616, 1e-07
    %v2625 = vmax.f32 %v2617, 1e-07
    %v2626 = vmin.f32 %v2618, 10000.0
    %v2627 = vmin.f32 %v2619, 10000.0
    %v2628 = vmin.f32 %v2620, 10000.0
    %v2629 = vmin.f32 %v2621, 10000.0
    %v2630 = vmin.f32 %v2622, 10000.0
    %v2631 = vmin.f32 %v2623, 10000.0
    %v2632 = vmin.f32 %v2624, 10000.0
    %v2633 = vmin.f32 %v2625, 10000.0
    %v2634 = vmul.f32 %v2626, %v2626
    %v2635 = vmul.f32 %v2627, %v2627
    %v2636 = vmul.f32 %v2628, %v2628
    %v2637 = vmul.f32 %v2629, %v2629
    %v2638 = vmul.f32 %v2630, %v2630
    %v2639 = vmul.f32 %v2631, %v2631
    %v2640 = vmul.f32 %v2632, %v2632
    %v2641 = vmul.f32 %v2633, %v2633
    %v2642 = vadd.f32 %v2634, %v2635
    %v2643 = vadd.f32 %v2642, %v2636
    %v2644 = vadd.f32 %v2643, %v2637
    %2645 = vadd.xlane.f32.xlu0 %v2644
    %v2646 = vpop.xlane.xlu0 %2645
    %v2647 = vadd.f32 %v2638, %v2639
    %v2648 = vadd.f32 %v2647, %v2640
    %v2649 = vadd.f32 %v2648, %v2641
    %2650 = vadd.xlane.f32.xlu0 %v2649
    %v2651 = vpop.xlane.xlu0 %2650
    %v2652 = vmax.f32 %v2646, 1e-24
    %v2653 = vmax.f32 %v2651, 1e-24
    %v2654 = vrsqrt.pop %v2652
    %v2655 = vrsqrt.pop %v2653
    %v2656 = vmul.f32 %v2350, %v2350
    %v2657 = vmul.f32 %v2351, %v2351
    %v2658 = vmul.f32 %v2352, %v2352
    %v2659 = vmul.f32 %v2353, %v2353
    %v2660 = vmul.f32 %v2354, %v2354
    %v2661 = vmul.f32 %v2355, %v2355
    %v2662 = vmul.f32 %v2356, %v2356
    %v2663 = vmul.f32 %v2357, %v2357
    %v2664 = vadd.f32 %v2656, %v2657
    %v2665 = vadd.f32 %v2664, %v2658
    %v2666 = vadd.f32 %v2665, %v2659
    %2667 = vadd.xlane.f32.xlu0 %v2666
    %v2668 = vpop.xlane.xlu0 %2667
    %v2669 = vadd.f32 %v2660, %v2661
    %v2670 = vadd.f32 %v2669, %v2662
    %v2671 = vadd.f32 %v2670, %v2663
    %2672 = vadd.xlane.f32.xlu0 %v2671
    %v2673 = vpop.xlane.xlu0 %2672
    %v2674 = vrsqrt.pop %v2668
    %v2675 = vmul.f32 %v2668, %v2674
    %vm2676 = vcmp.eq.f32.partialorder %v2668, inf
    %v2677 = vsel %vm2676, %v2668, %v2675
    %vm2678 = vcmp.eq.f32.partialorder %v2668, 0.0
    %v2679 = vand.u32 %v2668, 2147483648
    %v2680 = vsel %vm2678, %v2679, %v2677
    %v2681 = vrsqrt.pop %v2673
    %v2682 = vmul.f32 %v2673, %v2681
    %vm2683 = vcmp.eq.f32.partialorder %v2673, inf
    %v2684 = vsel %vm2683, %v2673, %v2682
    %vm2685 = vcmp.eq.f32.partialorder %v2673, 0.0
    %v2686 = vand.u32 %v2673, 2147483648
    %v2687 = vsel %vm2685, %v2686, %v2684
    %v2688 = vmul.f32 %v2654, %v2680
    %v2689 = vmul.f32 %v2655, %v2687
    %v2690 = vmul.f32 %v2626, %v2688
    %v2691 = vmul.f32 %v2627, %v2688
    %v2692 = vmul.f32 %v2628, %v2688
    %v2693 = vmul.f32 %v2629, %v2688
    %v2694 = vmul.f32 %v2630, %v2689
    %v2695 = vmul.f32 %v2631, %v2689
    %v2696 = vmul.f32 %v2632, %v2689
    %v2697 = vmul.f32 %v2633, %v2689
    %v2698 = vadd.f32 %v2690, %v2350
    %v2699 = vadd.f32 %v2691, %v2351
    %v2700 = vadd.f32 %v2692, %v2352
    %v2701 = vadd.f32 %v2693, %v2353
    %v2702 = vadd.f32 %v2694, %v2354
    %v2703 = vadd.f32 %v2695, %v2355
    %v2704 = vadd.f32 %v2696, %v2356
    %v2705 = vadd.f32 %v2697, %v2357
    %v2706 = vpack.c.bf16 %v2702, %v2698
    %v2707 = vpack.c.bf16 %v2703, %v2699
    %v2708 = vpack.c.bf16 %v2704, %v2700
    %v2709 = vpack.c.bf16 %v2705, %v2701
    %v2711 = vlaneseq
    %v2712 = vshrl.u32 %v2711, 7
    %v2713 = vsub.s32 0, %v2712
    %v2714 = vrot.slane %v2487, %v2713
    %v2715 = vlaneseq
    %v2716 = vshrl.u32 %v2715, 7
    %v2717 = vsub.s32 1, %v2716
    %v2718 = vrot.slane %v2487, %v2717
    %v2719 = vlaneseq
    %v2720 = vshrl.u32 %v2719, 7
    %v2721 = vsub.s32 2, %v2720
    %v2722 = vrot.slane %v2487, %v2721
    %v2723 = vlaneseq
    %v2724 = vshrl.u32 %v2723, 7
    %v2725 = vsub.s32 3, %v2724
    %v2726 = vrot.slane %v2487, %v2725
    %v2859 = vunpack.c.l.b16 %v2358
    %v2860 = vunpack.c.h.b16 %v2358
    %v2861 = vunpack.c.l.b16 %v2359
    %v2862 = vunpack.c.h.b16 %v2359
    %v2863 = vunpack.c.l.b16 %v2360
    %v2864 = vunpack.c.h.b16 %v2360
    %v2865 = vunpack.c.l.b16 %v2361
    %v2866 = vunpack.c.h.b16 %v2361
    %v2867 = vunpack.c.l.b16 %v2362
    %v2868 = vunpack.c.h.b16 %v2362
    %v2869 = vunpack.c.l.b16 %v2363
    %v2870 = vunpack.c.h.b16 %v2363
    %v2871 = vunpack.c.l.b16 %v2364
    %v2872 = vunpack.c.h.b16 %v2364
    %v2873 = vunpack.c.l.b16 %v2365
    %v2874 = vunpack.c.h.b16 %v2365
    %v2875 = vunpack.c.l.b16 %v2366
    %v2876 = vunpack.c.h.b16 %v2366
    %v2877 = vunpack.c.l.b16 %v2367
    %v2878 = vunpack.c.h.b16 %v2367
    %v2879 = vunpack.c.l.b16 %v2368
    %v2880 = vunpack.c.h.b16 %v2368
    %v2881 = vunpack.c.l.b16 %v2369
    %v2882 = vunpack.c.h.b16 %v2369
    %v2883 = vunpack.c.l.b16 %v2370
    %v2884 = vunpack.c.h.b16 %v2370
    %v2885 = vunpack.c.l.b16 %v2371
    %v2886 = vunpack.c.h.b16 %v2371
    %v2887 = vunpack.c.l.b16 %v2372
    %v2888 = vunpack.c.h.b16 %v2372
    %v2889 = vunpack.c.l.b16 %v2373
    %v2890 = vunpack.c.h.b16 %v2373
    %v2891 = vunpack.c.l.b16 %v2374
    %v2892 = vunpack.c.h.b16 %v2374
    %v2893 = vunpack.c.l.b16 %v2375
    %v2894 = vunpack.c.h.b16 %v2375
    %v2895 = vunpack.c.l.b16 %v2376
    %v2896 = vunpack.c.h.b16 %v2376
    %v2897 = vunpack.c.l.b16 %v2377
    %v2898 = vunpack.c.h.b16 %v2377
    %v2899 = vunpack.c.l.b16 %v2378
    %v2900 = vunpack.c.h.b16 %v2378
    %v2901 = vunpack.c.l.b16 %v2379
    %v2902 = vunpack.c.h.b16 %v2379
    %v2903 = vunpack.c.l.b16 %v2380
    %v2904 = vunpack.c.h.b16 %v2380
    %v2905 = vunpack.c.l.b16 %v2381
    %v2906 = vunpack.c.h.b16 %v2381
    %v2907 = vunpack.c.l.b16 %v2382
    %v2908 = vunpack.c.h.b16 %v2382
    %v2909 = vunpack.c.l.b16 %v2383
    %v2910 = vunpack.c.h.b16 %v2383
    %v2911 = vunpack.c.l.b16 %v2384
    %v2912 = vunpack.c.h.b16 %v2384
    %v2913 = vunpack.c.l.b16 %v2385
    %v2914 = vunpack.c.h.b16 %v2385
    %v2915 = vunpack.c.l.b16 %v2386
    %v2916 = vunpack.c.h.b16 %v2386
    %v2917 = vunpack.c.l.b16 %v2387
    %v2918 = vunpack.c.h.b16 %v2387
    %v2919 = vunpack.c.l.b16 %v2388
    %v2920 = vunpack.c.h.b16 %v2388
    %v2921 = vunpack.c.l.b16 %v2389
    %v2922 = vunpack.c.h.b16 %v2389
    %v2923 = vunpack.c.l.b16 %v2390
    %v2924 = vunpack.c.h.b16 %v2390
    %v2925 = vunpack.c.l.b16 %v2391
    %v2926 = vunpack.c.h.b16 %v2391
    %v2927 = vunpack.c.l.b16 %v2392
    %v2928 = vunpack.c.h.b16 %v2392
    %v2929 = vunpack.c.l.b16 %v2393
    %v2930 = vunpack.c.h.b16 %v2393
    %v2931 = vunpack.c.l.b16 %v2394
    %v2932 = vunpack.c.h.b16 %v2394
    %v2933 = vunpack.c.l.b16 %v2395
    %v2934 = vunpack.c.h.b16 %v2395
    %v2935 = vunpack.c.l.b16 %v2396
    %v2936 = vunpack.c.h.b16 %v2396
    %v2937 = vunpack.c.l.b16 %v2397
    %v2938 = vunpack.c.h.b16 %v2397
    %v2939 = vunpack.c.l.b16 %v2398
    %v2940 = vunpack.c.h.b16 %v2398
    %v2941 = vunpack.c.l.b16 %v2399
    %v2942 = vunpack.c.h.b16 %v2399
    %v2943 = vunpack.c.l.b16 %v2400
    %v2944 = vunpack.c.h.b16 %v2400
    %v2945 = vunpack.c.l.b16 %v2401
    %v2946 = vunpack.c.h.b16 %v2401
    %v2947 = vunpack.c.l.b16 %v2402
    %v2948 = vunpack.c.h.b16 %v2402
    %v2949 = vunpack.c.l.b16 %v2403
    %v2950 = vunpack.c.h.b16 %v2403
    %v2951 = vunpack.c.l.b16 %v2404
    %v2952 = vunpack.c.h.b16 %v2404
    %v2953 = vunpack.c.l.b16 %v2405
    %v2954 = vunpack.c.h.b16 %v2405
    %v2955 = vunpack.c.l.b16 %v2406
    %v2956 = vunpack.c.h.b16 %v2406
    %v2957 = vunpack.c.l.b16 %v2407
    %v2958 = vunpack.c.h.b16 %v2407
    %v2959 = vunpack.c.l.b16 %v2408
    %v2960 = vunpack.c.h.b16 %v2408
    %v2961 = vunpack.c.l.b16 %v2409
    %v2962 = vunpack.c.h.b16 %v2409
    %v2963 = vunpack.c.l.b16 %v2410
    %v2964 = vunpack.c.h.b16 %v2410
    %v2965 = vunpack.c.l.b16 %v2411
    %v2966 = vunpack.c.h.b16 %v2411
    %v2967 = vunpack.c.l.b16 %v2412
    %v2968 = vunpack.c.h.b16 %v2412
    %v2969 = vunpack.c.l.b16 %v2413
    %v2970 = vunpack.c.h.b16 %v2413
    %v2971 = vunpack.c.l.b16 %v2414
    %v2972 = vunpack.c.h.b16 %v2414
    %v2973 = vunpack.c.l.b16 %v2415
    %v2974 = vunpack.c.h.b16 %v2415
    %v2975 = vunpack.c.l.b16 %v2416
    %v2976 = vunpack.c.h.b16 %v2416
    %v2977 = vunpack.c.l.b16 %v2417
    %v2978 = vunpack.c.h.b16 %v2417
    %v2979 = vunpack.c.l.b16 %v2418
    %v2980 = vunpack.c.h.b16 %v2418
    %v2981 = vunpack.c.l.b16 %v2419
    %v2982 = vunpack.c.h.b16 %v2419
    %v2983 = vunpack.c.l.b16 %v2420
    %v2984 = vunpack.c.h.b16 %v2420
    %v2985 = vunpack.c.l.b16 %v2421
    %v2986 = vunpack.c.h.b16 %v2421
    %v2987 = vunpack.c.l.b16 %v2422
    %v2988 = vunpack.c.h.b16 %v2422
    %v2989 = vunpack.c.l.b16 %v2423
    %v2990 = vunpack.c.h.b16 %v2423
    %v2991 = vunpack.c.l.b16 %v2424
    %v2992 = vunpack.c.h.b16 %v2424
    %v2993 = vunpack.c.l.b16 %v2425
    %v2994 = vunpack.c.h.b16 %v2425
    %v2995 = vunpack.c.l.b16 %v2426
    %v2996 = vunpack.c.h.b16 %v2426
    %v2997 = vunpack.c.l.b16 %v2427
    %v2998 = vunpack.c.h.b16 %v2427
    %v2999 = vunpack.c.l.b16 %v2428
    %v3000 = vunpack.c.h.b16 %v2428
    %v3001 = vunpack.c.l.b16 %v2429
    %v3002 = vunpack.c.h.b16 %v2429
    %v3003 = vunpack.c.l.b16 %v2430
    %v3004 = vunpack.c.h.b16 %v2430
    %v3005 = vunpack.c.l.b16 %v2431
    %v3006 = vunpack.c.h.b16 %v2431
    %v3007 = vunpack.c.l.b16 %v2432
    %v3008 = vunpack.c.h.b16 %v2432
    %v3009 = vunpack.c.l.b16 %v2433
    %v3010 = vunpack.c.h.b16 %v2433
    %v3011 = vunpack.c.l.b16 %v2434
    %v3012 = vunpack.c.h.b16 %v2434
    %v3013 = vunpack.c.l.b16 %v2435
    %v3014 = vunpack.c.h.b16 %v2435
    %v3015 = vunpack.c.l.b16 %v2436
    %v3016 = vunpack.c.h.b16 %v2436
    %v3017 = vunpack.c.l.b16 %v2437
    %v3018 = vunpack.c.h.b16 %v2437
    %v3019 = vunpack.c.l.b16 %v2438
    %v3020 = vunpack.c.h.b16 %v2438
    %v3021 = vunpack.c.l.b16 %v2439
    %v3022 = vunpack.c.h.b16 %v2439
    %v3023 = vunpack.c.l.b16 %v2440
    %v3024 = vunpack.c.h.b16 %v2440
    %v3025 = vunpack.c.l.b16 %v2441
    %v3026 = vunpack.c.h.b16 %v2441
    %v3027 = vunpack.c.l.b16 %v2442
    %v3028 = vunpack.c.h.b16 %v2442
    %v3029 = vunpack.c.l.b16 %v2443
    %v3030 = vunpack.c.h.b16 %v2443
    %v3031 = vunpack.c.l.b16 %v2444
    %v3032 = vunpack.c.h.b16 %v2444
    %v3033 = vunpack.c.l.b16 %v2445
    %v3034 = vunpack.c.h.b16 %v2445
    %v3035 = vunpack.c.l.b16 %v2446
    %v3036 = vunpack.c.h.b16 %v2446
    %v3037 = vunpack.c.l.b16 %v2447
    %v3038 = vunpack.c.h.b16 %v2447
    %v3039 = vunpack.c.l.b16 %v2448
    %v3040 = vunpack.c.h.b16 %v2448
    %v3041 = vunpack.c.l.b16 %v2449
    %v3042 = vunpack.c.h.b16 %v2449
    %v3043 = vunpack.c.l.b16 %v2450
    %v3044 = vunpack.c.h.b16 %v2450
    %v3045 = vunpack.c.l.b16 %v2451
    %v3046 = vunpack.c.h.b16 %v2451
    %v3047 = vunpack.c.l.b16 %v2452
    %v3048 = vunpack.c.h.b16 %v2452
    %v3049 = vunpack.c.l.b16 %v2453
    %v3050 = vunpack.c.h.b16 %v2453
    %v3051 = vunpack.c.l.b16 %v2454
    %v3052 = vunpack.c.h.b16 %v2454
    %v3053 = vunpack.c.l.b16 %v2455
    %v3054 = vunpack.c.h.b16 %v2455
    %v3055 = vunpack.c.l.b16 %v2456
    %v3056 = vunpack.c.h.b16 %v2456
    %v3057 = vunpack.c.l.b16 %v2457
    %v3058 = vunpack.c.h.b16 %v2457
    %v3059 = vunpack.c.l.b16 %v2458
    %v3060 = vunpack.c.h.b16 %v2458
    %v3061 = vunpack.c.l.b16 %v2459
    %v3062 = vunpack.c.h.b16 %v2459
    %v3063 = vunpack.c.l.b16 %v2460
    %v3064 = vunpack.c.h.b16 %v2460
    %v3065 = vunpack.c.l.b16 %v2461
    %v3066 = vunpack.c.h.b16 %v2461
    %v3067 = vunpack.c.l.b16 %v2462
    %v3068 = vunpack.c.h.b16 %v2462
    %v3069 = vunpack.c.l.b16 %v2463
    %v3070 = vunpack.c.h.b16 %v2463
    %v3071 = vunpack.c.l.b16 %v2464
    %v3072 = vunpack.c.h.b16 %v2464
    %v3073 = vunpack.c.l.b16 %v2465
    %v3074 = vunpack.c.h.b16 %v2465
    %v3075 = vunpack.c.l.b16 %v2466
    %v3076 = vunpack.c.h.b16 %v2466
    %v3077 = vunpack.c.l.b16 %v2467
    %v3078 = vunpack.c.h.b16 %v2467
    %v3079 = vunpack.c.l.b16 %v2468
    %v3080 = vunpack.c.h.b16 %v2468
    %v3081 = vunpack.c.l.b16 %v2469
    %v3082 = vunpack.c.h.b16 %v2469
    %v3083 = vunpack.c.l.b16 %v2470
    %v3084 = vunpack.c.h.b16 %v2470
    %v3085 = vunpack.c.l.b16 %v2471
    %v3086 = vunpack.c.h.b16 %v2471
    %v3087 = vunpack.c.l.b16 %v2472
    %v3088 = vunpack.c.h.b16 %v2472
    %v3089 = vunpack.c.l.b16 %v2473
    %v3090 = vunpack.c.h.b16 %v2473
    %v3091 = vunpack.c.l.b16 %v2474
    %v3092 = vunpack.c.h.b16 %v2474
    %v3093 = vunpack.c.l.b16 %v2475
    %v3094 = vunpack.c.h.b16 %v2475
    %v3095 = vunpack.c.l.b16 %v2476
    %v3096 = vunpack.c.h.b16 %v2476
    %v3097 = vunpack.c.l.b16 %v2477
    %v3098 = vunpack.c.h.b16 %v2477
    %v3099 = vunpack.c.l.b16 %v2478
    %v3100 = vunpack.c.h.b16 %v2478
    %v3101 = vunpack.c.l.b16 %v2479
    %v3102 = vunpack.c.h.b16 %v2479
    %v3103 = vunpack.c.l.b16 %v2480
    %v3104 = vunpack.c.h.b16 %v2480
    %v3105 = vunpack.c.l.b16 %v2481
    %v3106 = vunpack.c.h.b16 %v2481
    %v3107 = vunpack.c.l.b16 %v2482
    %v3108 = vunpack.c.h.b16 %v2482
    %v3109 = vunpack.c.l.b16 %v2483
    %v3110 = vunpack.c.h.b16 %v2483
    %v3111 = vunpack.c.l.b16 %v2484
    %v3112 = vunpack.c.h.b16 %v2484
    %v3113 = vunpack.c.l.b16 %v2485
    %v3114 = vunpack.c.h.b16 %v2485
    %v3115 = vpack.c.b16 %v2863, %v2859
    %v3116 = vpack.c.b16 %v2864, %v2860
    %v3117 = vpack.c.b16 %v2865, %v2861
    %v3118 = vpack.c.b16 %v2866, %v2862
    %v3119 = vpack.c.b16 %v2871, %v2867
    %v3120 = vpack.c.b16 %v2872, %v2868
    %v3121 = vpack.c.b16 %v2873, %v2869
    %v3122 = vpack.c.b16 %v2874, %v2870
    %v3123 = vpack.c.b16 %v2879, %v2875
    %v3124 = vpack.c.b16 %v2880, %v2876
    %v3125 = vpack.c.b16 %v2881, %v2877
    %v3126 = vpack.c.b16 %v2882, %v2878
    %v3127 = vpack.c.b16 %v2887, %v2883
    %v3128 = vpack.c.b16 %v2888, %v2884
    %v3129 = vpack.c.b16 %v2889, %v2885
    %v3130 = vpack.c.b16 %v2890, %v2886
    %v3131 = vpack.c.b16 %v2895, %v2891
    %v3132 = vpack.c.b16 %v2896, %v2892
    %v3133 = vpack.c.b16 %v2897, %v2893
    %v3134 = vpack.c.b16 %v2898, %v2894
    %v3135 = vpack.c.b16 %v2903, %v2899
    %v3136 = vpack.c.b16 %v2904, %v2900
    %v3137 = vpack.c.b16 %v2905, %v2901
    %v3138 = vpack.c.b16 %v2906, %v2902
    %v3139 = vpack.c.b16 %v2911, %v2907
    %v3140 = vpack.c.b16 %v2912, %v2908
    %v3141 = vpack.c.b16 %v2913, %v2909
    %v3142 = vpack.c.b16 %v2914, %v2910
    %v3143 = vpack.c.b16 %v2919, %v2915
    %v3144 = vpack.c.b16 %v2920, %v2916
    %v3145 = vpack.c.b16 %v2921, %v2917
    %v3146 = vpack.c.b16 %v2922, %v2918
    %v3147 = vpack.c.b16 %v2927, %v2923
    %v3148 = vpack.c.b16 %v2928, %v2924
    %v3149 = vpack.c.b16 %v2929, %v2925
    %v3150 = vpack.c.b16 %v2930, %v2926
    %v3151 = vpack.c.b16 %v2935, %v2931
    %v3152 = vpack.c.b16 %v2936, %v2932
    %v3153 = vpack.c.b16 %v2937, %v2933
    %v3154 = vpack.c.b16 %v2938, %v2934
    %v3155 = vpack.c.b16 %v2943, %v2939
    %v3156 = vpack.c.b16 %v2944, %v2940
    %v3157 = vpack.c.b16 %v2945, %v2941
    %v3158 = vpack.c.b16 %v2946, %v2942
    %v3159 = vpack.c.b16 %v2951, %v2947
    %v3160 = vpack.c.b16 %v2952, %v2948
    %v3161 = vpack.c.b16 %v2953, %v2949
    %v3162 = vpack.c.b16 %v2954, %v2950
    %v3163 = vpack.c.b16 %v2959, %v2955
    %v3164 = vpack.c.b16 %v2960, %v2956
    %v3165 = vpack.c.b16 %v2961, %v2957
    %v3166 = vpack.c.b16 %v2962, %v2958
    %v3167 = vpack.c.b16 %v2967, %v2963
    %v3168 = vpack.c.b16 %v2968, %v2964
    %v3169 = vpack.c.b16 %v2969, %v2965
    %v3170 = vpack.c.b16 %v2970, %v2966
    %v3171 = vpack.c.b16 %v2975, %v2971
    %v3172 = vpack.c.b16 %v2976, %v2972
    %v3173 = vpack.c.b16 %v2977, %v2973
    %v3174 = vpack.c.b16 %v2978, %v2974
    %v3175 = vpack.c.b16 %v2983, %v2979
    %v3176 = vpack.c.b16 %v2984, %v2980
    %v3177 = vpack.c.b16 %v2985, %v2981
    %v3178 = vpack.c.b16 %v2986, %v2982
    %v3179 = vpack.c.b16 %v2991, %v2987
    %v3180 = vpack.c.b16 %v2992, %v2988
    %v3181 = vpack.c.b16 %v2993, %v2989
    %v3182 = vpack.c.b16 %v2994, %v2990
    %v3183 = vpack.c.b16 %v2999, %v2995
    %v3184 = vpack.c.b16 %v3000, %v2996
    %v3185 = vpack.c.b16 %v3001, %v2997
    %v3186 = vpack.c.b16 %v3002, %v2998
    %v3187 = vpack.c.b16 %v3007, %v3003
    %v3188 = vpack.c.b16 %v3008, %v3004
    %v3189 = vpack.c.b16 %v3009, %v3005
    %v3190 = vpack.c.b16 %v3010, %v3006
    %v3191 = vpack.c.b16 %v3015, %v3011
    %v3192 = vpack.c.b16 %v3016, %v3012
    %v3193 = vpack.c.b16 %v3017, %v3013
    %v3194 = vpack.c.b16 %v3018, %v3014
    %v3195 = vpack.c.b16 %v3023, %v3019
    %v3196 = vpack.c.b16 %v3024, %v3020
    %v3197 = vpack.c.b16 %v3025, %v3021
    %v3198 = vpack.c.b16 %v3026, %v3022
    %v3199 = vpack.c.b16 %v3031, %v3027
    %v3200 = vpack.c.b16 %v3032, %v3028
    %v3201 = vpack.c.b16 %v3033, %v3029
    %v3202 = vpack.c.b16 %v3034, %v3030
    %v3203 = vpack.c.b16 %v3039, %v3035
    %v3204 = vpack.c.b16 %v3040, %v3036
    %v3205 = vpack.c.b16 %v3041, %v3037
    %v3206 = vpack.c.b16 %v3042, %v3038
    %v3207 = vpack.c.b16 %v3047, %v3043
    %v3208 = vpack.c.b16 %v3048, %v3044
    %v3209 = vpack.c.b16 %v3049, %v3045
    %v3210 = vpack.c.b16 %v3050, %v3046
    %v3211 = vpack.c.b16 %v3055, %v3051
    %v3212 = vpack.c.b16 %v3056, %v3052
    %v3213 = vpack.c.b16 %v3057, %v3053
    %v3214 = vpack.c.b16 %v3058, %v3054
    %v3215 = vpack.c.b16 %v3063, %v3059
    %v3216 = vpack.c.b16 %v3064, %v3060
    %v3217 = vpack.c.b16 %v3065, %v3061
    %v3218 = vpack.c.b16 %v3066, %v3062
    %v3219 = vpack.c.b16 %v3071, %v3067
    %v3220 = vpack.c.b16 %v3072, %v3068
    %v3221 = vpack.c.b16 %v3073, %v3069
    %v3222 = vpack.c.b16 %v3074, %v3070
    %v3223 = vpack.c.b16 %v3079, %v3075
    %v3224 = vpack.c.b16 %v3080, %v3076
    %v3225 = vpack.c.b16 %v3081, %v3077
    %v3226 = vpack.c.b16 %v3082, %v3078
    %v3227 = vpack.c.b16 %v3087, %v3083
    %v3228 = vpack.c.b16 %v3088, %v3084
    %v3229 = vpack.c.b16 %v3089, %v3085
    %v3230 = vpack.c.b16 %v3090, %v3086
    %v3231 = vpack.c.b16 %v3095, %v3091
    %v3232 = vpack.c.b16 %v3096, %v3092
    %v3233 = vpack.c.b16 %v3097, %v3093
    %v3234 = vpack.c.b16 %v3098, %v3094
    %v3235 = vpack.c.b16 %v3103, %v3099
    %v3236 = vpack.c.b16 %v3104, %v3100
    %v3237 = vpack.c.b16 %v3105, %v3101
    %v3238 = vpack.c.b16 %v3106, %v3102
    %v3239 = vpack.c.b16 %v3111, %v3107
    %v3240 = vpack.c.b16 %v3112, %v3108
    %v3241 = vpack.c.b16 %v3113, %v3109
    %v3242 = vpack.c.b16 %v3114, %v3110
    %3371 = vmatprep.subr.bf16.mxu0 %v3116
    %3372 = vmatpush1.bf16.msra.mxu0 %v3115
    %3373 = vmatprep.subr.bf16.mxu0 %v3120
    %3374 = vmatpush1.bf16.msra.mxu0 %v3119
    %3375 = vmatprep.subr.bf16.mxu0 %v3124
    %3376 = vmatpush1.bf16.msra.mxu0 %v3123
    %3377 = vmatprep.subr.bf16.mxu0 %v3128
    %3378 = vmatpush1.bf16.msra.mxu0 %v3127
    %3379 = vmatprep.subr.bf16.mxu0 %v3132
    %3380 = vmatpush1.bf16.msra.mxu0 %v3131
    %3381 = vmatprep.subr.bf16.mxu0 %v3136
    %3382 = vmatpush1.bf16.msra.mxu0 %v3135
    %3383 = vmatprep.subr.bf16.mxu0 %v3140
    %3384 = vmatpush1.bf16.msra.mxu0 %v3139
    %3385 = vmatprep.subr.bf16.mxu0 %v3144
    %3386 = vmatpush1.bf16.msra.mxu0 %v3143
    %3387 = vmatprep.subr.bf16.mxu0 %v3148
    %3388 = vmatpush1.bf16.msra.mxu0 %v3147
    %3389 = vmatprep.subr.bf16.mxu0 %v3152
    %3390 = vmatpush1.bf16.msra.mxu0 %v3151
    %3391 = vmatprep.subr.bf16.mxu0 %v3156
    %3392 = vmatpush1.bf16.msra.mxu0 %v3155
    %3393 = vmatprep.subr.bf16.mxu0 %v3160
    %3394 = vmatpush1.bf16.msra.mxu0 %v3159
    %3395 = vmatprep.subr.bf16.mxu0 %v3164
    %3396 = vmatpush1.bf16.msra.mxu0 %v3163
    %3397 = vmatprep.subr.bf16.mxu0 %v3168
    %3398 = vmatpush1.bf16.msra.mxu0 %v3167
    %3399 = vmatprep.subr.bf16.mxu0 %v3172
    %3400 = vmatpush1.bf16.msra.mxu0 %v3171
    %3401 = vmatprep.subr.bf16.mxu0 %v3176
    %3402 = vmatpush1.bf16.msra.mxu0 %v3175
    %3403 = vmatprep.mubr.bf16.mxu0 %v2707
    %3404 = vmatmul.mubr.bf16.gmra.mrb[0].mxu0 %v2706
    %v3405 = vpop.f32.mrb[0].mxu0
    %v3406 = vadd.f32 %v2714, %v3405
    %v3407 = vpop.f32.mrb[0].mxu0
    %v3408 = vadd.f32 %v2718, %v3407
    %v3409 = vpop.f32.mrb[0].mxu0
    %v3410 = vadd.f32 %v2714, %v3409
    %v3411 = vpop.f32.mrb[0].mxu0
    %v3412 = vadd.f32 %v2718, %v3411
    %3413 = vdwg.mxu0
    %3414 = vmatprep.subr.bf16.mxu0 %v3180
    %3415 = vmatpush1.bf16.msra.mxu0 %v3179
    %3416 = vmatprep.subr.bf16.mxu0 %v3184
    %3417 = vmatpush1.bf16.msra.mxu0 %v3183
    %3418 = vmatprep.subr.bf16.mxu0 %v3188
    %3419 = vmatpush1.bf16.msra.mxu0 %v3187
    %3420 = vmatprep.subr.bf16.mxu0 %v3192
    %3421 = vmatpush1.bf16.msra.mxu0 %v3191
    %3422 = vmatprep.subr.bf16.mxu0 %v3196
    %3423 = vmatpush1.bf16.msra.mxu0 %v3195
    %3424 = vmatprep.subr.bf16.mxu0 %v3200
    %3425 = vmatpush1.bf16.msra.mxu0 %v3199
    %3426 = vmatprep.subr.bf16.mxu0 %v3204
    %3427 = vmatpush1.bf16.msra.mxu0 %v3203
    %3428 = vmatprep.subr.bf16.mxu0 %v3208
    %3429 = vmatpush1.bf16.msra.mxu0 %v3207
    %3430 = vmatprep.subr.bf16.mxu0 %v3212
    %3431 = vmatpush1.bf16.msra.mxu0 %v3211
    %3432 = vmatprep.subr.bf16.mxu0 %v3216
    %3433 = vmatpush1.bf16.msra.mxu0 %v3215
    %3434 = vmatprep.subr.bf16.mxu0 %v3220
    %3435 = vmatpush1.bf16.msra.mxu0 %v3219
    %3436 = vmatprep.subr.bf16.mxu0 %v3224
    %3437 = vmatpush1.bf16.msra.mxu0 %v3223
    %3438 = vmatprep.subr.bf16.mxu0 %v3228
    %3439 = vmatpush1.bf16.msra.mxu0 %v3227
    %3440 = vmatprep.subr.bf16.mxu0 %v3232
    %3441 = vmatpush1.bf16.msra.mxu0 %v3231
    %3442 = vmatprep.subr.bf16.mxu0 %v3236
    %3443 = vmatpush1.bf16.msra.mxu0 %v3235
    %3444 = vmatprep.subr.bf16.mxu0 %v3240
    %3445 = vmatpush1.bf16.msra.mxu0 %v3239
    %3446 = vmatprep.mubr.bf16.mxu0 %v2709
    %3447 = vmatmul.mubr.bf16.gmra.mrb[0].mxu0 %v2708
    %v3448 = vpop.f32.mrb[0].mxu0
    %v3449 = vadd.f32 %v3406, %v3448
    %v3450 = vpop.f32.mrb[0].mxu0
    %v3451 = vadd.f32 %v3408, %v3450
    %v3452 = vpop.f32.mrb[0].mxu0
    %v3453 = vadd.f32 %v3410, %v3452
    %v3454 = vpop.f32.mrb[0].mxu0
    %v3455 = vadd.f32 %v3412, %v3454
    %3456 = vdwg.mxu0
    %3457 = vmatprep.subr.bf16.mxu0 %v3118
    %3458 = vmatpush1.bf16.msra.mxu0 %v3117
    %3459 = vmatprep.subr.bf16.mxu0 %v3122
    %3460 = vmatpush1.bf16.msra.mxu0 %v3121
    %3461 = vmatprep.subr.bf16.mxu0 %v3126
    %3462 = vmatpush1.bf16.msra.mxu0 %v3125
    %3463 = vmatprep.subr.bf16.mxu0 %v3130
    %3464 = vmatpush1.bf16.msra.mxu0 %v3129
    %3465 = vmatprep.subr.bf16.mxu0 %v3134
    %3466 = vmatpush1.bf16.msra.mxu0 %v3133
    %3467 = vmatprep.subr.bf16.mxu0 %v3138
    %3468 = vmatpush1.bf16.msra.mxu0 %v3137
    %3469 = vmatprep.subr.bf16.mxu0 %v3142
    %3470 = vmatpush1.bf16.msra.mxu0 %v3141
    %3471 = vmatprep.subr.bf16.mxu0 %v3146
    %3472 = vmatpush1.bf16.msra.mxu0 %v3145
    %3473 = vmatprep.subr.bf16.mxu0 %v3150
    %3474 = vmatpush1.bf16.msra.mxu0 %v3149
    %3475 = vmatprep.subr.bf16.mxu0 %v3154
    %3476 = vmatpush1.bf16.msra.mxu0 %v3153
    %3477 = vmatprep.subr.bf16.mxu0 %v3158
    %3478 = vmatpush1.bf16.msra.mxu0 %v3157
    %3479 = vmatprep.subr.bf16.mxu0 %v3162
    %3480 = vmatpush1.bf16.msra.mxu0 %v3161
    %3481 = vmatprep.subr.bf16.mxu0 %v3166
    %3482 = vmatpush1.bf16.msra.mxu0 %v3165
    %3483 = vmatprep.subr.bf16.mxu0 %v3170
    %3484 = vmatpush1.bf16.msra.mxu0 %v3169
    %3485 = vmatprep.subr.bf16.mxu0 %v3174
    %3486 = vmatpush1.bf16.msra.mxu0 %v3173
    %3487 = vmatprep.subr.bf16.mxu0 %v3178
    %3488 = vmatpush1.bf16.msra.mxu0 %v3177
    %3489 = vmatprep.mubr.bf16.mxu0 %v2707
    %3490 = vmatmul.mubr.bf16.gmra.mrb[0].mxu0 %v2706
    %v3491 = vpop.f32.mrb[0].mxu0
    %v3492 = vadd.f32 %v2722, %v3491
    %v3493 = vpop.f32.mrb[0].mxu0
    %v3494 = vadd.f32 %v2726, %v3493
    %v3495 = vpop.f32.mrb[0].mxu0
    %v3496 = vadd.f32 %v2722, %v3495
    %v3497 = vpop.f32.mrb[0].mxu0
    %v3498 = vadd.f32 %v2726, %v3497
    %3499 = vdwg.mxu0
    %3500 = vmatprep.subr.bf16.mxu0 %v3182
    %3501 = vmatpush1.bf16.msra.mxu0 %v3181
    %3502 = vmatprep.subr.bf16.mxu0 %v3186
    %3503 = vmatpush1.bf16.msra.mxu0 %v3185
    %3504 = vmatprep.subr.bf16.mxu0 %v3190
    %3505 = vmatpush1.bf16.msra.mxu0 %v3189
    %3506 = vmatprep.subr.bf16.mxu0 %v3194
    %3507 = vmatpush1.bf16.msra.mxu0 %v3193
    %3508 = vmatprep.subr.bf16.mxu0 %v3198
    %3509 = vmatpush1.bf16.msra.mxu0 %v3197
    %3510 = vmatprep.subr.bf16.mxu0 %v3202
    %3511 = vmatpush1.bf16.msra.mxu0 %v3201
    %3512 = vmatprep.subr.bf16.mxu0 %v3206
    %3513 = vmatpush1.bf16.msra.mxu0 %v3205
    %3514 = vmatprep.subr.bf16.mxu0 %v3210
    %3515 = vmatpush1.bf16.msra.mxu0 %v3209
    %3516 = vmatprep.subr.bf16.mxu0 %v3214
    %3517 = vmatpush1.bf16.msra.mxu0 %v3213
    %3518 = vmatprep.subr.bf16.mxu0 %v3218
    %3519 = vmatpush1.bf16.msra.mxu0 %v3217
    %3520 = vmatprep.subr.bf16.mxu0 %v3222
    %3521 = vmatpush1.bf16.msra.mxu0 %v3221
    %3522 = vmatprep.subr.bf16.mxu0 %v3226
    %3523 = vmatpush1.bf16.msra.mxu0 %v3225
    %3524 = vmatprep.subr.bf16.mxu0 %v3230
    %3525 = vmatpush1.bf16.msra.mxu0 %v3229
    %3526 = vmatprep.subr.bf16.mxu0 %v3234
    %3527 = vmatpush1.bf16.msra.mxu0 %v3233
    %3528 = vmatprep.subr.bf16.mxu0 %v3238
    %3529 = vmatpush1.bf16.msra.mxu0 %v3237
    %3530 = vmatprep.subr.bf16.mxu0 %v3242
    %3531 = vmatpush1.bf16.msra.mxu0 %v3241
    %3532 = vmatprep.mubr.bf16.mxu0 %v2709
    %3533 = vmatmul.mubr.bf16.gmra.mrb[0].mxu0 %v2708
    %v3534 = vpop.f32.mrb[0].mxu0
    %v3535 = vadd.f32 %v3492, %v3534
    %v3536 = vpop.f32.mrb[0].mxu0
    %v3537 = vadd.f32 %v3494, %v3536
    %v3538 = vpop.f32.mrb[0].mxu0
    %v3539 = vadd.f32 %v3496, %v3538
    %v3540 = vpop.f32.mrb[0].mxu0
    %v3541 = vadd.f32 %v3498, %v3540
    %3542 = vdwg.mxu0
    %v3543 = vmax.f32 %v3449, 0.0
    %v3544 = vmax.f32 %v3451, 0.0
    %v3545 = vmax.f32 %v3535, 0.0
    %v3546 = vmax.f32 %v3537, 0.0
    %v3547 = vmax.f32 %v3453, 0.0
    %v3548 = vmax.f32 %v3455, 0.0
    %v3549 = vmax.f32 %v3539, 0.0
    %v3550 = vmax.f32 %v3541, 0.0
    %v3551 = vmax.f32 %v2350, %v3543
    %v3552 = vmax.f32 %v2351, %v3544
    %v3553 = vmax.f32 %v2352, %v3545
    %v3554 = vmax.f32 %v2353, %v3546
    %v3555 = vmax.f32 %v2354, %v3547
    %v3556 = vmax.f32 %v2355, %v3548
    %v3557 = vmax.f32 %v2356, %v3549
    %v3558 = vmax.f32 %v2357, %v3550
    %v3559 = vrot.slane %v3551, 4
    %v3560 = vmax.f32 %v3551, %v3559
    %v3561 = vrot.slane %v3560, 2
    %v3562 = vmax.f32 %v3560, %v3561
    %v3563 = vrot.slane %v3562, 1
    %v3564 = vmax.f32 %v3562, %v3563
    %v3565 = vrot.slane %v3552, 4
    %v3566 = vmax.f32 %v3552, %v3565
    %v3567 = vrot.slane %v3566, 2
    %v3568 = vmax.f32 %v3566, %v3567
    %v3569 = vrot.slane %v3568, 1
    %v3570 = vmax.f32 %v3568, %v3569
    %v3571 = vrot.slane %v3553, 4
    %v3572 = vmax.f32 %v3553, %v3571
    %v3573 = vrot.slane %v3572, 2
    %v3574 = vmax.f32 %v3572, %v3573
    %v3575 = vrot.slane %v3574, 1
    %v3576 = vmax.f32 %v3574, %v3575
    %v3577 = vrot.slane %v3554, 4
    %v3578 = vmax.f32 %v3554, %v3577
    %v3579 = vrot.slane %v3578, 2
    %v3580 = vmax.f32 %v3578, %v3579
    %v3581 = vrot.slane %v3580, 1
    %v3582 = vmax.f32 %v3580, %v3581
    %v3583 = vrot.slane %v3555, 4
    %v3584 = vmax.f32 %v3555, %v3583
    %v3585 = vrot.slane %v3584, 2
    %v3586 = vmax.f32 %v3584, %v3585
    %v3587 = vrot.slane %v3586, 1
    %v3588 = vmax.f32 %v3586, %v3587
    %v3589 = vrot.slane %v3556, 4
    %v3590 = vmax.f32 %v3556, %v3589
    %v3591 = vrot.slane %v3590, 2
    %v3592 = vmax.f32 %v3590, %v3591
    %v3593 = vrot.slane %v3592, 1
    %v3594 = vmax.f32 %v3592, %v3593
    %v3595 = vrot.slane %v3557, 4
    %v3596 = vmax.f32 %v3557, %v3595
    %v3597 = vrot.slane %v3596, 2
    %v3598 = vmax.f32 %v3596, %v3597
    %v3599 = vrot.slane %v3598, 1
    %v3600 = vmax.f32 %v3598, %v3599
    %v3601 = vrot.slane %v3558, 4
    %v3602 = vmax.f32 %v3558, %v3601
    %v3603 = vrot.slane %v3602, 2
    %v3604 = vmax.f32 %v3602, %v3603
    %v3605 = vrot.slane %v3604, 1
    %v3606 = vmax.f32 %v3604, %v3605
    %v3607 = vrot.slane %v3551, 4
    %v3608 = vadd.f32 %v3551, %v3607
    %v3609 = vrot.slane %v3608, 2
    %v3610 = vadd.f32 %v3608, %v3609
    %v3611 = vrot.slane %v3610, 1
    %v3612 = vadd.f32 %v3610, %v3611
    %v3613 = vrot.slane %v3552, 4
    %v3614 = vadd.f32 %v3552, %v3613
    %v3615 = vrot.slane %v3614, 2
    %v3616 = vadd.f32 %v3614, %v3615
    %v3617 = vrot.slane %v3616, 1
    %v3618 = vadd.f32 %v3616, %v3617
    %v3619 = vrot.slane %v3553, 4
    %v3620 = vadd.f32 %v3553, %v3619
    %v3621 = vrot.slane %v3620, 2
    %v3622 = vadd.f32 %v3620, %v3621
    %v3623 = vrot.slane %v3622, 1
    %v3624 = vadd.f32 %v3622, %v3623
    %v3625 = vrot.slane %v3554, 4
    %v3626 = vadd.f32 %v3554, %v3625
    %v3627 = vrot.slane %v3626, 2
    %v3628 = vadd.f32 %v3626, %v3627
    %v3629 = vrot.slane %v3628, 1
    %v3630 = vadd.f32 %v3628, %v3629
    %v3631 = vrot.slane %v3555, 4
    %v3632 = vadd.f32 %v3555, %v3631
    %v3633 = vrot.slane %v3632, 2
    %v3634 = vadd.f32 %v3632, %v3633
    %v3635 = vrot.slane %v3634, 1
    %v3636 = vadd.f32 %v3634, %v3635
    %v3637 = vrot.slane %v3556, 4
    %v3638 = vadd.f32 %v3556, %v3637
    %v3639 = vrot.slane %v3638, 2
    %v3640 = vadd.f32 %v3638, %v3639
    %v3641 = vrot.slane %v3640, 1
    %v3642 = vadd.f32 %v3640, %v3641
    %v3643 = vrot.slane %v3557, 4
    %v3644 = vadd.f32 %v3557, %v3643
    %v3645 = vrot.slane %v3644, 2
    %v3646 = vadd.f32 %v3644, %v3645
    %v3647 = vrot.slane %v3646, 1
    %v3648 = vadd.f32 %v3646, %v3647
    %v3649 = vrot.slane %v3558, 4
    %v3650 = vadd.f32 %v3558, %v3649
    %v3651 = vrot.slane %v3650, 2
    %v3652 = vadd.f32 %v3650, %v3651
    %v3653 = vrot.slane %v3652, 1
    %v3654 = vadd.f32 %v3652, %v3653
    %v3655 = vmul.f32 %v3612, 0.125
    %v3656 = vmul.f32 %v3618, 0.125
    %v3657 = vmul.f32 %v3624, 0.125
    %v3658 = vmul.f32 %v3630, 0.125
    %v3659 = vmul.f32 %v3636, 0.125
    %v3660 = vmul.f32 %v3642, 0.125
    %v3661 = vmul.f32 %v3648, 0.125
    %v3662 = vmul.f32 %v3654, 0.125
    %v3663 = vld [vmem:[#allocation11] sm:$0xff]
    %v3664 = vld [vmem:[#allocation11 + $0x8] sm:$0xff]
    %v3665 = vld [vmem:[#allocation11 + $0x10] sm:$0xff]
    %v3666 = vld [vmem:[#allocation11 + $0x18] sm:$0xff]
    %v3667 = vld [vmem:[#allocation11 + $0x20] sm:$0xff]
    %v3668 = vld [vmem:[#allocation11 + $0x28] sm:$0xff]
    %v3669 = vld [vmem:[#allocation11 + $0x30] sm:$0xff]
    %v3670 = vld [vmem:[#allocation11 + $0x38] sm:$0xff]
    %v3671 = vld [vmem:[#allocation11 + $0x40] sm:$0xff]
    %v3672 = vld [vmem:[#allocation11 + $0x48] sm:$0xff]
    %v3673 = vld [vmem:[#allocation11 + $0x50] sm:$0xff]
    %v3674 = vld [vmem:[#allocation11 + $0x58] sm:$0xff]
    %v3675 = vld [vmem:[#allocation11 + $0x60] sm:$0xff]
    %v3676 = vld [vmem:[#allocation11 + $0x68] sm:$0xff]
    %v3677 = vld [vmem:[#allocation11 + $0x70] sm:$0xff]
    %v3678 = vld [vmem:[#allocation11 + $0x78] sm:$0xff]
    %v3679 = vld [vmem:[#allocation11 + $0x80] sm:$0xff]
    %v3680 = vld [vmem:[#allocation11 + $0x88] sm:$0xff]
    %v3681 = vld [vmem:[#allocation11 + $0x90] sm:$0xff]
    %v3682 = vld [vmem:[#allocation11 + $0x98] sm:$0xff]
    %v3683 = vld [vmem:[#allocation11 + $0xa0] sm:$0xff]
    %v3684 = vld [vmem:[#allocation11 + $0xa8] sm:$0xff]
    %v3685 = vld [vmem:[#allocation11 + $0xb0] sm:$0xff]
    %v3686 = vld [vmem:[#allocation11 + $0xb8] sm:$0xff]
    %v3687 = vld [vmem:[#allocation11 + $0xc0] sm:$0xff]
    %v3688 = vld [vmem:[#allocation11 + $0xc8] sm:$0xff]
    %v3689 = vld [vmem:[#allocation11 + $0xd0] sm:$0xff]
    %v3690 = vld [vmem:[#allocation11 + $0xd8] sm:$0xff]
    %v3691 = vld [vmem:[#allocation11 + $0xe0] sm:$0xff]
    %v3692 = vld [vmem:[#allocation11 + $0xe8] sm:$0xff]
    %v3693 = vld [vmem:[#allocation11 + $0xf0] sm:$0xff]
    %v3694 = vld [vmem:[#allocation11 + $0xf8] sm:$0xff]
    %v3695 = vld [vmem:[#allocation11 + $0x100] sm:$0xff]
    %v3696 = vld [vmem:[#allocation11 + $0x108] sm:$0xff]
    %v3697 = vld [vmem:[#allocation11 + $0x110] sm:$0xff]
    %v3698 = vld [vmem:[#allocation11 + $0x118] sm:$0xff]
    %v3699 = vld [vmem:[#allocation11 + $0x120] sm:$0xff]
    %v3700 = vld [vmem:[#allocation11 + $0x128] sm:$0xff]
    %v3701 = vld [vmem:[#allocation11 + $0x130] sm:$0xff]
    %v3702 = vld [vmem:[#allocation11 + $0x138] sm:$0xff]
    %v3703 = vld [vmem:[#allocation11 + $0x140] sm:$0xff]
    %v3704 = vld [vmem:[#allocation11 + $0x148] sm:$0xff]
    %v3705 = vld [vmem:[#allocation11 + $0x150] sm:$0xff]
    %v3706 = vld [vmem:[#allocation11 + $0x158] sm:$0xff]
    %v3707 = vld [vmem:[#allocation11 + $0x160] sm:$0xff]
    %v3708 = vld [vmem:[#allocation11 + $0x168] sm:$0xff]
    %v3709 = vld [vmem:[#allocation11 + $0x170] sm:$0xff]
    %v3710 = vld [vmem:[#allocation11 + $0x178] sm:$0xff]
    %v3711 = vld [vmem:[#allocation11 + $0x180] sm:$0xff]
    %v3712 = vld [vmem:[#allocation11 + $0x188] sm:$0xff]
    %v3713 = vld [vmem:[#allocation11 + $0x190] sm:$0xff]
    %v3714 = vld [vmem:[#allocation11 + $0x198] sm:$0xff]
    %v3715 = vld [vmem:[#allocation11 + $0x1a0] sm:$0xff]
    %v3716 = vld [vmem:[#allocation11 + $0x1a8] sm:$0xff]
    %v3717 = vld [vmem:[#allocation11 + $0x1b0] sm:$0xff]
    %v3718 = vld [vmem:[#allocation11 + $0x1b8] sm:$0xff]
    %v3719 = vld [vmem:[#allocation11 + $0x1c0] sm:$0xff]
    %v3720 = vld [vmem:[#allocation11 + $0x1c8] sm:$0xff]
    %v3721 = vld [vmem:[#allocation11 + $0x1d0] sm:$0xff]
    %v3722 = vld [vmem:[#allocation11 + $0x1d8] sm:$0xff]
    %v3723 = vld [vmem:[#allocation11 + $0x1e0] sm:$0xff]
    %v3724 = vld [vmem:[#allocation11 + $0x1e8] sm:$0xff]
    %v3725 = vld [vmem:[#allocation11 + $0x1f0] sm:$0xff]
    %v3726 = vld [vmem:[#allocation11 + $0x1f8] sm:$0xff]
    %v3727 = vld [vmem:[#allocation11 + $0x200] sm:$0xff]
    %v3728 = vld [vmem:[#allocation11 + $0x208] sm:$0xff]
    %v3729 = vld [vmem:[#allocation11 + $0x210] sm:$0xff]
    %v3730 = vld [vmem:[#allocation11 + $0x218] sm:$0xff]
    %v3731 = vld [vmem:[#allocation11 + $0x220] sm:$0xff]
    %v3732 = vld [vmem:[#allocation11 + $0x228] sm:$0xff]
    %v3733 = vld [vmem:[#allocation11 + $0x230] sm:$0xff]
    %v3734 = vld [vmem:[#allocation11 + $0x238] sm:$0xff]
    %v3735 = vld [vmem:[#allocation11 + $0x240] sm:$0xff]
    %v3736 = vld [vmem:[#allocation11 + $0x248] sm:$0xff]
    %v3737 = vld [vmem:[#allocation11 + $0x250] sm:$0xff]
    %v3738 = vld [vmem:[#allocation11 + $0x258] sm:$0xff]
    %v3739 = vld [vmem:[#allocation11 + $0x260] sm:$0xff]
    %v3740 = vld [vmem:[#allocation11 + $0x268] sm:$0xff]
    %v3741 = vld [vmem:[#allocation11 + $0x270] sm:$0xff]
    %v3742 = vld [vmem:[#allocation11 + $0x278] sm:$0xff]
    %v3743 = vld [vmem:[#allocation11 + $0x280] sm:$0xff]
    %v3744 = vld [vmem:[#allocation11 + $0x288] sm:$0xff]
    %v3745 = vld [vmem:[#allocation11 + $0x290] sm:$0xff]
    %v3746 = vld [vmem:[#allocation11 + $0x298] sm:$0xff]
    %v3747 = vld [vmem:[#allocation11 + $0x2a0] sm:$0xff]
    %v3748 = vld [vmem:[#allocation11 + $0x2a8] sm:$0xff]
    %v3749 = vld [vmem:[#allocation11 + $0x2b0] sm:$0xff]
    %v3750 = vld [vmem:[#allocation11 + $0x2b8] sm:$0xff]
    %v3751 = vld [vmem:[#allocation11 + $0x2c0] sm:$0xff]
    %v3752 = vld [vmem:[#allocation11 + $0x2c8] sm:$0xff]
    %v3753 = vld [vmem:[#allocation11 + $0x2d0] sm:$0xff]
    %v3754 = vld [vmem:[#allocation11 + $0x2d8] sm:$0xff]
    %v3755 = vld [vmem:[#allocation11 + $0x2e0] sm:$0xff]
    %v3756 = vld [vmem:[#allocation11 + $0x2e8] sm:$0xff]
    %v3757 = vld [vmem:[#allocation11 + $0x2f0] sm:$0xff]
    %v3758 = vld [vmem:[#allocation11 + $0x2f8] sm:$0xff]
    %v3759 = vld [vmem:[#allocation11 + $0x300] sm:$0xff]
    %v3760 = vld [vmem:[#allocation11 + $0x308] sm:$0xff]
    %v3761 = vld [vmem:[#allocation11 + $0x310] sm:$0xff]
    %v3762 = vld [vmem:[#allocation11 + $0x318] sm:$0xff]
    %v3763 = vld [vmem:[#allocation11 + $0x320] sm:$0xff]
    %v3764 = vld [vmem:[#allocation11 + $0x328] sm:$0xff]
    %v3765 = vld [vmem:[#allocation11 + $0x330] sm:$0xff]
    %v3766 = vld [vmem:[#allocation11 + $0x338] sm:$0xff]
    %v3767 = vld [vmem:[#allocation11 + $0x340] sm:$0xff]
    %v3768 = vld [vmem:[#allocation11 + $0x348] sm:$0xff]
    %v3769 = vld [vmem:[#allocation11 + $0x350] sm:$0xff]
    %v3770 = vld [vmem:[#allocation11 + $0x358] sm:$0xff]
    %v3771 = vld [vmem:[#allocation11 + $0x360] sm:$0xff]
    %v3772 = vld [vmem:[#allocation11 + $0x368] sm:$0xff]
    %v3773 = vld [vmem:[#allocation11 + $0x370] sm:$0xff]
    %v3774 = vld [vmem:[#allocation11 + $0x378] sm:$0xff]
    %v3775 = vld [vmem:[#allocation11 + $0x380] sm:$0xff]
    %v3776 = vld [vmem:[#allocation11 + $0x388] sm:$0xff]
    %v3777 = vld [vmem:[#allocation11 + $0x390] sm:$0xff]
    %v3778 = vld [vmem:[#allocation11 + $0x398] sm:$0xff]
    %v3779 = vld [vmem:[#allocation11 + $0x3a0] sm:$0xff]
    %v3780 = vld [vmem:[#allocation11 + $0x3a8] sm:$0xff]
    %v3781 = vld [vmem:[#allocation11 + $0x3b0] sm:$0xff]
    %v3782 = vld [vmem:[#allocation11 + $0x3b8] sm:$0xff]
    %v3783 = vld [vmem:[#allocation11 + $0x3c0] sm:$0xff]
    %v3784 = vld [vmem:[#allocation11 + $0x3c8] sm:$0xff]
    %v3785 = vld [vmem:[#allocation11 + $0x3d0] sm:$0xff]
    %v3786 = vld [vmem:[#allocation11 + $0x3d8] sm:$0xff]
    %v3787 = vld [vmem:[#allocation11 + $0x3e0] sm:$0xff]
    %v3788 = vld [vmem:[#allocation11 + $0x3e8] sm:$0xff]
    %v3789 = vld [vmem:[#allocation11 + $0x3f0] sm:$0xff]
    %v3790 = vld [vmem:[#allocation11 + $0x3f8] sm:$0xff]
    %v3791 = vld [vmem:[#allocation13] sm:$0xff]
    %v3792 = vld [vmem:[#allocation13 + $0x8] sm:$0xff]
    %v3793 = vld [vmem:[#allocation13 + $0x10] sm:$0xff]
    %v3794 = vld [vmem:[#allocation13 + $0x18] sm:$0xff]
    %v3795 = vld [vmem:[#allocation13 + $0x20] sm:$0xff]
    %v3796 = vld [vmem:[#allocation13 + $0x28] sm:$0xff]
    %v3797 = vld [vmem:[#allocation13 + $0x30] sm:$0xff]
    %v3798 = vld [vmem:[#allocation13 + $0x38] sm:$0xff]
    %v3799 = vld [vmem:[#allocation13 + $0x40] sm:$0xff]
    %v3800 = vld [vmem:[#allocation13 + $0x48] sm:$0xff]
    %v3801 = vld [vmem:[#allocation13 + $0x50] sm:$0xff]
    %v3802 = vld [vmem:[#allocation13 + $0x58] sm:$0xff]
    %v3803 = vld [vmem:[#allocation13 + $0x60] sm:$0xff]
    %v3804 = vld [vmem:[#allocation13 + $0x68] sm:$0xff]
    %v3805 = vld [vmem:[#allocation13 + $0x70] sm:$0xff]
    %v3806 = vld [vmem:[#allocation13 + $0x78] sm:$0xff]
    %v3807 = vld [vmem:[#allocation13 + $0x80] sm:$0xff]
    %v3808 = vld [vmem:[#allocation13 + $0x88] sm:$0xff]
    %v3809 = vld [vmem:[#allocation13 + $0x90] sm:$0xff]
    %v3810 = vld [vmem:[#allocation13 + $0x98] sm:$0xff]
    %v3811 = vld [vmem:[#allocation13 + $0xa0] sm:$0xff]
    %v3812 = vld [vmem:[#allocation13 + $0xa8] sm:$0xff]
    %v3813 = vld [vmem:[#allocation13 + $0xb0] sm:$0xff]
    %v3814 = vld [vmem:[#allocation13 + $0xb8] sm:$0xff]
    %v3815 = vld [vmem:[#allocation13 + $0xc0] sm:$0xff]
    %v3816 = vld [vmem:[#allocation13 + $0xc8] sm:$0xff]
    %v3817 = vld [vmem:[#allocation13 + $0xd0] sm:$0xff]
    %v3818 = vld [vmem:[#allocation13 + $0xd8] sm:$0xff]
    %v3819 = vld [vmem:[#allocation13 + $0xe0] sm:$0xff]
    %v3820 = vld [vmem:[#allocation13 + $0xe8] sm:$0xff]
    %v3821 = vld [vmem:[#allocation13 + $0xf0] sm:$0xff]
    %v3822 = vld [vmem:[#allocation13 + $0xf8] sm:$0xff]
    %v3823 = vld [vmem:[#allocation13 + $0x100] sm:$0xff]
    %v3824 = vld [vmem:[#allocation13 + $0x108] sm:$0xff]
    %v3825 = vld [vmem:[#allocation13 + $0x110] sm:$0xff]
    %v3826 = vld [vmem:[#allocation13 + $0x118] sm:$0xff]
    %v3827 = vld [vmem:[#allocation13 + $0x120] sm:$0xff]
    %v3828 = vld [vmem:[#allocation13 + $0x128] sm:$0xff]
    %v3829 = vld [vmem:[#allocation13 + $0x130] sm:$0xff]
    %v3830 = vld [vmem:[#allocation13 + $0x138] sm:$0xff]
    %v3831 = vld [vmem:[#allocation13 + $0x140] sm:$0xff]
    %v3832 = vld [vmem:[#allocation13 + $0x148] sm:$0xff]
    %v3833 = vld [vmem:[#allocation13 + $0x150] sm:$0xff]
    %v3834 = vld [vmem:[#allocation13 + $0x158] sm:$0xff]
    %v3835 = vld [vmem:[#allocation13 + $0x160] sm:$0xff]
    %v3836 = vld [vmem:[#allocation13 + $0x168] sm:$0xff]
    %v3837 = vld [vmem:[#allocation13 + $0x170] sm:$0xff]
    %v3838 = vld [vmem:[#allocation13 + $0x178] sm:$0xff]
    %v3839 = vld [vmem:[#allocation13 + $0x180] sm:$0xff]
    %v3840 = vld [vmem:[#allocation13 + $0x188] sm:$0xff]
    %v3841 = vld [vmem:[#allocation13 + $0x190] sm:$0xff]
    %v3842 = vld [vmem:[#allocation13 + $0x198] sm:$0xff]
    %v3843 = vld [vmem:[#allocation13 + $0x1a0] sm:$0xff]
    %v3844 = vld [vmem:[#allocation13 + $0x1a8] sm:$0xff]
    %v3845 = vld [vmem:[#allocation13 + $0x1b0] sm:$0xff]
    %v3846 = vld [vmem:[#allocation13 + $0x1b8] sm:$0xff]
    %v3847 = vld [vmem:[#allocation13 + $0x1c0] sm:$0xff]
    %v3848 = vld [vmem:[#allocation13 + $0x1c8] sm:$0xff]
    %v3849 = vld [vmem:[#allocation13 + $0x1d0] sm:$0xff]
    %v3850 = vld [vmem:[#allocation13 + $0x1d8] sm:$0xff]
    %v3851 = vld [vmem:[#allocation13 + $0x1e0] sm:$0xff]
    %v3852 = vld [vmem:[#allocation13 + $0x1e8] sm:$0xff]
    %v3853 = vld [vmem:[#allocation13 + $0x1f0] sm:$0xff]
    %v3854 = vld [vmem:[#allocation13 + $0x1f8] sm:$0xff]
    %v3855 = vld [vmem:[#allocation13 + $0x200] sm:$0xff]
    %v3856 = vld [vmem:[#allocation13 + $0x208] sm:$0xff]
    %v3857 = vld [vmem:[#allocation13 + $0x210] sm:$0xff]
    %v3858 = vld [vmem:[#allocation13 + $0x218] sm:$0xff]
    %v3859 = vld [vmem:[#allocation13 + $0x220] sm:$0xff]
    %v3860 = vld [vmem:[#allocation13 + $0x228] sm:$0xff]
    %v3861 = vld [vmem:[#allocation13 + $0x230] sm:$0xff]
    %v3862 = vld [vmem:[#allocation13 + $0x238] sm:$0xff]
    %v3863 = vld [vmem:[#allocation13 + $0x240] sm:$0xff]
    %v3864 = vld [vmem:[#allocation13 + $0x248] sm:$0xff]
    %v3865 = vld [vmem:[#allocation13 + $0x250] sm:$0xff]
    %v3866 = vld [vmem:[#allocation13 + $0x258] sm:$0xff]
    %v3867 = vld [vmem:[#allocation13 + $0x260] sm:$0xff]
    %v3868 = vld [vmem:[#allocation13 + $0x268] sm:$0xff]
    %v3869 = vld [vmem:[#allocation13 + $0x270] sm:$0xff]
    %v3870 = vld [vmem:[#allocation13 + $0x278] sm:$0xff]
    %v3871 = vld [vmem:[#allocation13 + $0x280] sm:$0xff]
    %v3872 = vld [vmem:[#allocation13 + $0x288] sm:$0xff]
    %v3873 = vld [vmem:[#allocation13 + $0x290] sm:$0xff]
    %v3874 = vld [vmem:[#allocation13 + $0x298] sm:$0xff]
    %v3875 = vld [vmem:[#allocation13 + $0x2a0] sm:$0xff]
    %v3876 = vld [vmem:[#allocation13 + $0x2a8] sm:$0xff]
    %v3877 = vld [vmem:[#allocation13 + $0x2b0] sm:$0xff]
    %v3878 = vld [vmem:[#allocation13 + $0x2b8] sm:$0xff]
    %v3879 = vld [vmem:[#allocation13 + $0x2c0] sm:$0xff]
    %v3880 = vld [vmem:[#allocation13 + $0x2c8] sm:$0xff]
    %v3881 = vld [vmem:[#allocation13 + $0x2d0] sm:$0xff]
    %v3882 = vld [vmem:[#allocation13 + $0x2d8] sm:$0xff]
    %v3883 = vld [vmem:[#allocation13 + $0x2e0] sm:$0xff]
    %v3884 = vld [vmem:[#allocation13 + $0x2e8] sm:$0xff]
    %v3885 = vld [vmem:[#allocation13 + $0x2f0] sm:$0xff]
    %v3886 = vld [vmem:[#allocation13 + $0x2f8] sm:$0xff]
    %v3887 = vld [vmem:[#allocation13 + $0x300] sm:$0xff]
    %v3888 = vld [vmem:[#allocation13 + $0x308] sm:$0xff]
    %v3889 = vld [vmem:[#allocation13 + $0x310] sm:$0xff]
    %v3890 = vld [vmem:[#allocation13 + $0x318] sm:$0xff]
    %v3891 = vld [vmem:[#allocation13 + $0x320] sm:$0xff]
    %v3892 = vld [vmem:[#allocation13 + $0x328] sm:$0xff]
    %v3893 = vld [vmem:[#allocation13 + $0x330] sm:$0xff]
    %v3894 = vld [vmem:[#allocation13 + $0x338] sm:$0xff]
    %v3895 = vld [vmem:[#allocation13 + $0x340] sm:$0xff]
    %v3896 = vld [vmem:[#allocation13 + $0x348] sm:$0xff]
    %v3897 = vld [vmem:[#allocation13 + $0x350] sm:$0xff]
    %v3898 = vld [vmem:[#allocation13 + $0x358] sm:$0xff]
    %v3899 = vld [vmem:[#allocation13 + $0x360] sm:$0xff]
    %v3900 = vld [vmem:[#allocation13 + $0x368] sm:$0xff]
    %v3901 = vld [vmem:[#allocation13 + $0x370] sm:$0xff]
    %v3902 = vld [vmem:[#allocation13 + $0x378] sm:$0xff]
    %v3903 = vld [vmem:[#allocation13 + $0x380] sm:$0xff]
    %v3904 = vld [vmem:[#allocation13 + $0x388] sm:$0xff]
    %v3905 = vld [vmem:[#allocation13 + $0x390] sm:$0xff]
    %v3906 = vld [vmem:[#allocation13 + $0x398] sm:$0xff]
    %v3907 = vld [vmem:[#allocation13 + $0x3a0] sm:$0xff]
    %v3908 = vld [vmem:[#allocation13 + $0x3a8] sm:$0xff]
    %v3909 = vld [vmem:[#allocation13 + $0x3b0] sm:$0xff]
    %v3910 = vld [vmem:[#allocation13 + $0x3b8] sm:$0xff]
    %v3911 = vld [vmem:[#allocation13 + $0x3c0] sm:$0xff]
    %v3912 = vld [vmem:[#allocation13 + $0x3c8] sm:$0xff]
    %v3913 = vld [vmem:[#allocation13 + $0x3d0] sm:$0xff]
    %v3914 = vld [vmem:[#allocation13 + $0x3d8] sm:$0xff]
    %v3915 = vld [vmem:[#allocation13 + $0x3e0] sm:$0xff]
    %v3916 = vld [vmem:[#allocation13 + $0x3e8] sm:$0xff]
    %v3917 = vld [vmem:[#allocation13 + $0x3f0] sm:$0xff]
    %v3918 = vld [vmem:[#allocation13 + $0x3f8] sm:$0xff]
    %v3919 = vld [vmem:[#allocation14] sm:$0xf]
    %v3920 = vld [vmem:[#allocation14 + $0x4] sm:$0xf]
    %v3921 = vld [vmem:[#allocation14 + $0x8] sm:$0xf]
    %v3922 = vld [vmem:[#allocation14 + $0xc] sm:$0xf]
    %v3923 = vld [vmem:[#allocation14 + $0x10] sm:$0xf]
    %v3924 = vld [vmem:[#allocation14 + $0x14] sm:$0xf]
    %v3925 = vld [vmem:[#allocation14 + $0x18] sm:$0xf]
    %v3926 = vld [vmem:[#allocation14 + $0x1c] sm:$0xf]
    %v3927 = vld [vmem:[#allocation14 + $0x20] sm:$0xf]
    %v3928 = vld [vmem:[#allocation14 + $0x24] sm:$0xf]
    %v3929 = vld [vmem:[#allocation14 + $0x28] sm:$0xf]
    %v3930 = vld [vmem:[#allocation14 + $0x2c] sm:$0xf]
    %v3931 = vld [vmem:[#allocation14 + $0x30] sm:$0xf]
    %v3932 = vld [vmem:[#allocation14 + $0x34] sm:$0xf]
    %v3933 = vld [vmem:[#allocation14 + $0x38] sm:$0xf]
    %v3934 = vld [vmem:[#allocation14 + $0x3c] sm:$0xf]
    %v3935 = vld [vmem:[#allocation14 + $0x40] sm:$0xf]
    %v3936 = vld [vmem:[#allocation14 + $0x44] sm:$0xf]
    %v3937 = vld [vmem:[#allocation14 + $0x48] sm:$0xf]
    %v3938 = vld [vmem:[#allocation14 + $0x4c] sm:$0xf]
    %v3939 = vld [vmem:[#allocation14 + $0x50] sm:$0xf]
    %v3940 = vld [vmem:[#allocation14 + $0x54] sm:$0xf]
    %v3941 = vld [vmem:[#allocation14 + $0x58] sm:$0xf]
    %v3942 = vld [vmem:[#allocation14 + $0x5c] sm:$0xf]
    %v3943 = vld [vmem:[#allocation14 + $0x60] sm:$0xf]
    %v3944 = vld [vmem:[#allocation14 + $0x64] sm:$0xf]
    %v3945 = vld [vmem:[#allocation14 + $0x68] sm:$0xf]
    %v3946 = vld [vmem:[#allocation14 + $0x6c] sm:$0xf]
    %v3947 = vld [vmem:[#allocation14 + $0x70] sm:$0xf]
    %v3948 = vld [vmem:[#allocation14 + $0x74] sm:$0xf]
    %v3949 = vld [vmem:[#allocation14 + $0x78] sm:$0xf]
    %v3950 = vld [vmem:[#allocation14 + $0x7c] sm:$0xf]
    %v3951 = vld [vmem:[#allocation14 + $0x80] sm:$0xf]
    %v3952 = vld [vmem:[#allocation14 + $0x84] sm:$0xf]
    %v3953 = vld [vmem:[#allocation14 + $0x88] sm:$0xf]
    %v3954 = vld [vmem:[#allocation14 + $0x8c] sm:$0xf]
    %v3955 = vld [vmem:[#allocation14 + $0x90] sm:$0xf]
    %v3956 = vld [vmem:[#allocation14 + $0x94] sm:$0xf]
    %v3957 = vld [vmem:[#allocation14 + $0x98] sm:$0xf]
    %v3958 = vld [vmem:[#allocation14 + $0x9c] sm:$0xf]
    %v3959 = vld [vmem:[#allocation14 + $0xa0] sm:$0xf]
    %v3960 = vld [vmem:[#allocation14 + $0xa4] sm:$0xf]
    %v3961 = vld [vmem:[#allocation14 + $0xa8] sm:$0xf]
    %v3962 = vld [vmem:[#allocation14 + $0xac] sm:$0xf]
    %v3963 = vld [vmem:[#allocation14 + $0xb0] sm:$0xf]
    %v3964 = vld [vmem:[#allocation14 + $0xb4] sm:$0xf]
    %v3965 = vld [vmem:[#allocation14 + $0xb8] sm:$0xf]
    %v3966 = vld [vmem:[#allocation14 + $0xbc] sm:$0xf]
    %v3967 = vld [vmem:[#allocation14 + $0xc0] sm:$0xf]
    %v3968 = vld [vmem:[#allocation14 + $0xc4] sm:$0xf]
    %v3969 = vld [vmem:[#allocation14 + $0xc8] sm:$0xf]
    %v3970 = vld [vmem:[#allocation14 + $0xcc] sm:$0xf]
    %v3971 = vld [vmem:[#allocation14 + $0xd0] sm:$0xf]
    %v3972 = vld [vmem:[#allocation14 + $0xd4] sm:$0xf]
    %v3973 = vld [vmem:[#allocation14 + $0xd8] sm:$0xf]
    %v3974 = vld [vmem:[#allocation14 + $0xdc] sm:$0xf]
    %v3975 = vld [vmem:[#allocation14 + $0xe0] sm:$0xf]
    %v3976 = vld [vmem:[#allocation14 + $0xe4] sm:$0xf]
    %v3977 = vld [vmem:[#allocation14 + $0xe8] sm:$0xf]
    %v3978 = vld [vmem:[#allocation14 + $0xec] sm:$0xf]
    %v3979 = vld [vmem:[#allocation14 + $0xf0] sm:$0xf]
    %v3980 = vld [vmem:[#allocation14 + $0xf4] sm:$0xf]
    %v3981 = vld [vmem:[#allocation14 + $0xf8] sm:$0xf]
    %v3982 = vld [vmem:[#allocation14 + $0xfc] sm:$0xf]
    %s3983 = scalar_lea.vmem %s3, 4
    %v3984 = vld [vmem:[%s3983] ss:$8 sm:$0xf]
    %v3985 = vld [vmem:[%s3 + $0x5] ss:$0 sm:$0xff]
    %v3986 = vpack.c.bf16 %v3564, %v3564
    %v3987 = vpack.c.bf16 %v3570, %v3570
    %v3988 = vpack.c.bf16 %v3576, %v3576
    %v3989 = vpack.c.bf16 %v3582, %v3582
    %v3990 = vpack.c.bf16 %v3588, %v3588
    %v3991 = vpack.c.bf16 %v3594, %v3594
    %v3992 = vpack.c.bf16 %v3600, %v3600
    %v3993 = vpack.c.bf16 %v3606, %v3606
    %v3994 = vpack.c.bf16 %v3655, %v3655
    %v3995 = vpack.c.bf16 %v3656, %v3656
    %v3996 = vpack.c.bf16 %v3657, %v3657
    %v3997 = vpack.c.bf16 %v3658, %v3658
    %v3998 = vpack.c.bf16 %v3659, %v3659
    %v3999 = vpack.c.bf16 %v3660, %v3660
    %v4000 = vpack.c.bf16 %v3661, %v3661
    %v4001 = vpack.c.bf16 %v3662, %v3662
    %v4010 = vunpack.c.l.b16 %v3994
    %v4011 = vunpack.c.l.b16 %v3995
    %v4012 = vunpack.c.l.b16 %v3996
    %v4013 = vunpack.c.l.b16 %v3997
    %v4014 = vunpack.c.l.b16 %v3998
    %v4015 = vunpack.c.l.b16 %v3999
    %v4016 = vunpack.c.l.b16 %v4000
    %v4017 = vunpack.c.l.b16 %v4001
    %vm4018 = vcmask 1041409
    %v4019 = vsel %vm4018, %v4014, %v4010
    %v4020 = vsel %vm4018, %v4015, %v4011
    %v4021 = vsel %vm4018, %v4016, %v4012
    %v4022 = vsel %vm4018, %v4017, %v4013
    %v4023 = vpack.c.b16 %v4019, %v4019
    %v4024 = vpack.c.b16 %v4020, %v4020
    %v4025 = vpack.c.b16 %v4021, %v4021
    %v4026 = vpack.c.b16 %v4022, %v4022
    %v4159 = vunpack.c.l.b16 %v3791
    %v4160 = vunpack.c.h.b16 %v3791
    %v4161 = vunpack.c.l.b16 %v3792
    %v4162 = vunpack.c.h.b16 %v3792
    %v4163 = vunpack.c.l.b16 %v3793
    %v4164 = vunpack.c.h.b16 %v3793
    %v4165 = vunpack.c.l.b16 %v3794
    %v4166 = vunpack.c.h.b16 %v3794
    %v4167 = vunpack.c.l.b16 %v3795
    %v4168 = vunpack.c.h.b16 %v3795
    %v4169 = vunpack.c.l.b16 %v3796
    %v4170 = vunpack.c.h.b16 %v3796
    %v4171 = vunpack.c.l.b16 %v3797
    %v4172 = vunpack.c.h.b16 %v3797
    %v4173 = vunpack.c.l.b16 %v3798
    %v4174 = vunpack.c.h.b16 %v3798
    %v4175 = vunpack.c.l.b16 %v3799
    %v4176 = vunpack.c.h.b16 %v3799
    %v4177 = vunpack.c.l.b16 %v3800
    %v4178 = vunpack.c.h.b16 %v3800
    %v4179 = vunpack.c.l.b16 %v3801
    %v4180 = vunpack.c.h.b16 %v3801
    %v4181 = vunpack.c.l.b16 %v3802
    %v4182 = vunpack.c.h.b16 %v3802
    %v4183 = vunpack.c.l.b16 %v3803
    %v4184 = vunpack.c.h.b16 %v3803
    %v4185 = vunpack.c.l.b16 %v3804
    %v4186 = vunpack.c.h.b16 %v3804
    %v4187 = vunpack.c.l.b16 %v3805
    %v4188 = vunpack.c.h.b16 %v3805
    %v4189 = vunpack.c.l.b16 %v3806
    %v4190 = vunpack.c.h.b16 %v3806
    %v4191 = vunpack.c.l.b16 %v3807
    %v4192 = vunpack.c.h.b16 %v3807
    %v4193 = vunpack.c.l.b16 %v3808
    %v4194 = vunpack.c.h.b16 %v3808
    %v4195 = vunpack.c.l.b16 %v3809
    %v4196 = vunpack.c.h.b16 %v3809
    %v4197 = vunpack.c.l.b16 %v3810
    %v4198 = vunpack.c.h.b16 %v3810
    %v4199 = vunpack.c.l.b16 %v3811
    %v4200 = vunpack.c.h.b16 %v3811
    %v4201 = vunpack.c.l.b16 %v3812
    %v4202 = vunpack.c.h.b16 %v3812
    %v4203 = vunpack.c.l.b16 %v3813
    %v4204 = vunpack.c.h.b16 %v3813
    %v4205 = vunpack.c.l.b16 %v3814
    %v4206 = vunpack.c.h.b16 %v3814
    %v4207 = vunpack.c.l.b16 %v3815
    %v4208 = vunpack.c.h.b16 %v3815
    %v4209 = vunpack.c.l.b16 %v3816
    %v4210 = vunpack.c.h.b16 %v3816
    %v4211 = vunpack.c.l.b16 %v3817
    %v4212 = vunpack.c.h.b16 %v3817
    %v4213 = vunpack.c.l.b16 %v3818
    %v4214 = vunpack.c.h.b16 %v3818
    %v4215 = vunpack.c.l.b16 %v3819
    %v4216 = vunpack.c.h.b16 %v3819
    %v4217 = vunpack.c.l.b16 %v3820
    %v4218 = vunpack.c.h.b16 %v3820
    %v4219 = vunpack.c.l.b16 %v3821
    %v4220 = vunpack.c.h.b16 %v3821
    %v4221 = vunpack.c.l.b16 %v3822
    %v4222 = vunpack.c.h.b16 %v3822
    %v4223 = vunpack.c.l.b16 %v3823
    %v4224 = vunpack.c.h.b16 %v3823
    %v4225 = vunpack.c.l.b16 %v3824
    %v4226 = vunpack.c.h.b16 %v3824
    %v4227 = vunpack.c.l.b16 %v3825
    %v4228 = vunpack.c.h.b16 %v3825
    %v4229 = vunpack.c.l.b16 %v3826
    %v4230 = vunpack.c.h.b16 %v3826
    %v4231 = vunpack.c.l.b16 %v3827
    %v4232 = vunpack.c.h.b16 %v3827
    %v4233 = vunpack.c.l.b16 %v3828
    %v4234 = vunpack.c.h.b16 %v3828
    %v4235 = vunpack.c.l.b16 %v3829
    %v4236 = vunpack.c.h.b16 %v3829
    %v4237 = vunpack.c.l.b16 %v3830
    %v4238 = vunpack.c.h.b16 %v3830
    %v4239 = vunpack.c.l.b16 %v3831
    %v4240 = vunpack.c.h.b16 %v3831
    %v4241 = vunpack.c.l.b16 %v3832
    %v4242 = vunpack.c.h.b16 %v3832
    %v4243 = vunpack.c.l.b16 %v3833
    %v4244 = vunpack.c.h.b16 %v3833
    %v4245 = vunpack.c.l.b16 %v3834
    %v4246 = vunpack.c.h.b16 %v3834
    %v4247 = vunpack.c.l.b16 %v3835
    %v4248 = vunpack.c.h.b16 %v3835
    %v4249 = vunpack.c.l.b16 %v3836
    %v4250 = vunpack.c.h.b16 %v3836
    %v4251 = vunpack.c.l.b16 %v3837
    %v4252 = vunpack.c.h.b16 %v3837
    %v4253 = vunpack.c.l.b16 %v3838
    %v4254 = vunpack.c.h.b16 %v3838
    %v4255 = vunpack.c.l.b16 %v3839
    %v4256 = vunpack.c.h.b16 %v3839
    %v4257 = vunpack.c.l.b16 %v3840
    %v4258 = vunpack.c.h.b16 %v3840
    %v4259 = vunpack.c.l.b16 %v3841
    %v4260 = vunpack.c.h.b16 %v3841
    %v4261 = vunpack.c.l.b16 %v3842
    %v4262 = vunpack.c.h.b16 %v3842
    %v4263 = vunpack.c.l.b16 %v3843
    %v4264 = vunpack.c.h.b16 %v3843
    %v4265 = vunpack.c.l.b16 %v3844
    %v4266 = vunpack.c.h.b16 %v3844
    %v4267 = vunpack.c.l.b16 %v3845
    %v4268 = vunpack.c.h.b16 %v3845
    %v4269 = vunpack.c.l.b16 %v3846
    %v4270 = vunpack.c.h.b16 %v3846
    %v4271 = vunpack.c.l.b16 %v3847
    %v4272 = vunpack.c.h.b16 %v3847
    %v4273 = vunpack.c.l.b16 %v3848
    %v4274 = vunpack.c.h.b16 %v3848
    %v4275 = vunpack.c.l.b16 %v3849
    %v4276 = vunpack.c.h.b16 %v3849
    %v4277 = vunpack.c.l.b16 %v3850
    %v4278 = vunpack.c.h.b16 %v3850
    %v4279 = vunpack.c.l.b16 %v3851
    %v4280 = vunpack.c.h.b16 %v3851
    %v4281 = vunpack.c.l.b16 %v3852
    %v4282 = vunpack.c.h.b16 %v3852
    %v4283 = vunpack.c.l.b16 %v3853
    %v4284 = vunpack.c.h.b16 %v3853
    %v4285 = vunpack.c.l.b16 %v3854
    %v4286 = vunpack.c.h.b16 %v3854
    %v4287 = vunpack.c.l.b16 %v3855
    %v4288 = vunpack.c.h.b16 %v3855
    %v4289 = vunpack.c.l.b16 %v3856
    %v4290 = vunpack.c.h.b16 %v3856
    %v4291 = vunpack.c.l.b16 %v3857
    %v4292 = vunpack.c.h.b16 %v3857
    %v4293 = vunpack.c.l.b16 %v3858
    %v4294 = vunpack.c.h.b16 %v3858
    %v4295 = vunpack.c.l.b16 %v3859
    %v4296 = vunpack.c.h.b16 %v3859
    %v4297 = vunpack.c.l.b16 %v3860
    %v4298 = vunpack.c.h.b16 %v3860
    %v4299 = vunpack.c.l.b16 %v3861
    %v4300 = vunpack.c.h.b16 %v3861
    %v4301 = vunpack.c.l.b16 %v3862
    %v4302 = vunpack.c.h.b16 %v3862
    %v4303 = vunpack.c.l.b16 %v3863
    %v4304 = vunpack.c.h.b16 %v3863
    %v4305 = vunpack.c.l.b16 %v3864
    %v4306 = vunpack.c.h.b16 %v3864
    %v4307 = vunpack.c.l.b16 %v3865
    %v4308 = vunpack.c.h.b16 %v3865
    %v4309 = vunpack.c.l.b16 %v3866
    %v4310 = vunpack.c.h.b16 %v3866
    %v4311 = vunpack.c.l.b16 %v3867
    %v4312 = vunpack.c.h.b16 %v3867
    %v4313 = vunpack.c.l.b16 %v3868
    %v4314 = vunpack.c.h.b16 %v3868
    %v4315 = vunpack.c.l.b16 %v3869
    %v4316 = vunpack.c.h.b16 %v3869
    %v4317 = vunpack.c.l.b16 %v3870
    %v4318 = vunpack.c.h.b16 %v3870
    %v4319 = vunpack.c.l.b16 %v3871
    %v4320 = vunpack.c.h.b16 %v3871
    %v4321 = vunpack.c.l.b16 %v3872
    %v4322 = vunpack.c.h.b16 %v3872
    %v4323 = vunpack.c.l.b16 %v3873
    %v4324 = vunpack.c.h.b16 %v3873
    %v4325 = vunpack.c.l.b16 %v3874
    %v4326 = vunpack.c.h.b16 %v3874
    %v4327 = vunpack.c.l.b16 %v3875
    %v4328 = vunpack.c.h.b16 %v3875
    %v4329 = vunpack.c.l.b16 %v3876
    %v4330 = vunpack.c.h.b16 %v3876
    %v4331 = vunpack.c.l.b16 %v3877
    %v4332 = vunpack.c.h.b16 %v3877
    %v4333 = vunpack.c.l.b16 %v3878
    %v4334 = vunpack.c.h.b16 %v3878
    %v4335 = vunpack.c.l.b16 %v3879
    %v4336 = vunpack.c.h.b16 %v3879
    %v4337 = vunpack.c.l.b16 %v3880
    %v4338 = vunpack.c.h.b16 %v3880
    %v4339 = vunpack.c.l.b16 %v3881
    %v4340 = vunpack.c.h.b16 %v3881
    %v4341 = vunpack.c.l.b16 %v3882
    %v4342 = vunpack.c.h.b16 %v3882
    %v4343 = vunpack.c.l.b16 %v3883
    %v4344 = vunpack.c.h.b16 %v3883
    %v4345 = vunpack.c.l.b16 %v3884
    %v4346 = vunpack.c.h.b16 %v3884
    %v4347 = vunpack.c.l.b16 %v3885
    %v4348 = vunpack.c.h.b16 %v3885
    %v4349 = vunpack.c.l.b16 %v3886
    %v4350 = vunpack.c.h.b16 %v3886
    %v4351 = vunpack.c.l.b16 %v3887
    %v4352 = vunpack.c.h.b16 %v3887
    %v4353 = vunpack.c.l.b16 %v3888
    %v4354 = vunpack.c.h.b16 %v3888
    %v4355 = vunpack.c.l.b16 %v3889
    %v4356 = vunpack.c.h.b16 %v3889
    %v4357 = vunpack.c.l.b16 %v3890
    %v4358 = vunpack.c.h.b16 %v3890
    %v4359 = vunpack.c.l.b16 %v3891
    %v4360 = vunpack.c.h.b16 %v3891
    %v4361 = vunpack.c.l.b16 %v3892
    %v4362 = vunpack.c.h.b16 %v3892
    %v4363 = vunpack.c.l.b16 %v3893
    %v4364 = vunpack.c.h.b16 %v3893
    %v4365 = vunpack.c.l.b16 %v3894
    %v4366 = vunpack.c.h.b16 %v3894
    %v4367 = vunpack.c.l.b16 %v3895
    %v4368 = vunpack.c.h.b16 %v3895
    %v4369 = vunpack.c.l.b16 %v3896
    %v4370 = vunpack.c.h.b16 %v3896
    %v4371 = vunpack.c.l.b16 %v3897
    %v4372 = vunpack.c.h.b16 %v3897
    %v4373 = vunpack.c.l.b16 %v3898
    %v4374 = vunpack.c.h.b16 %v3898
    %v4375 = vunpack.c.l.b16 %v3899
    %v4376 = vunpack.c.h.b16 %v3899
    %v4377 = vunpack.c.l.b16 %v3900
    %v4378 = vunpack.c.h.b16 %v3900
    %v4379 = vunpack.c.l.b16 %v3901
    %v4380 = vunpack.c.h.b16 %v3901
    %v4381 = vunpack.c.l.b16 %v3902
    %v4382 = vunpack.c.h.b16 %v3902
    %v4383 = vunpack.c.l.b16 %v3903
    %v4384 = vunpack.c.h.b16 %v3903
    %v4385 = vunpack.c.l.b16 %v3904
    %v4386 = vunpack.c.h.b16 %v3904
    %v4387 = vunpack.c.l.b16 %v3905
    %v4388 = vunpack.c.h.b16 %v3905
    %v4389 = vunpack.c.l.b16 %v3906
    %v4390 = vunpack.c.h.b16 %v3906
    %v4391 = vunpack.c.l.b16 %v3907
    %v4392 = vunpack.c.h.b16 %v3907
    %v4393 = vunpack.c.l.b16 %v3908
    %v4394 = vunpack.c.h.b16 %v3908
    %v4395 = vunpack.c.l.b16 %v3909
    %v4396 = vunpack.c.h.b16 %v3909
    %v4397 = vunpack.c.l.b16 %v3910
    %v4398 = vunpack.c.h.b16 %v3910
    %v4399 = vunpack.c.l.b16 %v3911
    %v4400 = vunpack.c.h.b16 %v3911
    %v4401 = vunpack.c.l.b16 %v3912
    %v4402 = vunpack.c.h.b16 %v3912
    %v4403 = vunpack.c.l.b16 %v3913
    %v4404 = vunpack.c.h.b16 %v3913
    %v4405 = vunpack.c.l.b16 %v3914
    %v4406 = vunpack.c.h.b16 %v3914
    %v4407 = vunpack.c.l.b16 %v3915
    %v4408 = vunpack.c.h.b16 %v3915
    %v4409 = vunpack.c.l.b16 %v3916
    %v4410 = vunpack.c.h.b16 %v3916
    %v4411 = vunpack.c.l.b16 %v3917
    %v4412 = vunpack.c.h.b16 %v3917
    %v4413 = vunpack.c.l.b16 %v3918
    %v4414 = vunpack.c.h.b16 %v3918
    %v4415 = vpack.c.b16 %v4163, %v4159
    %v4416 = vpack.c.b16 %v4164, %v4160
    %v4417 = vpack.c.b16 %v4165, %v4161
    %v4418 = vpack.c.b16 %v4166, %v4162
    %v4419 = vpack.c.b16 %v4171, %v4167
    %v4420 = vpack.c.b16 %v4172, %v4168
    %v4421 = vpack.c.b16 %v4173, %v4169
    %v4422 = vpack.c.b16 %v4174, %v4170
    %v4423 = vpack.c.b16 %v4179, %v4175
    %v4424 = vpack.c.b16 %v4180, %v4176
    %v4425 = vpack.c.b16 %v4181, %v4177
    %v4426 = vpack.c.b16 %v4182, %v4178
    %v4427 = vpack.c.b16 %v4187, %v4183
    %v4428 = vpack.c.b16 %v4188, %v4184
    %v4429 = vpack.c.b16 %v4189, %v4185
    %v4430 = vpack.c.b16 %v4190, %v4186
    %v4431 = vpack.c.b16 %v4195, %v4191
    %v4432 = vpack.c.b16 %v4196, %v4192
    %v4433 = vpack.c.b16 %v4197, %v4193
    %v4434 = vpack.c.b16 %v4198, %v4194
    %v4435 = vpack.c.b16 %v4203, %v4199
    %v4436 = vpack.c.b16 %v4204, %v4200
    %v4437 = vpack.c.b16 %v4205, %v4201
    %v4438 = vpack.c.b16 %v4206, %v4202
    %v4439 = vpack.c.b16 %v4211, %v4207
    %v4440 = vpack.c.b16 %v4212, %v4208
    %v4441 = vpack.c.b16 %v4213, %v4209
    %v4442 = vpack.c.b16 %v4214, %v4210
    %v4443 = vpack.c.b16 %v4219, %v4215
    %v4444 = vpack.c.b16 %v4220, %v4216
    %v4445 = vpack.c.b16 %v4221, %v4217
    %v4446 = vpack.c.b16 %v4222, %v4218
    %v4447 = vpack.c.b16 %v4227, %v4223
    %v4448 = vpack.c.b16 %v4228, %v4224
    %v4449 = vpack.c.b16 %v4229, %v4225
    %v4450 = vpack.c.b16 %v4230, %v4226
    %v4451 = vpack.c.b16 %v4235, %v4231
    %v4452 = vpack.c.b16 %v4236, %v4232
    %v4453 = vpack.c.b16 %v4237, %v4233
    %v4454 = vpack.c.b16 %v4238, %v4234
    %v4455 = vpack.c.b16 %v4243, %v4239
    %v4456 = vpack.c.b16 %v4244, %v4240
    %v4457 = vpack.c.b16 %v4245, %v4241
    %v4458 = vpack.c.b16 %v4246, %v4242
    %v4459 = vpack.c.b16 %v4251, %v4247
    %v4460 = vpack.c.b16 %v4252, %v4248
    %v4461 = vpack.c.b16 %v4253, %v4249
    %v4462 = vpack.c.b16 %v4254, %v4250
    %v4463 = vpack.c.b16 %v4259, %v4255
    %v4464 = vpack.c.b16 %v4260, %v4256
    %v4465 = vpack.c.b16 %v4261, %v4257
    %v4466 = vpack.c.b16 %v4262, %v4258
    %v4467 = vpack.c.b16 %v4267, %v4263
    %v4468 = vpack.c.b16 %v4268, %v4264
    %v4469 = vpack.c.b16 %v4269, %v4265
    %v4470 = vpack.c.b16 %v4270, %v4266
    %v4471 = vpack.c.b16 %v4275, %v4271
    %v4472 = vpack.c.b16 %v4276, %v4272
    %v4473 = vpack.c.b16 %v4277, %v4273
    %v4474 = vpack.c.b16 %v4278, %v4274
    %v4475 = vpack.c.b16 %v4283, %v4279
    %v4476 = vpack.c.b16 %v4284, %v4280
    %v4477 = vpack.c.b16 %v4285, %v4281
    %v4478 = vpack.c.b16 %v4286, %v4282
    %v4479 = vpack.c.b16 %v4291, %v4287
    %v4480 = vpack.c.b16 %v4292, %v4288
    %v4481 = vpack.c.b16 %v4293, %v4289
    %v4482 = vpack.c.b16 %v4294, %v4290
    %v4483 = vpack.c.b16 %v4299, %v4295
    %v4484 = vpack.c.b16 %v4300, %v4296
    %v4485 = vpack.c.b16 %v4301, %v4297
    %v4486 = vpack.c.b16 %v4302, %v4298
    %v4487 = vpack.c.b16 %v4307, %v4303
    %v4488 = vpack.c.b16 %v4308, %v4304
    %v4489 = vpack.c.b16 %v4309, %v4305
    %v4490 = vpack.c.b16 %v4310, %v4306
    %v4491 = vpack.c.b16 %v4315, %v4311
    %v4492 = vpack.c.b16 %v4316, %v4312
    %v4493 = vpack.c.b16 %v4317, %v4313
    %v4494 = vpack.c.b16 %v4318, %v4314
    %v4495 = vpack.c.b16 %v4323, %v4319
    %v4496 = vpack.c.b16 %v4324, %v4320
    %v4497 = vpack.c.b16 %v4325, %v4321
    %v4498 = vpack.c.b16 %v4326, %v4322
    %v4499 = vpack.c.b16 %v4331, %v4327
    %v4500 = vpack.c.b16 %v4332, %v4328
    %v4501 = vpack.c.b16 %v4333, %v4329
    %v4502 = vpack.c.b16 %v4334, %v4330
    %v4503 = vpack.c.b16 %v4339, %v4335
    %v4504 = vpack.c.b16 %v4340, %v4336
    %v4505 = vpack.c.b16 %v4341, %v4337
    %v4506 = vpack.c.b16 %v4342, %v4338
    %v4507 = vpack.c.b16 %v4347, %v4343
    %v4508 = vpack.c.b16 %v4348, %v4344
    %v4509 = vpack.c.b16 %v4349, %v4345
    %v4510 = vpack.c.b16 %v4350, %v4346
    %v4511 = vpack.c.b16 %v4355, %v4351
    %v4512 = vpack.c.b16 %v4356, %v4352
    %v4513 = vpack.c.b16 %v4357, %v4353
    %v4514 = vpack.c.b16 %v4358, %v4354
    %v4515 = vpack.c.b16 %v4363, %v4359
    %v4516 = vpack.c.b16 %v4364, %v4360
    %v4517 = vpack.c.b16 %v4365, %v4361
    %v4518 = vpack.c.b16 %v4366, %v4362
    %v4519 = vpack.c.b16 %v4371, %v4367
    %v4520 = vpack.c.b16 %v4372, %v4368
    %v4521 = vpack.c.b16 %v4373, %v4369
    %v4522 = vpack.c.b16 %v4374, %v4370
    %v4523 = vpack.c.b16 %v4379, %v4375
    %v4524 = vpack.c.b16 %v4380, %v4376
    %v4525 = vpack.c.b16 %v4381, %v4377
    %v4526 = vpack.c.b16 %v4382, %v4378
    %v4527 = vpack.c.b16 %v4387, %v4383
    %v4528 = vpack.c.b16 %v4388, %v4384
    %v4529 = vpack.c.b16 %v4389, %v4385
    %v4530 = vpack.c.b16 %v4390, %v4386
    %v4531 = vpack.c.b16 %v4395, %v4391
    %v4532 = vpack.c.b16 %v4396, %v4392
    %v4533 = vpack.c.b16 %v4397, %v4393
    %v4534 = vpack.c.b16 %v4398, %v4394
    %v4535 = vpack.c.b16 %v4403, %v4399
    %v4536 = vpack.c.b16 %v4404, %v4400
    %v4537 = vpack.c.b16 %v4405, %v4401
    %v4538 = vpack.c.b16 %v4406, %v4402
    %v4539 = vpack.c.b16 %v4411, %v4407
    %v4540 = vpack.c.b16 %v4412, %v4408
    %v4541 = vpack.c.b16 %v4413, %v4409
    %v4542 = vpack.c.b16 %v4414, %v4410
    %4671 = vmatprep.subr.bf16.mxu0 %v4416
    %4672 = vmatpush1.bf16.msra.mxu0 %v4415
    %4673 = vmatprep.subr.bf16.mxu0 %v4420
    %4674 = vmatpush1.bf16.msra.mxu0 %v4419
    %4675 = vmatprep.subr.bf16.mxu0 %v4424
    %4676 = vmatpush1.bf16.msra.mxu0 %v4423
    %4677 = vmatprep.subr.bf16.mxu0 %v4428
    %4678 = vmatpush1.bf16.msra.mxu0 %v4427
    %4679 = vmatprep.subr.bf16.mxu0 %v4432
    %4680 = vmatpush1.bf16.msra.mxu0 %v4431
    %4681 = vmatprep.subr.bf16.mxu0 %v4436
    %4682 = vmatpush1.bf16.msra.mxu0 %v4435
    %4683 = vmatprep.subr.bf16.mxu0 %v4440
    %4684 = vmatpush1.bf16.msra.mxu0 %v4439
    %4685 = vmatprep.subr.bf16.mxu0 %v4444
    %4686 = vmatpush1.bf16.msra.mxu0 %v4443
    %4687 = vmatprep.subr.bf16.mxu0 %v4448
    %4688 = vmatpush1.bf16.msra.mxu0 %v4447
    %4689 = vmatprep.subr.bf16.mxu0 %v4452
    %4690 = vmatpush1.bf16.msra.mxu0 %v4451
    %4691 = vmatprep.subr.bf16.mxu0 %v4456
    %4692 = vmatpush1.bf16.msra.mxu0 %v4455
    %4693 = vmatprep.subr.bf16.mxu0 %v4460
    %4694 = vmatpush1.bf16.msra.mxu0 %v4459
    %4695 = vmatprep.subr.bf16.mxu0 %v4464
    %4696 = vmatpush1.bf16.msra.mxu0 %v4463
    %4697 = vmatprep.subr.bf16.mxu0 %v4468
    %4698 = vmatpush1.bf16.msra.mxu0 %v4467
    %4699 = vmatprep.subr.bf16.mxu0 %v4472
    %4700 = vmatpush1.bf16.msra.mxu0 %v4471
    %4701 = vmatprep.subr.bf16.mxu0 %v4476
    %4702 = vmatpush1.bf16.msra.mxu0 %v4475
    %4703 = vmatprep.mubr.bf16.mxu0 %v4024
    %4704 = vmatmul.mubr.bf16.gmra.mrb[0].mxu0 %v4023
    %v4705 = vpop.f32.mrb[0].mxu0
    %v4706 = vadd.f32 0.0, %v4705
    %v4707 = vpop.f32.mrb[0].mxu0
    %v4708 = vadd.f32 0.0, %v4707
    %v4709 = vpop.f32.mrb[0].mxu0
    %v4710 = vpop.f32.mrb[0].mxu0
    %4711 = vdwg.mxu0
    %4712 = vmatprep.subr.bf16.mxu0 %v4480
    %4713 = vmatpush1.bf16.msra.mxu0 %v4479
    %4714 = vmatprep.subr.bf16.mxu0 %v4484
    %4715 = vmatpush1.bf16.msra.mxu0 %v4483
    %4716 = vmatprep.subr.bf16.mxu0 %v4488
    %4717 = vmatpush1.bf16.msra.mxu0 %v4487
    %4718 = vmatprep.subr.bf16.mxu0 %v4492
    %4719 = vmatpush1.bf16.msra.mxu0 %v4491
    %4720 = vmatprep.subr.bf16.mxu0 %v4496
    %4721 = vmatpush1.bf16.msra.mxu0 %v4495
    %4722 = vmatprep.subr.bf16.mxu0 %v4500
    %4723 = vmatpush1.bf16.msra.mxu0 %v4499
    %4724 = vmatprep.subr.bf16.mxu0 %v4504
    %4725 = vmatpush1.bf16.msra.mxu0 %v4503
    %4726 = vmatprep.subr.bf16.mxu0 %v4508
    %4727 = vmatpush1.bf16.msra.mxu0 %v4507
    %4728 = vmatprep.subr.bf16.mxu0 %v4512
    %4729 = vmatpush1.bf16.msra.mxu0 %v4511
    %4730 = vmatprep.subr.bf16.mxu0 %v4516
    %4731 = vmatpush1.bf16.msra.mxu0 %v4515
    %4732 = vmatprep.subr.bf16.mxu0 %v4520
    %4733 = vmatpush1.bf16.msra.mxu0 %v4519
    %4734 = vmatprep.subr.bf16.mxu0 %v4524
    %4735 = vmatpush1.bf16.msra.mxu0 %v4523
    %4736 = vmatprep.subr.bf16.mxu0 %v4528
    %4737 = vmatpush1.bf16.msra.mxu0 %v4527
    %4738 = vmatprep.subr.bf16.mxu0 %v4532
    %4739 = vmatpush1.bf16.msra.mxu0 %v4531
    %4740 = vmatprep.subr.bf16.mxu0 %v4536
    %4741 = vmatpush1.bf16.msra.mxu0 %v4535
    %4742 = vmatprep.subr.bf16.mxu0 %v4540
    %4743 = vmatpush1.bf16.msra.mxu0 %v4539
    %4744 = vmatprep.mubr.bf16.mxu0 %v4026
    %4745 = vmatmul.mubr.bf16.gmra.mrb[0].mxu0 %v4025
    %v4746 = vpop.f32.mrb[0].mxu0
    %v4747 = vadd.f32 %v4706, %v4746
    %v4748 = vpop.f32.mrb[0].mxu0
    %v4749 = vadd.f32 %v4708, %v4748
    %v4750 = vpop.f32.mrb[0].mxu0
    %v4751 = vpop.f32.mrb[0].mxu0
    %4752 = vdwg.mxu0
    %4753 = vmatprep.subr.bf16.mxu0 %v4418
    %4754 = vmatpush1.bf16.msra.mxu0 %v4417
    %4755 = vmatprep.subr.bf16.mxu0 %v4422
    %4756 = vmatpush1.bf16.msra.mxu0 %v4421
    %4757 = vmatprep.subr.bf16.mxu0 %v4426
    %4758 = vmatpush1.bf16.msra.mxu0 %v4425
    %4759 = vmatprep.subr.bf16.mxu0 %v4430
    %4760 = vmatpush1.bf16.msra.mxu0 %v4429
    %4761 = vmatprep.subr.bf16.mxu0 %v4434
    %4762 = vmatpush1.bf16.msra.mxu0 %v4433
    %4763 = vmatprep.subr.bf16.mxu0 %v4438
    %4764 = vmatpush1.bf16.msra.mxu0 %v4437
    %4765 = vmatprep.subr.bf16.mxu0 %v4442
    %4766 = vmatpush1.bf16.msra.mxu0 %v4441
    %4767 = vmatprep.subr.bf16.mxu0 %v4446
    %4768 = vmatpush1.bf16.msra.mxu0 %v4445
    %4769 = vmatprep.subr.bf16.mxu0 %v4450
    %4770 = vmatpush1.bf16.msra.mxu0 %v4449
    %4771 = vmatprep.subr.bf16.mxu0 %v4454
    %4772 = vmatpush1.bf16.msra.mxu0 %v4453
    %4773 = vmatprep.subr.bf16.mxu0 %v4458
    %4774 = vmatpush1.bf16.msra.mxu0 %v4457
    %4775 = vmatprep.subr.bf16.mxu0 %v4462
    %4776 = vmatpush1.bf16.msra.mxu0 %v4461
    %4777 = vmatprep.subr.bf16.mxu0 %v4466
    %4778 = vmatpush1.bf16.msra.mxu0 %v4465
    %4779 = vmatprep.subr.bf16.mxu0 %v4470
    %4780 = vmatpush1.bf16.msra.mxu0 %v4469
    %4781 = vmatprep.subr.bf16.mxu0 %v4474
    %4782 = vmatpush1.bf16.msra.mxu0 %v4473
    %4783 = vmatprep.subr.bf16.mxu0 %v4478
    %4784 = vmatpush1.bf16.msra.mxu0 %v4477
    %4785 = vmatprep.mubr.bf16.mxu0 %v4024
    %4786 = vmatmul.mubr.bf16.gmra.mrb[0].mxu0 %v4023
    %v4787 = vpop.f32.mrb[0].mxu0
    %v4788 = vadd.f32 0.0, %v4787
    %v4789 = vpop.f32.mrb[0].mxu0
    %v4790 = vadd.f32 0.0, %v4789
    %v4791 = vpop.f32.mrb[0].mxu0
    %v4792 = vpop.f32.mrb[0].mxu0
    %4793 = vdwg.mxu0
    %4794 = vmatprep.subr.bf16.mxu0 %v4482
    %4795 = vmatpush1.bf16.msra.mxu0 %v4481
    %4796 = vmatprep.subr.bf16.mxu0 %v4486
    %4797 = vmatpush1.bf16.msra.mxu0 %v4485
    %4798 = vmatprep.subr.bf16.mxu0 %v4490
    %4799 = vmatpush1.bf16.msra.mxu0 %v4489
    %4800 = vmatprep.subr.bf16.mxu0 %v4494
    %4801 = vmatpush1.bf16.msra.mxu0 %v4493
    %4802 = vmatprep.subr.bf16.mxu0 %v4498
    %4803 = vmatpush1.bf16.msra.mxu0 %v4497
    %4804 = vmatprep.subr.bf16.mxu0 %v4502
    %4805 = vmatpush1.bf16.msra.mxu0 %v4501
    %4806 = vmatprep.subr.bf16.mxu0 %v4506
    %4807 = vmatpush1.bf16.msra.mxu0 %v4505
    %4808 = vmatprep.subr.bf16.mxu0 %v4510
    %4809 = vmatpush1.bf16.msra.mxu0 %v4509
    %4810 = vmatprep.subr.bf16.mxu0 %v4514
    %4811 = vmatpush1.bf16.msra.mxu0 %v4513
    %4812 = vmatprep.subr.bf16.mxu0 %v4518
    %4813 = vmatpush1.bf16.msra.mxu0 %v4517
    %4814 = vmatprep.subr.bf16.mxu0 %v4522
    %4815 = vmatpush1.bf16.msra.mxu0 %v4521
    %4816 = vmatprep.subr.bf16.mxu0 %v4526
    %4817 = vmatpush1.bf16.msra.mxu0 %v4525
    %4818 = vmatprep.subr.bf16.mxu0 %v4530
    %4819 = vmatpush1.bf16.msra.mxu0 %v4529
    %4820 = vmatprep.subr.bf16.mxu0 %v4534
    %4821 = vmatpush1.bf16.msra.mxu0 %v4533
    %4822 = vmatprep.subr.bf16.mxu0 %v4538
    %4823 = vmatpush1.bf16.msra.mxu0 %v4537
    %4824 = vmatprep.subr.bf16.mxu0 %v4542
    %4825 = vmatpush1.bf16.msra.mxu0 %v4541
    %4826 = vmatprep.mubr.bf16.mxu0 %v4026
    %4827 = vmatmul.mubr.bf16.gmra.mrb[0].mxu0 %v4025
    %v4828 = vpop.f32.mrb[0].mxu0
    %v4829 = vadd.f32 %v4788, %v4828
    %v4830 = vpop.f32.mrb[0].mxu0
    %v4831 = vadd.f32 %v4790, %v4830
    %v4832 = vpop.f32.mrb[0].mxu0
    %v4833 = vpop.f32.mrb[0].mxu0
    %4834 = vdwg.mxu0
    %v4843 = vunpack.c.l.b16 %v3986
    %v4844 = vunpack.c.l.b16 %v3987
    %v4845 = vunpack.c.l.b16 %v3988
    %v4846 = vunpack.c.l.b16 %v3989
    %v4847 = vunpack.c.l.b16 %v3990
    %v4848 = vunpack.c.l.b16 %v3991
    %v4849 = vunpack.c.l.b16 %v3992
    %v4850 = vunpack.c.l.b16 %v3993
    %v4851 = vsel %vm4018, %v4847, %v4843
    %v4852 = vsel %vm4018, %v4848, %v4844
    %v4853 = vsel %vm4018, %v4849, %v4845
    %v4854 = vsel %vm4018, %v4850, %v4846
    %v4855 = vpack.c.b16 %v4851, %v4851
    %v4856 = vpack.c.b16 %v4852, %v4852
    %v4857 = vpack.c.b16 %v4853, %v4853
    %v4858 = vpack.c.b16 %v4854, %v4854
    %v4991 = vunpack.c.l.b16 %v3663
    %v4992 = vunpack.c.h.b16 %v3663
    %v4993 = vunpack.c.l.b16 %v3664
    %v4994 = vunpack.c.h.b16 %v3664
    %v4995 = vunpack.c.l.b16 %v3665
    %v4996 = vunpack.c.h.b16 %v3665
    %v4997 = vunpack.c.l.b16 %v3666
    %v4998 = vunpack.c.h.b16 %v3666
    %v4999 = vunpack.c.l.b16 %v3667
    %v5000 = vunpack.c.h.b16 %v3667
    %v5001 = vunpack.c.l.b16 %v3668
    %v5002 = vunpack.c.h.b16 %v3668
    %v5003 = vunpack.c.l.b16 %v3669
    %v5004 = vunpack.c.h.b16 %v3669
    %v5005 = vunpack.c.l.b16 %v3670
    %v5006 = vunpack.c.h.b16 %v3670
    %v5007 = vunpack.c.l.b16 %v3671
    %v5008 = vunpack.c.h.b16 %v3671
    %v5009 = vunpack.c.l.b16 %v3672
    %v5010 = vunpack.c.h.b16 %v3672
    %v5011 = vunpack.c.l.b16 %v3673
    %v5012 = vunpack.c.h.b16 %v3673
    %v5013 = vunpack.c.l.b16 %v3674
    %v5014 = vunpack.c.h.b16 %v3674
    %v5015 = vunpack.c.l.b16 %v3675
    %v5016 = vunpack.c.h.b16 %v3675
    %v5017 = vunpack.c.l.b16 %v3676
    %v5018 = vunpack.c.h.b16 %v3676
    %v5019 = vunpack.c.l.b16 %v3677
    %v5020 = vunpack.c.h.b16 %v3677
    %v5021 = vunpack.c.l.b16 %v3678
    %v5022 = vunpack.c.h.b16 %v3678
    %v5023 = vunpack.c.l.b16 %v3679
    %v5024 = vunpack.c.h.b16 %v3679
    %v5025 = vunpack.c.l.b16 %v3680
    %v5026 = vunpack.c.h.b16 %v3680
    %v5027 = vunpack.c.l.b16 %v3681
    %v5028 = vunpack.c.h.b16 %v3681
    %v5029 = vunpack.c.l.b16 %v3682
    %v5030 = vunpack.c.h.b16 %v3682
    %v5031 = vunpack.c.l.b16 %v3683
    %v5032 = vunpack.c.h.b16 %v3683
    %v5033 = vunpack.c.l.b16 %v3684
    %v5034 = vunpack.c.h.b16 %v3684
    %v5035 = vunpack.c.l.b16 %v3685
    %v5036 = vunpack.c.h.b16 %v3685
    %v5037 = vunpack.c.l.b16 %v3686
    %v5038 = vunpack.c.h.b16 %v3686
    %v5039 = vunpack.c.l.b16 %v3687
    %v5040 = vunpack.c.h.b16 %v3687
    %v5041 = vunpack.c.l.b16 %v3688
    %v5042 = vunpack.c.h.b16 %v3688
    %v5043 = vunpack.c.l.b16 %v3689
    %v5044 = vunpack.c.h.b16 %v3689
    %v5045 = vunpack.c.l.b16 %v3690
    %v5046 = vunpack.c.h.b16 %v3690
    %v5047 = vunpack.c.l.b16 %v3691
    %v5048 = vunpack.c.h.b16 %v3691
    %v5049 = vunpack.c.l.b16 %v3692
    %v5050 = vunpack.c.h.b16 %v3692
    %v5051 = vunpack.c.l.b16 %v3693
    %v5052 = vunpack.c.h.b16 %v3693
    %v5053 = vunpack.c.l.b16 %v3694
    %v5054 = vunpack.c.h.b16 %v3694
    %v5055 = vunpack.c.l.b16 %v3695
    %v5056 = vunpack.c.h.b16 %v3695
    %v5057 = vunpack.c.l.b16 %v3696
    %v5058 = vunpack.c.h.b16 %v3696
    %v5059 = vunpack.c.l.b16 %v3697
    %v5060 = vunpack.c.h.b16 %v3697
    %v5061 = vunpack.c.l.b16 %v3698
    %v5062 = vunpack.c.h.b16 %v3698
    %v5063 = vunpack.c.l.b16 %v3699
    %v5064 = vunpack.c.h.b16 %v3699
    %v5065 = vunpack.c.l.b16 %v3700
    %v5066 = vunpack.c.h.b16 %v3700
    %v5067 = vunpack.c.l.b16 %v3701
    %v5068 = vunpack.c.h.b16 %v3701
    %v5069 = vunpack.c.l.b16 %v3702
    %v5070 = vunpack.c.h.b16 %v3702
    %v5071 = vunpack.c.l.b16 %v3703
    %v5072 = vunpack.c.h.b16 %v3703
    %v5073 = vunpack.c.l.b16 %v3704
    %v5074 = vunpack.c.h.b16 %v3704
    %v5075 = vunpack.c.l.b16 %v3705
    %v5076 = vunpack.c.h.b16 %v3705
    %v5077 = vunpack.c.l.b16 %v3706
    %v5078 = vunpack.c.h.b16 %v3706
    %v5079 = vunpack.c.l.b16 %v3707
    %v5080 = vunpack.c.h.b16 %v3707
    %v5081 = vunpack.c.l.b16 %v3708
    %v5082 = vunpack.c.h.b16 %v3708
    %v5083 = vunpack.c.l.b16 %v3709
    %v5084 = vunpack.c.h.b16 %v3709
    %v5085 = vunpack.c.l.b16 %v3710
    %v5086 = vunpack.c.h.b16 %v3710
    %v5087 = vunpack.c.l.b16 %v3711
    %v5088 = vunpack.c.h.b16 %v3711
    %v5089 = vunpack.c.l.b16 %v3712
    %v5090 = vunpack.c.h.b16 %v3712
    %v5091 = vunpack.c.l.b16 %v3713
    %v5092 = vunpack.c.h.b16 %v3713
    %v5093 = vunpack.c.l.b16 %v3714
    %v5094 = vunpack.c.h.b16 %v3714
    %v5095 = vunpack.c.l.b16 %v3715
    %v5096 = vunpack.c.h.b16 %v3715
    %v5097 = vunpack.c.l.b16 %v3716
    %v5098 = vunpack.c.h.b16 %v3716
    %v5099 = vunpack.c.l.b16 %v3717
    %v5100 = vunpack.c.h.b16 %v3717
    %v5101 = vunpack.c.l.b16 %v3718
    %v5102 = vunpack.c.h.b16 %v3718
    %v5103 = vunpack.c.l.b16 %v3719
    %v5104 = vunpack.c.h.b16 %v3719
    %v5105 = vunpack.c.l.b16 %v3720
    %v5106 = vunpack.c.h.b16 %v3720
    %v5107 = vunpack.c.l.b16 %v3721
    %v5108 = vunpack.c.h.b16 %v3721
    %v5109 = vunpack.c.l.b16 %v3722
    %v5110 = vunpack.c.h.b16 %v3722
    %v5111 = vunpack.c.l.b16 %v3723
    %v5112 = vunpack.c.h.b16 %v3723
    %v5113 = vunpack.c.l.b16 %v3724
    %v5114 = vunpack.c.h.b16 %v3724
    %v5115 = vunpack.c.l.b16 %v3725
    %v5116 = vunpack.c.h.b16 %v3725
    %v5117 = vunpack.c.l.b16 %v3726
    %v5118 = vunpack.c.h.b16 %v3726
    %v5119 = vunpack.c.l.b16 %v3727
    %v5120 = vunpack.c.h.b16 %v3727
    %v5121 = vunpack.c.l.b16 %v3728
    %v5122 = vunpack.c.h.b16 %v3728
    %v5123 = vunpack.c.l.b16 %v3729
    %v5124 = vunpack.c.h.b16 %v3729
    %v5125 = vunpack.c.l.b16 %v3730
    %v5126 = vunpack.c.h.b16 %v3730
    %v5127 = vunpack.c.l.b16 %v3731
    %v5128 = vunpack.c.h.b16 %v3731
    %v5129 = vunpack.c.l.b16 %v3732
    %v5130 = vunpack.c.h.b16 %v3732
    %v5131 = vunpack.c.l.b16 %v3733
    %v5132 = vunpack.c.h.b16 %v3733
    %v5133 = vunpack.c.l.b16 %v3734
    %v5134 = vunpack.c.h.b16 %v3734
    %v5135 = vunpack.c.l.b16 %v3735
    %v5136 = vunpack.c.h.b16 %v3735
    %v5137 = vunpack.c.l.b16 %v3736
    %v5138 = vunpack.c.h.b16 %v3736
    %v5139 = vunpack.c.l.b16 %v3737
    %v5140 = vunpack.c.h.b16 %v3737
    %v5141 = vunpack.c.l.b16 %v3738
    %v5142 = vunpack.c.h.b16 %v3738
    %v5143 = vunpack.c.l.b16 %v3739
    %v5144 = vunpack.c.h.b16 %v3739
    %v5145 = vunpack.c.l.b16 %v3740
    %v5146 = vunpack.c.h.b16 %v3740
    %v5147 = vunpack.c.l.b16 %v3741
    %v5148 = vunpack.c.h.b16 %v3741
    %v5149 = vunpack.c.l.b16 %v3742
    %v5150 = vunpack.c.h.b16 %v3742
    %v5151 = vunpack.c.l.b16 %v3743
    %v5152 = vunpack.c.h.b16 %v3743
    %v5153 = vunpack.c.l.b16 %v3744
    %v5154 = vunpack.c.h.b16 %v3744
    %v5155 = vunpack.c.l.b16 %v3745
    %v5156 = vunpack.c.h.b16 %v3745
    %v5157 = vunpack.c.l.b16 %v3746
    %v5158 = vunpack.c.h.b16 %v3746
    %v5159 = vunpack.c.l.b16 %v3747
    %v5160 = vunpack.c.h.b16 %v3747
    %v5161 = vunpack.c.l.b16 %v3748
    %v5162 = vunpack.c.h.b16 %v3748
    %v5163 = vunpack.c.l.b16 %v3749
    %v5164 = vunpack.c.h.b16 %v3749
    %v5165 = vunpack.c.l.b16 %v3750
    %v5166 = vunpack.c.h.b16 %v3750
    %v5167 = vunpack.c.l.b16 %v3751
    %v5168 = vunpack.c.h.b16 %v3751
    %v5169 = vunpack.c.l.b16 %v3752
    %v5170 = vunpack.c.h.b16 %v3752
    %v5171 = vunpack.c.l.b16 %v3753
    %v5172 = vunpack.c.h.b16 %v3753
    %v5173 = vunpack.c.l.b16 %v3754
    %v5174 = vunpack.c.h.b16 %v3754
    %v5175 = vunpack.c.l.b16 %v3755
    %v5176 = vunpack.c.h.b16 %v3755
    %v5177 = vunpack.c.l.b16 %v3756
    %v5178 = vunpack.c.h.b16 %v3756
    %v5179 = vunpack.c.l.b16 %v3757
    %v5180 = vunpack.c.h.b16 %v3757
    %v5181 = vunpack.c.l.b16 %v3758
    %v5182 = vunpack.c.h.b16 %v3758
    %v5183 = vunpack.c.l.b16 %v3759
    %v5184 = vunpack.c.h.b16 %v3759
    %v5185 = vunpack.c.l.b16 %v3760
    %v5186 = vunpack.c.h.b16 %v3760
    %v5187 = vunpack.c.l.b16 %v3761
    %v5188 = vunpack.c.h.b16 %v3761
    %v5189 = vunpack.c.l.b16 %v3762
    %v5190 = vunpack.c.h.b16 %v3762
    %v5191 = vunpack.c.l.b16 %v3763
    %v5192 = vunpack.c.h.b16 %v3763
    %v5193 = vunpack.c.l.b16 %v3764
    %v5194 = vunpack.c.h.b16 %v3764
    %v5195 = vunpack.c.l.b16 %v3765
    %v5196 = vunpack.c.h.b16 %v3765
    %v5197 = vunpack.c.l.b16 %v3766
    %v5198 = vunpack.c.h.b16 %v3766
    %v5199 = vunpack.c.l.b16 %v3767
    %v5200 = vunpack.c.h.b16 %v3767
    %v5201 = vunpack.c.l.b16 %v3768
    %v5202 = vunpack.c.h.b16 %v3768
    %v5203 = vunpack.c.l.b16 %v3769
    %v5204 = vunpack.c.h.b16 %v3769
    %v5205 = vunpack.c.l.b16 %v3770
    %v5206 = vunpack.c.h.b16 %v3770
    %v5207 = vunpack.c.l.b16 %v3771
    %v5208 = vunpack.c.h.b16 %v3771
    %v5209 = vunpack.c.l.b16 %v3772
    %v5210 = vunpack.c.h.b16 %v3772
    %v5211 = vunpack.c.l.b16 %v3773
    %v5212 = vunpack.c.h.b16 %v3773
    %v5213 = vunpack.c.l.b16 %v3774
    %v5214 = vunpack.c.h.b16 %v3774
    %v5215 = vunpack.c.l.b16 %v3775
    %v5216 = vunpack.c.h.b16 %v3775
    %v5217 = vunpack.c.l.b16 %v3776
    %v5218 = vunpack.c.h.b16 %v3776
    %v5219 = vunpack.c.l.b16 %v3777
    %v5220 = vunpack.c.h.b16 %v3777
    %v5221 = vunpack.c.l.b16 %v3778
    %v5222 = vunpack.c.h.b16 %v3778
    %v5223 = vunpack.c.l.b16 %v3779
    %v5224 = vunpack.c.h.b16 %v3779
    %v5225 = vunpack.c.l.b16 %v3780
    %v5226 = vunpack.c.h.b16 %v3780
    %v5227 = vunpack.c.l.b16 %v3781
    %v5228 = vunpack.c.h.b16 %v3781
    %v5229 = vunpack.c.l.b16 %v3782
    %v5230 = vunpack.c.h.b16 %v3782
    %v5231 = vunpack.c.l.b16 %v3783
    %v5232 = vunpack.c.h.b16 %v3783
    %v5233 = vunpack.c.l.b16 %v3784
    %v5234 = vunpack.c.h.b16 %v3784
    %v5235 = vunpack.c.l.b16 %v3785
    %v5236 = vunpack.c.h.b16 %v3785
    %v5237 = vunpack.c.l.b16 %v3786
    %v5238 = vunpack.c.h.b16 %v3786
    %v5239 = vunpack.c.l.b16 %v3787
    %v5240 = vunpack.c.h.b16 %v3787
    %v5241 = vunpack.c.l.b16 %v3788
    %v5242 = vunpack.c.h.b16 %v3788
    %v5243 = vunpack.c.l.b16 %v3789
    %v5244 = vunpack.c.h.b16 %v3789
    %v5245 = vunpack.c.l.b16 %v3790
    %v5246 = vunpack.c.h.b16 %v3790
    %v5247 = vpack.c.b16 %v4995, %v4991
    %v5248 = vpack.c.b16 %v4996, %v4992
    %v5249 = vpack.c.b16 %v4997, %v4993
    %v5250 = vpack.c.b16 %v4998, %v4994
    %v5251 = vpack.c.b16 %v5003, %v4999
    %v5252 = vpack.c.b16 %v5004, %v5000
    %v5253 = vpack.c.b16 %v5005, %v5001
    %v5254 = vpack.c.b16 %v5006, %v5002
    %v5255 = vpack.c.b16 %v5011, %v5007
    %v5256 = vpack.c.b16 %v5012, %v5008
    %v5257 = vpack.c.b16 %v5013, %v5009
    %v5258 = vpack.c.b16 %v5014, %v5010
    %v5259 = vpack.c.b16 %v5019, %v5015
    %v5260 = vpack.c.b16 %v5020, %v5016
    %v5261 = vpack.c.b16 %v5021, %v5017
    %v5262 = vpack.c.b16 %v5022, %v5018
    %v5263 = vpack.c.b16 %v5027, %v5023
    %v5264 = vpack.c.b16 %v5028, %v5024
    %v5265 = vpack.c.b16 %v5029, %v5025
    %v5266 = vpack.c.b16 %v5030, %v5026
    %v5267 = vpack.c.b16 %v5035, %v5031
    %v5268 = vpack.c.b16 %v5036, %v5032
    %v5269 = vpack.c.b16 %v5037, %v5033
    %v5270 = vpack.c.b16 %v5038, %v5034
    %v5271 = vpack.c.b16 %v5043, %v5039
    %v5272 = vpack.c.b16 %v5044, %v5040
    %v5273 = vpack.c.b16 %v5045, %v5041
    %v5274 = vpack.c.b16 %v5046, %v5042
    %v5275 = vpack.c.b16 %v5051, %v5047
    %v5276 = vpack.c.b16 %v5052, %v5048
    %v5277 = vpack.c.b16 %v5053, %v5049
    %v5278 = vpack.c.b16 %v5054, %v5050
    %v5279 = vpack.c.b16 %v5059, %v5055
    %v5280 = vpack.c.b16 %v5060, %v5056
    %v5281 = vpack.c.b16 %v5061, %v5057
    %v5282 = vpack.c.b16 %v5062, %v5058
    %v5283 = vpack.c.b16 %v5067, %v5063
    %v5284 = vpack.c.b16 %v5068, %v5064
    %v5285 = vpack.c.b16 %v5069, %v5065
    %v5286 = vpack.c.b16 %v5070, %v5066
    %v5287 = vpack.c.b16 %v5075, %v5071
    %v5288 = vpack.c.b16 %v5076, %v5072
    %v5289 = vpack.c.b16 %v5077, %v5073
    %v5290 = vpack.c.b16 %v5078, %v5074
    %v5291 = vpack.c.b16 %v5083, %v5079
    %v5292 = vpack.c.b16 %v5084, %v5080
    %v5293 = vpack.c.b16 %v5085, %v5081
    %v5294 = vpack.c.b16 %v5086, %v5082
    %v5295 = vpack.c.b16 %v5091, %v5087
    %v5296 = vpack.c.b16 %v5092, %v5088
    %v5297 = vpack.c.b16 %v5093, %v5089
    %v5298 = vpack.c.b16 %v5094, %v5090
    %v5299 = vpack.c.b16 %v5099, %v5095
    %v5300 = vpack.c.b16 %v5100, %v5096
    %v5301 = vpack.c.b16 %v5101, %v5097
    %v5302 = vpack.c.b16 %v5102, %v5098
    %v5303 = vpack.c.b16 %v5107, %v5103
    %v5304 = vpack.c.b16 %v5108, %v5104
    %v5305 = vpack.c.b16 %v5109, %v5105
    %v5306 = vpack.c.b16 %v5110, %v5106
    %v5307 = vpack.c.b16 %v5115, %v5111
    %v5308 = vpack.c.b16 %v5116, %v5112
    %v5309 = vpack.c.b16 %v5117, %v5113
    %v5310 = vpack.c.b16 %v5118, %v5114
    %v5311 = vpack.c.b16 %v5123, %v5119
    %v5312 = vpack.c.b16 %v5124, %v5120
    %v5313 = vpack.c.b16 %v5125, %v5121
    %v5314 = vpack.c.b16 %v5126, %v5122
    %v5315 = vpack.c.b16 %v5131, %v5127
    %v5316 = vpack.c.b16 %v5132, %v5128
    %v5317 = vpack.c.b16 %v5133, %v5129
    %v5318 = vpack.c.b16 %v5134, %v5130
    %v5319 = vpack.c.b16 %v5139, %v5135
    %v5320 = vpack.c.b16 %v5140, %v5136
    %v5321 = vpack.c.b16 %v5141, %v5137
    %v5322 = vpack.c.b16 %v5142, %v5138
    %v5323 = vpack.c.b16 %v5147, %v5143
    %v5324 = vpack.c.b16 %v5148, %v5144
    %v5325 = vpack.c.b16 %v5149, %v5145
    %v5326 = vpack.c.b16 %v5150, %v5146
    %v5327 = vpack.c.b16 %v5155, %v5151
    %v5328 = vpack.c.b16 %v5156, %v5152
    %v5329 = vpack.c.b16 %v5157, %v5153
    %v5330 = vpack.c.b16 %v5158, %v5154
    %v5331 = vpack.c.b16 %v5163, %v5159
    %v5332 = vpack.c.b16 %v5164, %v5160
    %v5333 = vpack.c.b16 %v5165, %v5161
    %v5334 = vpack.c.b16 %v5166, %v5162
    %v5335 = vpack.c.b16 %v5171, %v5167
    %v5336 = vpack.c.b16 %v5172, %v5168
    %v5337 = vpack.c.b16 %v5173, %v5169
    %v5338 = vpack.c.b16 %v5174, %v5170
    %v5339 = vpack.c.b16 %v5179, %v5175
    %v5340 = vpack.c.b16 %v5180, %v5176
    %v5341 = vpack.c.b16 %v5181, %v5177
    %v5342 = vpack.c.b16 %v5182, %v5178
    %v5343 = vpack.c.b16 %v5187, %v5183
    %v5344 = vpack.c.b16 %v5188, %v5184
    %v5345 = vpack.c.b16 %v5189, %v5185
    %v5346 = vpack.c.b16 %v5190, %v5186
    %v5347 = vpack.c.b16 %v5195, %v5191
    %v5348 = vpack.c.b16 %v5196, %v5192
    %v5349 = vpack.c.b16 %v5197, %v5193
    %v5350 = vpack.c.b16 %v5198, %v5194
    %v5351 = vpack.c.b16 %v5203, %v5199
    %v5352 = vpack.c.b16 %v5204, %v5200
    %v5353 = vpack.c.b16 %v5205, %v5201
    %v5354 = vpack.c.b16 %v5206, %v5202
    %v5355 = vpack.c.b16 %v5211, %v5207
    %v5356 = vpack.c.b16 %v5212, %v5208
    %v5357 = vpack.c.b16 %v5213, %v5209
    %v5358 = vpack.c.b16 %v5214, %v5210
    %v5359 = vpack.c.b16 %v5219, %v5215
    %v5360 = vpack.c.b16 %v5220, %v5216
    %v5361 = vpack.c.b16 %v5221, %v5217
    %v5362 = vpack.c.b16 %v5222, %v5218
    %v5363 = vpack.c.b16 %v5227, %v5223
    %v5364 = vpack.c.b16 %v5228, %v5224
    %v5365 = vpack.c.b16 %v5229, %v5225
    %v5366 = vpack.c.b16 %v5230, %v5226
    %v5367 = vpack.c.b16 %v5235, %v5231
    %v5368 = vpack.c.b16 %v5236, %v5232
    %v5369 = vpack.c.b16 %v5237, %v5233
    %v5370 = vpack.c.b16 %v5238, %v5234
    %v5371 = vpack.c.b16 %v5243, %v5239
    %v5372 = vpack.c.b16 %v5244, %v5240
    %v5373 = vpack.c.b16 %v5245, %v5241
    %v5374 = vpack.c.b16 %v5246, %v5242
    %5503 = vmatprep.subr.bf16.mxu0 %v5248
    %5504 = vmatpush1.bf16.msra.mxu0 %v5247
    %5505 = vmatprep.subr.bf16.mxu0 %v5252
    %5506 = vmatpush1.bf16.msra.mxu0 %v5251
    %5507 = vmatprep.subr.bf16.mxu0 %v5256
    %5508 = vmatpush1.bf16.msra.mxu0 %v5255
    %5509 = vmatprep.subr.bf16.mxu0 %v5260
    %5510 = vmatpush1.bf16.msra.mxu0 %v5259
    %5511 = vmatprep.subr.bf16.mxu0 %v5264
    %5512 = vmatpush1.bf16.msra.mxu0 %v5263
    %5513 = vmatprep.subr.bf16.mxu0 %v5268
    %5514 = vmatpush1.bf16.msra.mxu0 %v5267
    %5515 = vmatprep.subr.bf16.mxu0 %v5272
    %5516 = vmatpush1.bf16.msra.mxu0 %v5271
    %5517 = vmatprep.subr.bf16.mxu0 %v5276
    %5518 = vmatpush1.bf16.msra.mxu0 %v5275
    %5519 = vmatprep.subr.bf16.mxu0 %v5280
    %5520 = vmatpush1.bf16.msra.mxu0 %v5279
    %5521 = vmatprep.subr.bf16.mxu0 %v5284
    %5522 = vmatpush1.bf16.msra.mxu0 %v5283
    %5523 = vmatprep.subr.bf16.mxu0 %v5288
    %5524 = vmatpush1.bf16.msra.mxu0 %v5287
    %5525 = vmatprep.subr.bf16.mxu0 %v5292
    %5526 = vmatpush1.bf16.msra.mxu0 %v5291
    %5527 = vmatprep.subr.bf16.mxu0 %v5296
    %5528 = vmatpush1.bf16.msra.mxu0 %v5295
    %5529 = vmatprep.subr.bf16.mxu0 %v5300
    %5530 = vmatpush1.bf16.msra.mxu0 %v5299
    %5531 = vmatprep.subr.bf16.mxu0 %v5304
    %5532 = vmatpush1.bf16.msra.mxu0 %v5303
    %5533 = vmatprep.subr.bf16.mxu0 %v5308
    %5534 = vmatpush1.bf16.msra.mxu0 %v5307
    %5535 = vmatprep.mubr.bf16.mxu0 %v4856
    %5536 = vmatmul.mubr.bf16.gmra.mrb[0].mxu0 %v4855
    %v5537 = vpop.f32.mrb[0].mxu0
    %v5538 = vadd.f32 %v4747, %v5537
    %v5539 = vpop.f32.mrb[0].mxu0
    %v5540 = vadd.f32 %v4749, %v5539
    %v5541 = vpop.f32.mrb[0].mxu0
    %v5542 = vpop.f32.mrb[0].mxu0
    %5543 = vdwg.mxu0
    %5544 = vmatprep.subr.bf16.mxu0 %v5312
    %5545 = vmatpush1.bf16.msra.mxu0 %v5311
    %5546 = vmatprep.subr.bf16.mxu0 %v5316
    %5547 = vmatpush1.bf16.msra.mxu0 %v5315
    %5548 = vmatprep.subr.bf16.mxu0 %v5320
    %5549 = vmatpush1.bf16.msra.mxu0 %v5319
    %5550 = vmatprep.subr.bf16.mxu0 %v5324
    %5551 = vmatpush1.bf16.msra.mxu0 %v5323
    %5552 = vmatprep.subr.bf16.mxu0 %v5328
    %5553 = vmatpush1.bf16.msra.mxu0 %v5327
    %5554 = vmatprep.subr.bf16.mxu0 %v5332
    %5555 = vmatpush1.bf16.msra.mxu0 %v5331
    %5556 = vmatprep.subr.bf16.mxu0 %v5336
    %5557 = vmatpush1.bf16.msra.mxu0 %v5335
    %5558 = vmatprep.subr.bf16.mxu0 %v5340
    %5559 = vmatpush1.bf16.msra.mxu0 %v5339
    %5560 = vmatprep.subr.bf16.mxu0 %v5344
    %5561 = vmatpush1.bf16.msra.mxu0 %v5343
    %5562 = vmatprep.subr.bf16.mxu0 %v5348
    %5563 = vmatpush1.bf16.msra.mxu0 %v5347
    %5564 = vmatprep.subr.bf16.mxu0 %v5352
    %5565 = vmatpush1.bf16.msra.mxu0 %v5351
    %5566 = vmatprep.subr.bf16.mxu0 %v5356
    %5567 = vmatpush1.bf16.msra.mxu0 %v5355
    %5568 = vmatprep.subr.bf16.mxu0 %v5360
    %5569 = vmatpush1.bf16.msra.mxu0 %v5359
    %5570 = vmatprep.subr.bf16.mxu0 %v5364
    %5571 = vmatpush1.bf16.msra.mxu0 %v5363
    %5572 = vmatprep.subr.bf16.mxu0 %v5368
    %5573 = vmatpush1.bf16.msra.mxu0 %v5367
    %5574 = vmatprep.subr.bf16.mxu0 %v5372
    %5575 = vmatpush1.bf16.msra.mxu0 %v5371
    %5576 = vmatprep.mubr.bf16.mxu0 %v4858
    %5577 = vmatmul.mubr.bf16.gmra.mrb[0].mxu0 %v4857
    %v5578 = vpop.f32.mrb[0].mxu0
    %v5579 = vadd.f32 %v5538, %v5578
    %v5580 = vpop.f32.mrb[0].mxu0
    %v5581 = vadd.f32 %v5540, %v5580
    %v5582 = vpop.f32.mrb[0].mxu0
    %v5583 = vpop.f32.mrb[0].mxu0
    %5584 = vdwg.mxu0
    %5585 = vmatprep.subr.bf16.mxu0 %v5250
    %5586 = vmatpush1.bf16.msra.mxu0 %v5249
    %5587 = vmatprep.subr.bf16.mxu0 %v5254
    %5588 = vmatpush1.bf16.msra.mxu0 %v5253
    %5589 = vmatprep.subr.bf16.mxu0 %v5258
    %5590 = vmatpush1.bf16.msra.mxu0 %v5257
    %5591 = vmatprep.subr.bf16.mxu0 %v5262
    %5592 = vmatpush1.bf16.msra.mxu0 %v5261
    %5593 = vmatprep.subr.bf16.mxu0 %v5266
    %5594 = vmatpush1.bf16.msra.mxu0 %v5265
    %5595 = vmatprep.subr.bf16.mxu0 %v5270
    %5596 = vmatpush1.bf16.msra.mxu0 %v5269
    %5597 = vmatprep.subr.bf16.mxu0 %v5274
    %5598 = vmatpush1.bf16.msra.mxu0 %v5273
    %5599 = vmatprep.subr.bf16.mxu0 %v5278
    %5600 = vmatpush1.bf16.msra.mxu0 %v5277
    %5601 = vmatprep.subr.bf16.mxu0 %v5282
    %5602 = vmatpush1.bf16.msra.mxu0 %v5281
    %5603 = vmatprep.subr.bf16.mxu0 %v5286
    %5604 = vmatpush1.bf16.msra.mxu0 %v5285
    %5605 = vmatprep.subr.bf16.mxu0 %v5290
    %5606 = vmatpush1.bf16.msra.mxu0 %v5289
    %5607 = vmatprep.subr.bf16.mxu0 %v5294
    %5608 = vmatpush1.bf16.msra.mxu0 %v5293
    %5609 = vmatprep.subr.bf16.mxu0 %v5298
    %5610 = vmatpush1.bf16.msra.mxu0 %v5297
    %5611 = vmatprep.subr.bf16.mxu0 %v5302
    %5612 = vmatpush1.bf16.msra.mxu0 %v5301
    %5613 = vmatprep.subr.bf16.mxu0 %v5306
    %5614 = vmatpush1.bf16.msra.mxu0 %v5305
    %5615 = vmatprep.subr.bf16.mxu0 %v5310
    %5616 = vmatpush1.bf16.msra.mxu0 %v5309
    %5617 = vmatprep.mubr.bf16.mxu0 %v4856
    %5618 = vmatmul.mubr.bf16.gmra.mrb[0].mxu0 %v4855
    %v5619 = vpop.f32.mrb[0].mxu0
    %v5620 = vadd.f32 %v4829, %v5619
    %v5621 = vpop.f32.mrb[0].mxu0
    %v5622 = vadd.f32 %v4831, %v5621
    %v5623 = vpop.f32.mrb[0].mxu0
    %v5624 = vpop.f32.mrb[0].mxu0
    %5625 = vdwg.mxu0
    %5626 = vmatprep.subr.bf16.mxu0 %v5314
    %5627 = vmatpush1.bf16.msra.mxu0 %v5313
    %5628 = vmatprep.subr.bf16.mxu0 %v5318
    %5629 = vmatpush1.bf16.msra.mxu0 %v5317
    %5630 = vmatprep.subr.bf16.mxu0 %v5322
    %5631 = vmatpush1.bf16.msra.mxu0 %v5321
    %5632 = vmatprep.subr.bf16.mxu0 %v5326
    %5633 = vmatpush1.bf16.msra.mxu0 %v5325
    %5634 = vmatprep.subr.bf16.mxu0 %v5330
    %5635 = vmatpush1.bf16.msra.mxu0 %v5329
    %5636 = vmatprep.subr.bf16.mxu0 %v5334
    %5637 = vmatpush1.bf16.msra.mxu0 %v5333
    %5638 = vmatprep.subr.bf16.mxu0 %v5338
    %5639 = vmatpush1.bf16.msra.mxu0 %v5337
    %5640 = vmatprep.subr.bf16.mxu0 %v5342
    %5641 = vmatpush1.bf16.msra.mxu0 %v5341
    %5642 = vmatprep.subr.bf16.mxu0 %v5346
    %5643 = vmatpush1.bf16.msra.mxu0 %v5345
    %5644 = vmatprep.subr.bf16.mxu0 %v5350
    %5645 = vmatpush1.bf16.msra.mxu0 %v5349
    %5646 = vmatprep.subr.bf16.mxu0 %v5354
    %5647 = vmatpush1.bf16.msra.mxu0 %v5353
    %5648 = vmatprep.subr.bf16.mxu0 %v5358
    %5649 = vmatpush1.bf16.msra.mxu0 %v5357
    %5650 = vmatprep.subr.bf16.mxu0 %v5362
    %5651 = vmatpush1.bf16.msra.mxu0 %v5361
    %5652 = vmatprep.subr.bf16.mxu0 %v5366
    %5653 = vmatpush1.bf16.msra.mxu0 %v5365
    %5654 = vmatprep.subr.bf16.mxu0 %v5370
    %5655 = vmatpush1.bf16.msra.mxu0 %v5369
    %5656 = vmatprep.subr.bf16.mxu0 %v5374
    %5657 = vmatpush1.bf16.msra.mxu0 %v5373
    %5658 = vmatprep.mubr.bf16.mxu0 %v4858
    %5659 = vmatmul.mubr.bf16.gmra.mrb[0].mxu0 %v4857
    %v5660 = vpop.f32.mrb[0].mxu0
    %v5661 = vadd.f32 %v5620, %v5660
    %v5662 = vpop.f32.mrb[0].mxu0
    %v5663 = vadd.f32 %v5622, %v5662
    %v5664 = vpop.f32.mrb[0].mxu0
    %v5665 = vpop.f32.mrb[0].mxu0
    %5666 = vdwg.mxu0
    %v5668 = vlaneseq
    %v5669 = vshrl.u32 %v5668, 7
    %v5670 = vsub.s32 0, %v5669
    %v5671 = vrot.slane %v3984, %v5670
    %v5672 = vlaneseq
    %v5673 = vshrl.u32 %v5672, 7
    %v5674 = vsub.s32 1, %v5673
    %v5675 = vrot.slane %v3984, %v5674
    %v5676 = vlaneseq
    %v5677 = vshrl.u32 %v5676, 7
    %v5678 = vsub.s32 2, %v5677
    %v5679 = vrot.slane %v3984, %v5678
    %v5680 = vlaneseq
    %v5681 = vshrl.u32 %v5680, 7
    %v5682 = vsub.s32 3, %v5681
    %v5683 = vrot.slane %v3984, %v5682
    %v5688 = vadd.f32 %v5579, %v5671
    %v5689 = vadd.f32 %v5581, %v5675
    %v5690 = vadd.f32 %v5661, %v5679
    %v5691 = vadd.f32 %v5663, %v5683
    %v5692 = vmax.f32 %v5688, 0.0
    %v5693 = vmax.f32 %v5689, 0.0
    %v5694 = vmax.f32 %v5690, 0.0
    %v5695 = vmax.f32 %v5691, 0.0
    %v5696 = vpack.c.bf16 %v5692, %v5692
    %v5697 = vpack.c.bf16 %v5693, %v5693
    %v5698 = vpack.c.bf16 %v5694, %v5694
    %v5699 = vpack.c.bf16 %v5695, %v5695
    %v5764 = vunpack.c.l.b16 %v3919
    %v5765 = vunpack.c.l.b16 %v3920
    %v5766 = vunpack.c.l.b16 %v3921
    %v5767 = vunpack.c.l.b16 %v3922
    %v5768 = vunpack.c.l.b16 %v3923
    %v5769 = vunpack.c.l.b16 %v3924
    %v5770 = vunpack.c.l.b16 %v3925
    %v5771 = vunpack.c.l.b16 %v3926
    %v5772 = vunpack.c.l.b16 %v3927
    %v5773 = vunpack.c.l.b16 %v3928
    %v5774 = vunpack.c.l.b16 %v3929
    %v5775 = vunpack.c.l.b16 %v3930
    %v5776 = vunpack.c.l.b16 %v3931
    %v5777 = vunpack.c.l.b16 %v3932
    %v5778 = vunpack.c.l.b16 %v3933
    %v5779 = vunpack.c.l.b16 %v3934
    %v5780 = vunpack.c.l.b16 %v3935
    %v5781 = vunpack.c.l.b16 %v3936
    %v5782 = vunpack.c.l.b16 %v3937
    %v5783 = vunpack.c.l.b16 %v3938
    %v5784 = vunpack.c.l.b16 %v3939
    %v5785 = vunpack.c.l.b16 %v3940
    %v5786 = vunpack.c.l.b16 %v3941
    %v5787 = vunpack.c.l.b16 %v3942
    %v5788 = vunpack.c.l.b16 %v3943
    %v5789 = vunpack.c.l.b16 %v3944
    %v5790 = vunpack.c.l.b16 %v3945
    %v5791 = vunpack.c.l.b16 %v3946
    %v5792 = vunpack.c.l.b16 %v3947
    %v5793 = vunpack.c.l.b16 %v3948
    %v5794 = vunpack.c.l.b16 %v3949
    %v5795 = vunpack.c.l.b16 %v3950
    %v5796 = vunpack.c.l.b16 %v3951
    %v5797 = vunpack.c.l.b16 %v3952
    %v5798 = vunpack.c.l.b16 %v3953
    %v5799 = vunpack.c.l.b16 %v3954
    %v5800 = vunpack.c.l.b16 %v3955
    %v5801 = vunpack.c.l.b16 %v3956
    %v5802 = vunpack.c.l.b16 %v3957
    %v5803 = vunpack.c.l.b16 %v3958
    %v5804 = vunpack.c.l.b16 %v3959
    %v5805 = vunpack.c.l.b16 %v3960
    %v5806 = vunpack.c.l.b16 %v3961
    %v5807 = vunpack.c.l.b16 %v3962
    %v5808 = vunpack.c.l.b16 %v3963
    %v5809 = vunpack.c.l.b16 %v3964
    %v5810 = vunpack.c.l.b16 %v3965
    %v5811 = vunpack.c.l.b16 %v3966
    %v5812 = vunpack.c.l.b16 %v3967
    %v5813 = vunpack.c.l.b16 %v3968
    %v5814 = vunpack.c.l.b16 %v3969
    %v5815 = vunpack.c.l.b16 %v3970
    %v5816 = vunpack.c.l.b16 %v3971
    %v5817 = vunpack.c.l.b16 %v3972
    %v5818 = vunpack.c.l.b16 %v3973
    %v5819 = vunpack.c.l.b16 %v3974
    %v5820 = vunpack.c.l.b16 %v3975
    %v5821 = vunpack.c.l.b16 %v3976
    %v5822 = vunpack.c.l.b16 %v3977
    %v5823 = vunpack.c.l.b16 %v3978
    %v5824 = vunpack.c.l.b16 %v3979
    %v5825 = vunpack.c.l.b16 %v3980
    %v5826 = vunpack.c.l.b16 %v3981
    %v5827 = vunpack.c.l.b16 %v3982
    %v5828 = vpack.c.b16 %v5765, %v5764
    %v5829 = vpack.c.b16 %v5767, %v5766
    %v5830 = vpack.c.b16 %v5769, %v5768
    %v5831 = vpack.c.b16 %v5771, %v5770
    %v5832 = vpack.c.b16 %v5773, %v5772
    %v5833 = vpack.c.b16 %v5775, %v5774
    %v5834 = vpack.c.b16 %v5777, %v5776
    %v5835 = vpack.c.b16 %v5779, %v5778
    %v5836 = vpack.c.b16 %v5781, %v5780
    %v5837 = vpack.c.b16 %v5783, %v5782
    %v5838 = vpack.c.b16 %v5785, %v5784
    %v5839 = vpack.c.b16 %v5787, %v5786
    %v5840 = vpack.c.b16 %v5789, %v5788
    %v5841 = vpack.c.b16 %v5791, %v5790
    %v5842 = vpack.c.b16 %v5793, %v5792
    %v5843 = vpack.c.b16 %v5795, %v5794
    %v5844 = vpack.c.b16 %v5797, %v5796
    %v5845 = vpack.c.b16 %v5799, %v5798
    %v5846 = vpack.c.b16 %v5801, %v5800
    %v5847 = vpack.c.b16 %v5803, %v5802
    %v5848 = vpack.c.b16 %v5805, %v5804
    %v5849 = vpack.c.b16 %v5807, %v5806
    %v5850 = vpack.c.b16 %v5809, %v5808
    %v5851 = vpack.c.b16 %v5811, %v5810
    %v5852 = vpack.c.b16 %v5813, %v5812
    %v5853 = vpack.c.b16 %v5815, %v5814
    %v5854 = vpack.c.b16 %v5817, %v5816
    %v5855 = vpack.c.b16 %v5819, %v5818
    %v5856 = vpack.c.b16 %v5821, %v5820
    %v5857 = vpack.c.b16 %v5823, %v5822
    %v5858 = vpack.c.b16 %v5825, %v5824
    %v5859 = vpack.c.b16 %v5827, %v5826
    %5892 = vmatprep.subr.bf16.mxu0 0
    %5893 = vmatpush1.bf16.msra.mxu0 %v5828
    %5894 = vmatprep.subr.bf16.mxu0 0
    %5895 = vmatpush1.bf16.msra.mxu0 %v5829
    %5896 = vmatprep.subr.bf16.mxu0 0
    %5897 = vmatpush1.bf16.msra.mxu0 %v5830
    %5898 = vmatprep.subr.bf16.mxu0 0
    %5899 = vmatpush1.bf16.msra.mxu0 %v5831
    %5900 = vmatprep.subr.bf16.mxu0 0
    %5901 = vmatpush1.bf16.msra.mxu0 %v5832
    %5902 = vmatprep.subr.bf16.mxu0 0
    %5903 = vmatpush1.bf16.msra.mxu0 %v5833
    %5904 = vmatprep.subr.bf16.mxu0 0
    %5905 = vmatpush1.bf16.msra.mxu0 %v5834
    %5906 = vmatprep.subr.bf16.mxu0 0
    %5907 = vmatpush1.bf16.msra.mxu0 %v5835
    %5908 = vmatprep.subr.bf16.mxu0 0
    %5909 = vmatpush1.bf16.msra.mxu0 %v5836
    %5910 = vmatprep.subr.bf16.mxu0 0
    %5911 = vmatpush1.bf16.msra.mxu0 %v5837
    %5912 = vmatprep.subr.bf16.mxu0 0
    %5913 = vmatpush1.bf16.msra.mxu0 %v5838
    %5914 = vmatprep.subr.bf16.mxu0 0
    %5915 = vmatpush1.bf16.msra.mxu0 %v5839
    %5916 = vmatprep.subr.bf16.mxu0 0
    %5917 = vmatpush1.bf16.msra.mxu0 %v5840
    %5918 = vmatprep.subr.bf16.mxu0 0
    %5919 = vmatpush1.bf16.msra.mxu0 %v5841
    %5920 = vmatprep.subr.bf16.mxu0 0
    %5921 = vmatpush1.bf16.msra.mxu0 %v5842
    %5922 = vmatprep.subr.bf16.mxu0 0
    %5923 = vmatpush1.bf16.msra.mxu0 %v5843
    %5924 = vmatprep.mubr.bf16.mxu0 %v5697
    %5925 = vmatmul.mubr.bf16.gmra.mrb[0].mxu0 %v5696
    %v5926 = vpop.f32.mrb[0].mxu0
    %v5927 = vadd.f32 %v3985, %v5926
    %v5928 = vpop.f32.mrb[0].mxu0
    %v5929 = vpop.f32.mrb[0].mxu0
    %v5930 = vpop.f32.mrb[0].mxu0
    %5931 = vdwg.mxu0
    %5932 = vmatprep.subr.bf16.mxu0 0
    %5933 = vmatpush1.bf16.msra.mxu0 %v5844
    %5934 = vmatprep.subr.bf16.mxu0 0
    %5935 = vmatpush1.bf16.msra.mxu0 %v5845
    %5936 = vmatprep.subr.bf16.mxu0 0
    %5937 = vmatpush1.bf16.msra.mxu0 %v5846
    %5938 = vmatprep.subr.bf16.mxu0 0
    %5939 = vmatpush1.bf16.msra.mxu0 %v5847
    %5940 = vmatprep.subr.bf16.mxu0 0
    %5941 = vmatpush1.bf16.msra.mxu0 %v5848
    %5942 = vmatprep.subr.bf16.mxu0 0
    %5943 = vmatpush1.bf16.msra.mxu0 %v5849
    %5944 = vmatprep.subr.bf16.mxu0 0
    %5945 = vmatpush1.bf16.msra.mxu0 %v5850
    %5946 = vmatprep.subr.bf16.mxu0 0
    %5947 = vmatpush1.bf16.msra.mxu0 %v5851
    %5948 = vmatprep.subr.bf16.mxu0 0
    %5949 = vmatpush1.bf16.msra.mxu0 %v5852
    %5950 = vmatprep.subr.bf16.mxu0 0
    %5951 = vmatpush1.bf16.msra.mxu0 %v5853
    %5952 = vmatprep.subr.bf16.mxu0 0
    %5953 = vmatpush1.bf16.msra.mxu0 %v5854
    %5954 = vmatprep.subr.bf16.mxu0 0
    %5955 = vmatpush1.bf16.msra.mxu0 %v5855
    %5956 = vmatprep.subr.bf16.mxu0 0
    %5957 = vmatpush1.bf16.msra.mxu0 %v5856
    %5958 = vmatprep.subr.bf16.mxu0 0
    %5959 = vmatpush1.bf16.msra.mxu0 %v5857
    %5960 = vmatprep.subr.bf16.mxu0 0
    %5961 = vmatpush1.bf16.msra.mxu0 %v5858
    %5962 = vmatprep.subr.bf16.mxu0 0
    %5963 = vmatpush1.bf16.msra.mxu0 %v5859
    %5964 = vmatprep.mubr.bf16.mxu0 %v5699
    %5965 = vmatmul.mubr.bf16.gmra.mrb[0].mxu0 %v5698
    %v5966 = vpop.f32.mrb[0].mxu0
    %v5967 = vadd.f32 %v5927, %v5966
    %v5968 = vpop.f32.mrb[0].mxu0
    %v5969 = vpop.f32.mrb[0].mxu0
    %v5970 = vpop.f32.mrb[0].mxu0
    %5971 = vdwg.mxu0
    %5972 = vst [vmem:[#allocation16] sm:$0x3] %v5967
    // Predicated region
    $region78: #{net_forward.1} parent=1 // pred_check
      _
    $region79: #{net_forward.1} parent=1 // pred_check_branch
      %5974 = sbr.rel (0) target = $region81
    $region80: #{net_forward.1} parent=1 // pred_region
      %s5976 = ssub.s32 32, 32
      %5977 = vsyncadd [#allocation4], %s5976
      %s5979 = sshll.u32 [#allocation16], 4
      %s5980 = int_to_ptr.vmem [resolvable:$true] %s5979
      %5982 = dma.vmem_to_hbm [thread:$0]  %s5980, 32, %s11, [#allocation4]
    $region81: #{net_forward.1} parent=1 // pred_fallthru
      _
    // Predicated region
    $region82: #{net_forward.1} parent=1 // pred_check
      _
    $region83: #{net_forward.1} parent=1 // pred_check_branch
      %5984 = sbr.rel (0) target = $region85
    $region84: #{net_forward.1} parent=1 // pred_region
      %5985 = dma.done [#allocation4], 32
    $region85: #{net_forward.1} parent=1 // pred_fallthru
      _
    %5986 = vsyncpa [#allocation3], 1
    %5987 = vsyncpa [#allocation6], 1
    %5988 = vsyncpa [#allocation9], 1
    %5989 = vsyncpa [#allocation12], 1
    %5990 = vsyncpa [#allocation15], 1
    %5991 = vsyncpa [#allocation4], 1

</llo_original>
